<compile_context>
chip_gen: v7x
topology: tpu7x:2x2x1
jax: 0.10.0
libtpu: 0.0.40
codegen_flags: <defaults>
</compile_context>

<pallas_src>
import numpy as np
import jax
import jax.numpy as jnp
from jax.experimental import pallas as pl
from jax.experimental.pallas import tpu as pltpu


# ----------------------------- Pallas kernels --------------------------------

def _vmem():
    # whole-array block resident in VMEM
    return pl.BlockSpec(memory_space=pltpu.MemorySpace.VMEM)


def _elu(x):
    return jnp.where(x > 0, x, jnp.exp(x) - 1.0)


def _f32_dot(a, b):
    return jnp.dot(a, b, preferred_element_type=jnp.float32)


def _pack4(a, b, c, d):
    # pack 4 scalars into a single (1, 4) vector store
    lane = jax.lax.broadcasted_iota(jnp.int32, (1, 4), 1)
    return (jnp.where(lane == 0, a, 0.0) + jnp.where(lane == 1, b, 0.0)
            + jnp.where(lane == 2, c, 0.0) + jnp.where(lane == 3, d, 0.0))


def _lin1_maps_kernel(x_ref, w1t_ref, b1_ref, prow_ref, pcol_ref, wat_ref, wbt_ref,
                      h_ref, maps_ref):
    # lin1 + ELU in node-major layout (lane-dense fd*H last axis)
    h = _elu(_f32_dot(x_ref[...], w1t_ref[...]) + b1_ref[...])
    h_ref[...] = h
    # sheaf learner (layer 0): edge gather as one-hot matmuls, then linear + tanh
    fr = _f32_dot(prow_ref[...], h)          # x[row]
    fc = _f32_dot(pcol_ref[...], h)          # x[col]
    maps_ref[...] = jnp.tanh(_f32_dot(fr, wat_ref[...]) + _f32_dot(fc, wbt_ref[...]))


def _diffusion_core(h_ref, ls_ref, lg_ref, wl_ref, wrt_ref, s_ref, st_ref, mask_ref):
    # Shared per-layer pipeline: h and L_sheaf are loaded into VMEM exactly once.
    h = h_ref[...]
    Ls = ls_ref[...]
    Lg = lg_ref[...]

    # pre-update Dirichlet energies: trace(f^T L f) = sum(f * (L @ f))
    e_s_pre = jnp.sum(h * _f32_dot(Ls, h))
    e_g_pre = jnp.sum(h * _f32_dot(Lg, h))

    # left weights: (I_N (x) W_left) @ h, block-diagonal built in-kernel from (fd, fd)
    wl_tiled = _f32_dot(_f32_dot(s_ref[...], wl_ref[...]), st_ref[...]) * mask_ref[...]
    h1 = _f32_dot(wl_tiled, h)
    # right weights: h1 @ W_right^T (weight pre-transposed on the host, no in-kernel .T)
    h2 = _f32_dot(h1, wrt_ref[...])
    # sheaf diffusion + ELU (use_act=True)
    hn = _elu(_f32_dot(Ls, h2))

    # post-update Dirichlet energies
    e_s_post = jnp.sum(hn * _f32_dot(Ls, hn))
    e_g_post = jnp.sum(hn * _f32_dot(Lg, hn))
    return hn, e_s_pre, e_s_post, e_g_pre, e_g_post


def _layer_kernel(h_ref, ls_ref, lg_ref, wl_ref, wrt_ref, s_ref, st_ref, mask_ref,
                  hout_ref, e_ref):
    hn, esp, esq, egp, egq = _diffusion_core(h_ref, ls_ref, lg_ref, wl_ref, wrt_ref,
                                             s_ref, st_ref, mask_ref)
    hout_ref[...] = hn
    e_ref[...] = _pack4(esp, esq, egp, egq)


def _layer_maps_kernel(h_ref, ls_ref, lg_ref, wl_ref, wrt_ref, s_ref, st_ref, mask_ref,
                       pr_ref, pc_ref, wat_ref, wbt_ref,
                       hout_ref, e_ref, maps_ref):
    hn, esp, esq, egp, egq = _diffusion_core(h_ref, ls_ref, lg_ref, wl_ref, wrt_ref,
                                             s_ref, st_ref, mask_ref)
    hout_ref[...] = hn
    e_ref[...] = _pack4(esp, esq, egp, egq)

    # next-layer sheaf learner, evaluated directly on the stalk-major hn:
    #   maps[e, m] = tanh( sum_k  hn[row[e]*fd + k, :] @ WaT[k*H:(k+1)*H, :]
    #                           + hn[col[e]*fd + k, :] @ WbT[k*H:(k+1)*H, :] )
    # pr_ref[k] / pc_ref[k] are constant one-hot (E, N*fd) stalk-gather matrices, so the
    # gather runs on the MXU and hn never needs an in-kernel reshape to node-major layout.
    fd = pr_ref.shape[0]
    hidden = hn.shape[1]
    wat = wat_ref[...]
    wbt = wbt_ref[...]
    acc = None
    for k in range(fd):   # fd is tiny (3); static unrolled loop
        t = (_f32_dot(_f32_dot(pr_ref[k], hn), wat[k * hidden:(k + 1) * hidden, :])
             + _f32_dot(_f32_dot(pc_ref[k], hn), wbt[k * hidden:(k + 1) * hidden, :]))
        acc = t if acc is None else acc + t
    maps_ref[...] = jnp.tanh(acc)


# --------------------------- pallas_call wrappers -----------------------------

def lin1_maps_pallas(x, w1t, b1, prow, pcol, wat, wbt, *, n_nodes, fh, n_edges, dd):
    return pl.pallas_call(
        _lin1_maps_kernel,
        out_shape=(jax.ShapeDtypeStruct((n_nodes, fh), jnp.float32),
                   jax.ShapeDtypeStruct((n_edges, dd), jnp.float32)),
        in_specs=[_vmem()] * 7,
        out_specs=(_vmem(), _vmem()),
    )(x, w1t, b1, prow, pcol, wat, wbt)


def layer_pallas(h, Ls, Lg_exp, wl, wrt, S, St, mask):
    return pl.pallas_call(
        _layer_kernel,
        out_shape=(jax.ShapeDtypeStruct(h.shape, jnp.float32),
                   jax.ShapeDtypeStruct((1, 4), jnp.float32)),
        in_specs=[_vmem()] * 8,
        out_specs=(_vmem(), _vmem()),
    )(h, Ls, Lg_exp, wl, wrt, S, St, mask)


def layer_maps_pallas(h, Ls, Lg_exp, wl, wrt, S, St, mask, pr, pc, wat, wbt, *, n_edges, dd):
    return pl.pallas_call(
        _layer_maps_kernel,
        out_shape=(jax.ShapeDtypeStruct(h.shape, jnp.float32),
                   jax.ShapeDtypeStruct((1, 4), jnp.float32),
                   jax.ShapeDtypeStruct((n_edges, dd), jnp.float32)),
        in_specs=[_vmem()] * 12,
        out_specs=(_vmem(), _vmem(), _vmem()),
    )(h, Ls, Lg_exp, wl, wrt, S, St, mask, pr, pc, wat, wbt)


# ------------------------------ JAX / host glue --------------------------------

def build_graph(num_nodes):
    # small ring graph, both directions (PyG-style edge_index)
    src = list(range(num_nodes))
    dst = [(i + 1) % num_nodes for i in range(num_nodes)]
    edges = list(zip(src, dst)) + list(zip(dst, src))
    row = np.array([e[0] for e in edges], dtype=np.int32)
    col = np.array([e[1] for e in edges], dtype=np.int32)
    rev = np.array([edges.index((v, u)) for (u, v) in edges], dtype=np.int32)
    return row, col, rev


def build_sheaf_laplacian_dense(maps, row, col, rev, num_nodes, d, final_d):
    # TODO(synk): GeneralLaplacianBuilder is an external module; re-implemented here from its
    # mathematical definition (augmented, block-normalised general sheaf Laplacian with an
    # identity low-pass channel for add_lp=True).  Kept as host/JAX glue because it needs a
    # batched small eigh for the inverse-sqrt normalisation (no clean Pallas equivalent).
    E = maps.shape[0]
    Ft = jnp.zeros((E, final_d, final_d), jnp.float32)
    Ft = Ft.at[:, :d, :d].set(maps)
    Ft = Ft.at[:, d:, d:].set(jnp.eye(final_d - d, dtype=jnp.float32))
    FtF = jnp.einsum("eki,ekj->eij", Ft, Ft)                        # F^T F per directed edge
    D = jnp.zeros((num_nodes, final_d, final_d), jnp.float32).at[row].add(FtF)
    off = -jnp.einsum("eki,ekj->eij", Ft, Ft[rev])                  # -F_{u<|e}^T F_{v<|e}
    # augmented normalisation: L_norm = (D+I)^{-1/2} L (D+I)^{-1/2}, blockwise
    eye = jnp.eye(final_d, dtype=jnp.float32)
    w, V = jnp.linalg.eigh(D + eye[None])
    w_is = 1.0 / jnp.sqrt(jnp.clip(w, 1e-8, None))
    Dis = jnp.einsum("nik,nk,njk->nij", V, w_is, V)
    D_n = jnp.einsum("nij,njk,nkl->nil", Dis, D, Dis)
    off_n = jnp.einsum("eij,ejk,ekl->eil", Dis[row], off, Dis[col])
    blocks = jnp.zeros((num_nodes, num_nodes, final_d, final_d), jnp.float32)
    blocks = blocks.at[np.arange(num_nodes), np.arange(num_nodes)].set(D_n)
    blocks = blocks.at[row, col].add(off_n)
    return blocks.transpose(0, 2, 1, 3).reshape(num_nodes * final_d, num_nodes * final_d)


def init_params(key, in_channels, hidden, d, final_d, num_layers, out_channels):
    ks = jax.random.split(key, 4 + 3 * num_layers)

    def lin(k, out_f, in_f):
        bound = 1.0 / np.sqrt(in_f)
        return jax.random.uniform(k, (out_f, in_f), jnp.float32, -bound, bound)

    p = {}
    p["W1"] = lin(ks[0], hidden * final_d, in_channels)
    p["b1"] = jax.random.uniform(ks[1], (hidden * final_d,), jnp.float32,
                                 -1.0 / np.sqrt(in_channels), 1.0 / np.sqrt(in_channels))
    p["W2"] = lin(ks[2], out_channels, hidden * final_d)
    p["b2"] = jax.random.uniform(ks[3], (out_channels,), jnp.float32,
                                 -1.0 / np.sqrt(hidden * final_d), 1.0 / np.sqrt(hidden * final_d))
    p["W_left"] = [lin(ks[4 + 3 * i], final_d, final_d) for i in range(num_layers)]
    p["W_right"] = [lin(ks[5 + 3 * i], hidden, hidden) for i in range(num_layers)]
    # LocalConcatSheafLearner: Linear(2 * hidden * final_d, d*d, bias=False)
    p["W_sheaf"] = [lin(ks[6 + 3 * i], d * d, 2 * hidden * final_d) for i in range(num_layers)]
    # epsilons exist in the torch module but only matter when residual=True (default False here)
    p["epsilons"] = [jnp.zeros((final_d, 1), jnp.float32) for _ in range(num_layers)]
    return p


def make_forward(row, col, rev, *, num_nodes, d, final_d, hidden, num_layers):
    E = int(row.shape[0])
    NFD = num_nodes * final_d
    FH = final_d * hidden
    dd = d * d

    # ---- static host constants (baked into the jitted program, loaded to VMEM once/call)
    # node-major one-hot gathers for the layer-0 sheaf learner (x[row], x[col] as matmuls)
    prow = np.zeros((E, num_nodes), np.float32); prow[np.arange(E), row] = 1.0
    pcol = np.zeros((E, num_nodes), np.float32); pcol[np.arange(E), col] = 1.0
    # stalk-major one-hot gathers: pr_stack[k, e, row[e]*fd + k] = 1 (used for the fused
    # next-layer sheaf learner, so h never needs an in-kernel node-major reshape)
    pr_stack = np.zeros((final_d, E, NFD), np.float32)
    pc_stack = np.zeros((final_d, E, NFD), np.float32)
    for k in range(final_d):
        pr_stack[k, np.arange(E), row * final_d + k] = 1.0
        pc_stack[k, np.arange(E), col * final_d + k] = 1.0
    # graph Laplacian L = D - A (pyg get_laplacian, no normalization), expanded to stalk
    # space as kron(L, I_fd) so the graph Dirichlet energy can be evaluated on the
    # stalk-major h without any in-kernel reshape/relayout.
    A = np.zeros((num_nodes, num_nodes), np.float32)
    np.add.at(A, (row, col), 1.0)
    Lg = np.diag(A.sum(axis=1)) - A
    lg_exp = np.kron(Lg, np.eye(final_d, dtype=np.float32))
    # selector / mask used to build the block-diagonal (I_N (x) W_left) inside the kernel
    S = (np.arange(NFD)[:, None] % final_d == np.arange(final_d)[None, :]).astype(np.float32)
    St = np.ascontiguousarray(S.T)
    blockmask = (np.arange(NFD)[:, None] // final_d
                 == np.arange(NFD)[None, :] // final_d).astype(np.float32)

    prow_j, pcol_j = jnp.asarray(prow), jnp.asarray(pcol)
    pr_j, pc_j = jnp.asarray(pr_stack), jnp.asarray(pc_stack)
    lg_j = jnp.asarray(lg_exp)
    s_j, st_j, mask_j = jnp.asarray(S), jnp.asarray(St), jnp.asarray(blockmask)

    def forward(x, params):
        # eval mode / dropout=0  => all F.dropout calls are identity.
        x = x.astype(jnp.float32)
        w1t = params["W1"].T                              # pre-transposed: no .T in kernel
        b1 = params["b1"].reshape(1, -1)
        was = [params["W_sheaf"][l][:, :FH].T for l in range(num_layers)]   # (FH, dd)
        wbs = [params["W_sheaf"][l][:, FH:].T for l in range(num_layers)]

        # lin1 + ELU fused with the layer-0 sheaf learner (1 launch)
        h_nodes, maps = lin1_maps_pallas(x, w1t, b1, prow_j, pcol_j, was[0], wbs[0],
                                         n_nodes=num_nodes, fh=FH, n_edges=E, dd=dd)
        h = h_nodes.reshape(NFD, hidden)                  # x.view(N*final_d, -1)

        sheaf_E, graph_E = [], []
        for layer in range(num_layers):
            L_sheaf = build_sheaf_laplacian_dense(maps.reshape(E, d, d), row, col, rev,
                                                  num_nodes, d, final_d)
            # TODO(synk): eval-mode scipy eigsh(lambda_max) + set_L + print in the torch
            # forward are side-effects only (no influence on returned energies) - skipped.

            wl = params["W_left"][layer]
            wrt = params["W_right"][layer].T
            if layer + 1 < num_layers:
                # fused: pre energies + left/right weights + L@x + ELU + post energies
                #        + next-layer sheaf learner (1 launch)
                h, e4, maps = layer_maps_pallas(h, L_sheaf, lg_j, wl, wrt, s_j, st_j, mask_j,
                                                pr_j, pc_j, was[layer + 1], wbs[layer + 1],
                                                n_edges=E, dd=dd)
            else:
                # last layer: same fused update without the (unneeded) maps output
                h, e4 = layer_pallas(h, L_sheaf, lg_j, wl, wrt, s_j, st_j, mask_j)

            sheaf_E += [e4[0, 0], e4[0, 1]]
            graph_E += [e4[0, 2], e4[0, 3]]
            # residual=False (default): no epsilon/residual update.

        # lin2(x) is computed by the torch module but its result is discarded (only the
        # energies are returned) -- dead code elided.
        return jnp.stack(sheaf_E), jnp.stack(graph_E)

    return jax.jit(forward)


# --------------------------------- main ---------------------------------------

if __name__ == "__main__":
    in_channels, hidden_channels, d, num_layers, num_nodes = 4, 8, 2, 2, 8
    add_lp, add_hp = True, False
    final_d = d + int(add_lp) + int(add_hp)
    out_channels = hidden_channels

    row_np, col_np, rev_np = build_graph(num_nodes)

    key = jax.random.PRNGKey(0)
    k_x, k_p = jax.random.split(key)
    params = init_params(k_p, in_channels, hidden_channels, d, final_d, num_layers, out_channels)
    x = jax.random.normal(k_x, (num_nodes, in_channels), jnp.float32)

    fwd = make_forward(row_np, col_np, rev_np, num_nodes=num_nodes, d=d,
                       final_d=final_d, hidden=hidden_channels, num_layers=num_layers)
    sheaf_e, graph_e = fwd(x, params)
    jax.block_until_ready((sheaf_e, graph_e))
    print("KERNEL_OK")
</pallas_src>

<mosaic_0001>
module attributes {stable_mosaic.version = 11 : i64} {
  func.func @_lin1_maps_kernel(%arg0: memref<8x4xf32, #tpu.memory_space<vmem>>, %arg1: memref<4x24xf32, #tpu.memory_space<vmem>>, %arg2: memref<1x24xf32, #tpu.memory_space<vmem>>, %arg3: memref<16x8xf32, #tpu.memory_space<vmem>>, %arg4: memref<16x8xf32, #tpu.memory_space<vmem>>, %arg5: memref<24x4xf32, #tpu.memory_space<vmem>>, %arg6: memref<24x4xf32, #tpu.memory_space<vmem>>, %arg7: memref<8x24xf32, #tpu.memory_space<vmem>>, %arg8: memref<16x4xf32, #tpu.memory_space<vmem>>) attributes {dimension_semantics = [], scalar_prefetch = 0 : i64, scratch_operands = 0 : i64, tpu.core_type = #tpu.core_type<tc>} {
    %c0 = arith.constant 0 : index
    %c0_0 = arith.constant 0 : index
    %0 = vector.load %arg0[%c0, %c0_0] : memref<8x4xf32, #tpu.memory_space<vmem>>, vector<8x4xf32>
    %c0_1 = arith.constant 0 : index
    %c0_2 = arith.constant 0 : index
    %1 = vector.load %arg1[%c0_1, %c0_2] : memref<4x24xf32, #tpu.memory_space<vmem>>, vector<4x24xf32>
    %cst = arith.constant dense<0.000000e+00> : vector<8x24xf32>
    %2 = tpu.matmul %0, %1, %cst {dimension_numbers = #tpu.dot_dimension_numbers<[1], [0], [0], [1], [0, 0, 1, 1], [], []>} : vector<8x4xf32>, vector<4x24xf32>, vector<8x24xf32> -> vector<8x24xf32>
    %c0_3 = arith.constant 0 : index
    %c0_4 = arith.constant 0 : index
    %3 = vector.load %arg2[%c0_3, %c0_4] : memref<1x24xf32, #tpu.memory_space<vmem>>, vector<1x24xf32>
    %4 = vector.broadcast %3 : vector<1x24xf32> to vector<8x24xf32>
    %5 = arith.addf %2, %4 : vector<8x24xf32>
    %cst_5 = arith.constant 0.000000e+00 : f32
    %6 = vector.broadcast %cst_5 : f32 to vector<8x24xf32>
    %7 = arith.cmpf ogt, %5, %6 : vector<8x24xf32>
    %8 = math.exp %5 : vector<8x24xf32>
    %cst_6 = arith.constant 1.000000e+00 : f32
    %9 = vector.broadcast %cst_6 : f32 to vector<8x24xf32>
    %10 = arith.subf %8, %9 : vector<8x24xf32>
    %11 = arith.select %7, %5, %10 : vector<8x24xi1>, vector<8x24xf32>
    %c0_7 = arith.constant 0 : index
    %c0_8 = arith.constant 0 : index
    %12 = vector.load %arg7[%c0_7, %c0_8] : memref<8x24xf32, #tpu.memory_space<vmem>>, vector<8x24xf32>
    tpu.vector_store %arg7[%c0_7, %c0_8], %11 {strides = array<i32>} : memref<8x24xf32, #tpu.memory_space<vmem>>, vector<8x24xf32>,
    %c0_9 = arith.constant 0 : index
    %c0_10 = arith.constant 0 : index
    %13 = vector.load %arg3[%c0_9, %c0_10] : memref<16x8xf32, #tpu.memory_space<vmem>>, vector<16x8xf32>
    %cst_11 = arith.constant dense<0.000000e+00> : vector<16x24xf32>
    %14 = tpu.matmul %13, %11, %cst_11 {dimension_numbers = #tpu.dot_dimension_numbers<[1], [0], [0], [1], [0, 0, 1, 1], [], []>} : vector<16x8xf32>, vector<8x24xf32>, vector<16x24xf32> -> vector<16x24xf32>
    %c0_12 = arith.constant 0 : index
    %c0_13 = arith.constant 0 : index
    %15 = vector.load %arg4[%c0_12, %c0_13] : memref<16x8xf32, #tpu.memory_space<vmem>>, vector<16x8xf32>
    %cst_14 = arith.constant dense<0.000000e+00> : vector<16x24xf32>
    %16 = tpu.matmul %15, %11, %cst_14 {dimension_numbers = #tpu.dot_dimension_numbers<[1], [0], [0], [1], [0, 0, 1, 1], [], []>} : vector<16x8xf32>, vector<8x24xf32>, vector<16x24xf32> -> vector<16x24xf32>
    %c0_15 = arith.constant 0 : index
    %c0_16 = arith.constant 0 : index
    %17 = vector.load %arg5[%c0_15, %c0_16] : memref<24x4xf32, #tpu.memory_space<vmem>>, vector<24x4xf32>
    %cst_17 = arith.constant dense<0.000000e+00> : vector<16x4xf32>
    %18 = tpu.matmul %14, %17, %cst_17 {dimension_numbers = #tpu.dot_dimension_numbers<[1], [0], [0], [1], [0, 0, 1, 1], [], []>} : vector<16x24xf32>, vector<24x4xf32>, vector<16x4xf32> -> vector<16x4xf32>
    %c0_18 = arith.constant 0 : index
    %c0_19 = arith.constant 0 : index
    %19 = vector.load %arg6[%c0_18, %c0_19] : memref<24x4xf32, #tpu.memory_space<vmem>>, vector<24x4xf32>
    %cst_20 = arith.constant dense<0.000000e+00> : vector<16x4xf32>
    %20 = tpu.matmul %16, %19, %cst_20 {dimension_numbers = #tpu.dot_dimension_numbers<[1], [0], [0], [1], [0, 0, 1, 1], [], []>} : vector<16x24xf32>, vector<24x4xf32>, vector<16x4xf32> -> vector<16x4xf32>
    %21 = arith.addf %18, %20 : vector<16x4xf32>
    %22 = math.tanh %21 : vector<16x4xf32>
    %c0_21 = arith.constant 0 : index
    %c0_22 = arith.constant 0 : index
    %23 = vector.load %arg8[%c0_21, %c0_22] : memref<16x4xf32, #tpu.memory_space<vmem>>, vector<16x4xf32>
    tpu.vector_store %arg8[%c0_21, %c0_22], %22 {strides = array<i32>} : memref<16x4xf32, #tpu.memory_space<vmem>>, vector<16x4xf32>,
    return
  }
}

module attributes {stable_mosaic.version = 11 : i64} {
  func.func @_layer_kernel(%arg0: memref<24x8xf32, #tpu.memory_space<vmem>>, %arg1: memref<24x24xf32, #tpu.memory_space<vmem>>, %arg2: memref<24x24xf32, #tpu.memory_space<vmem>>, %arg3: memref<3x3xf32, #tpu.memory_space<vmem>>, %arg4: memref<8x8xf32, #tpu.memory_space<vmem>>, %arg5: memref<24x3xf32, #tpu.memory_space<vmem>>, %arg6: memref<3x24xf32, #tpu.memory_space<vmem>>, %arg7: memref<24x24xf32, #tpu.memory_space<vmem>>, %arg8: memref<24x8xf32, #tpu.memory_space<vmem>>, %arg9: memref<1x4xf32, #tpu.memory_space<vmem>>) attributes {dimension_semantics = [], scalar_prefetch = 0 : i64, scratch_operands = 0 : i64, tpu.core_type = #tpu.core_type<tc>} {
    %c0 = arith.constant 0 : index
    %c0_0 = arith.constant 0 : index
    %0 = vector.load %arg0[%c0, %c0_0] : memref<24x8xf32, #tpu.memory_space<vmem>>, vector<24x8xf32>
    %c0_1 = arith.constant 0 : index
    %c0_2 = arith.constant 0 : index
    %1 = vector.load %arg1[%c0_1, %c0_2] : memref<24x24xf32, #tpu.memory_space<vmem>>, vector<24x24xf32>
    %c0_3 = arith.constant 0 : index
    %c0_4 = arith.constant 0 : index
    %2 = vector.load %arg2[%c0_3, %c0_4] : memref<24x24xf32, #tpu.memory_space<vmem>>, vector<24x24xf32>
    %cst = arith.constant dense<0.000000e+00> : vector<24x8xf32>
    %3 = tpu.matmul %1, %0, %cst {dimension_numbers = #tpu.dot_dimension_numbers<[1], [0], [0], [1], [0, 0, 1, 1], [], []>} : vector<24x24xf32>, vector<24x8xf32>, vector<24x8xf32> -> vector<24x8xf32>
    %4 = arith.mulf %0, %3 : vector<24x8xf32>
    %5 = vector.shape_cast %4 : vector<24x8xf32> to vector<1x24x8xf32>
    %cst_5 = arith.constant dense<0.000000e+00> : vector<1xf32>
    %6 = vector.multi_reduction <add>, %5, %cst_5 [1, 2] : vector<1x24x8xf32> to vector<1xf32>
    %7 = vector.shape_cast %6 : vector<1xf32> to vector<1x1x1xf32>
    %8 = vector.extract %7[0, 0, 0] : f32 from vector<1x1x1xf32>
    %cst_6 = arith.constant dense<0.000000e+00> : vector<24x8xf32>
    %9 = tpu.matmul %2, %0, %cst_6 {dimension_numbers = #tpu.dot_dimension_numbers<[1], [0], [0], [1], [0, 0, 1, 1], [], []>} : vector<24x24xf32>, vector<24x8xf32>, vector<24x8xf32> -> vector<24x8xf32>
    %10 = arith.mulf %0, %9 : vector<24x8xf32>
    %11 = vector.shape_cast %10 : vector<24x8xf32> to vector<1x24x8xf32>
    %cst_7 = arith.constant dense<0.000000e+00> : vector<1xf32>
    %12 = vector.multi_reduction <add>, %11, %cst_7 [1, 2] : vector<1x24x8xf32> to vector<1xf32>
    %13 = vector.shape_cast %12 : vector<1xf32> to vector<1x1x1xf32>
    %14 = vector.extract %13[0, 0, 0] : f32 from vector<1x1x1xf32>
    %c0_8 = arith.constant 0 : index
    %c0_9 = arith.constant 0 : index
    %15 = vector.load %arg5[%c0_8, %c0_9] : memref<24x3xf32, #tpu.memory_space<vmem>>, vector<24x3xf32>
    %c0_10 = arith.constant 0 : index
    %c0_11 = arith.constant 0 : index
    %16 = vector.load %arg3[%c0_10, %c0_11] : memref<3x3xf32, #tpu.memory_space<vmem>>, vector<3x3xf32>
    %cst_12 = arith.constant dense<0.000000e+00> : vector<24x3xf32>
    %17 = tpu.matmul %15, %16, %cst_12 {dimension_numbers = #tpu.dot_dimension_numbers<[1], [0], [0], [1], [0, 0, 1, 1], [], []>} : vector<24x3xf32>, vector<3x3xf32>, vector<24x3xf32> -> vector<24x3xf32>
    %c0_13 = arith.constant 0 : index
    %c0_14 = arith.constant 0 : index
    %18 = vector.load %arg6[%c0_13, %c0_14] : memref<3x24xf32, #tpu.memory_space<vmem>>, vector<3x24xf32>
    %cst_15 = arith.constant dense<0.000000e+00> : vector<24x24xf32>
    %19 = tpu.matmul %17, %18, %cst_15 {dimension_numbers = #tpu.dot_dimension_numbers<[1], [0], [0], [1], [0, 0, 1, 1], [], []>} : vector<24x3xf32>, vector<3x24xf32>, vector<24x24xf32> -> vector<24x24xf32>
    %c0_16 = arith.constant 0 : index
    %c0_17 = arith.constant 0 : index
    %20 = vector.load %arg7[%c0_16, %c0_17] : memref<24x24xf32, #tpu.memory_space<vmem>>, vector<24x24xf32>
    %21 = arith.mulf %19, %20 : vector<24x24xf32>
    %cst_18 = arith.constant dense<0.000000e+00> : vector<24x8xf32>
    %22 = tpu.matmul %21, %0, %cst_18 {dimension_numbers = #tpu.dot_dimension_numbers<[1], [0], [0], [1], [0, 0, 1, 1], [], []>} : vector<24x24xf32>, vector<24x8xf32>, vector<24x8xf32> -> vector<24x8xf32>
    %c0_19 = arith.constant 0 : index
    %c0_20 = arith.constant 0 : index
    %23 = vector.load %arg4[%c0_19, %c0_20] : memref<8x8xf32, #tpu.memory_space<vmem>>, vector<8x8xf32>
    %cst_21 = arith.constant dense<0.000000e+00> : vector<24x8xf32>
    %24 = tpu.matmul %22, %23, %cst_21 {dimension_numbers = #tpu.dot_dimension_numbers<[1], [0], [0], [1], [0, 0, 1, 1], [], []>} : vector<24x8xf32>, vector<8x8xf32>, vector<24x8xf32> -> vector<24x8xf32>
    %cst_22 = arith.constant dense<0.000000e+00> : vector<24x8xf32>
    %25 = tpu.matmul %1, %24, %cst_22 {dimension_numbers = #tpu.dot_dimension_numbers<[1], [0], [0], [1], [0, 0, 1, 1], [], []>} : vector<24x24xf32>, vector<24x8xf32>, vector<24x8xf32> -> vector<24x8xf32>
    %cst_23 = arith.constant 0.000000e+00 : f32
    %26 = vector.broadcast %cst_23 : f32 to vector<24x8xf32>
    %27 = arith.cmpf ogt, %25, %26 : vector<24x8xf32>
    %28 = math.exp %25 : vector<24x8xf32>
    %cst_24 = arith.constant 1.000000e+00 : f32
    %29 = vector.broadcast %cst_24 : f32 to vector<24x8xf32>
    %30 = arith.subf %28, %29 : vector<24x8xf32>
    %31 = arith.select %27, %25, %30 : vector<24x8xi1>, vector<24x8xf32>
    %cst_25 = arith.constant dense<0.000000e+00> : vector<24x8xf32>
    %32 = tpu.matmul %1, %31, %cst_25 {dimension_numbers = #tpu.dot_dimension_numbers<[1], [0], [0], [1], [0, 0, 1, 1], [], []>} : vector<24x24xf32>, vector<24x8xf32>, vector<24x8xf32> -> vector<24x8xf32>
    %33 = arith.mulf %31, %32 : vector<24x8xf32>
    %34 = vector.shape_cast %33 : vector<24x8xf32> to vector<1x24x8xf32>
    %cst_26 = arith.constant dense<0.000000e+00> : vector<1xf32>
    %35 = vector.multi_reduction <add>, %34, %cst_26 [1, 2] : vector<1x24x8xf32> to vector<1xf32>
    %36 = vector.shape_cast %35 : vector<1xf32> to vector<1x1x1xf32>
    %37 = vector.extract %36[0, 0, 0] : f32 from vector<1x1x1xf32>
    %cst_27 = arith.constant dense<0.000000e+00> : vector<24x8xf32>
    %38 = tpu.matmul %2, %31, %cst_27 {dimension_numbers = #tpu.dot_dimension_numbers<[1], [0], [0], [1], [0, 0, 1, 1], [], []>} : vector<24x24xf32>, vector<24x8xf32>, vector<24x8xf32> -> vector<24x8xf32>
    %39 = arith.mulf %31, %38 : vector<24x8xf32>
    %40 = vector.shape_cast %39 : vector<24x8xf32> to vector<1x24x8xf32>
    %cst_28 = arith.constant dense<0.000000e+00> : vector<1xf32>
    %41 = vector.multi_reduction <add>, %40, %cst_28 [1, 2] : vector<1x24x8xf32> to vector<1xf32>
    %42 = vector.shape_cast %41 : vector<1xf32> to vector<1x1x1xf32>
    %43 = vector.extract %42[0, 0, 0] : f32 from vector<1x1x1xf32>
    %c0_29 = arith.constant 0 : index
    %c0_30 = arith.constant 0 : index
    %44 = vector.load %arg8[%c0_29, %c0_30] : memref<24x8xf32, #tpu.memory_space<vmem>>, vector<24x8xf32>
    tpu.vector_store %arg8[%c0_29, %c0_30], %31 {strides = array<i32>} : memref<24x8xf32, #tpu.memory_space<vmem>>, vector<24x8xf32>,
    %45 = tpu.iota {dimensions = array<i32: 1>} : vector<1x4xi32>
    %c0_i32 = arith.constant 0 : i32
    %46 = vector.broadcast %c0_i32 : i32 to vector<1x4xi32>
    %47 = arith.cmpi eq, %45, %46 : vector<1x4xi32>
    %cst_31 = arith.constant 0.000000e+00 : f32
    %48 = vector.broadcast %8 : f32 to vector<1x4xf32>
    %49 = vector.broadcast %cst_31 : f32 to vector<1x4xf32>
    %50 = arith.select %47, %48, %49 : vector<1x4xi1>, vector<1x4xf32>
    %c1_i32 = arith.constant 1 : i32
    %51 = vector.broadcast %c1_i32 : i32 to vector<1x4xi32>
    %52 = arith.cmpi eq, %45, %51 : vector<1x4xi32>
    %cst_32 = arith.constant 0.000000e+00 : f32
    %53 = vector.broadcast %37 : f32 to vector<1x4xf32>
    %54 = vector.broadcast %cst_32 : f32 to vector<1x4xf32>
    %55 = arith.select %52, %53, %54 : vector<1x4xi1>, vector<1x4xf32>
    %56 = arith.addf %50, %55 : vector<1x4xf32>
    %c2_i32 = arith.constant 2 : i32
    %57 = vector.broadcast %c2_i32 : i32 to vector<1x4xi32>
    %58 = arith.cmpi eq, %45, %57 : vector<1x4xi32>
    %cst_33 = arith.constant 0.000000e+00 : f32
    %59 = vector.broadcast %14 : f32 to vector<1x4xf32>
    %60 = vector.broadcast %cst_33 : f32 to vector<1x4xf32>
    %61 = arith.select %58, %59, %60 : vector<1x4xi1>, vector<1x4xf32>
    %62 = arith.addf %56, %61 : vector<1x4xf32>
    %c3_i32 = arith.constant 3 : i32
    %63 = vector.broadcast %c3_i32 : i32 to vector<1x4xi32>
    %64 = arith.cmpi eq, %45, %63 : vector<1x4xi32>
    %cst_34 = arith.constant 0.000000e+00 : f32
    %65 = vector.broadcast %43 : f32 to vector<1x4xf32>
    %66 = vector.broadcast %cst_34 : f32 to vector<1x4xf32>
    %67 = arith.select %64, %65, %66 : vector<1x4xi1>, vector<1x4xf32>
    %68 = arith.addf %62, %67 : vector<1x4xf32>
    %c0_35 = arith.constant 0 : index
    %c0_36 = arith.constant 0 : index
    %69 = vector.load %arg9[%c0_35, %c0_36] : memref<1x4xf32, #tpu.memory_space<vmem>>, vector<1x4xf32>
    tpu.vector_store %arg9[%c0_35, %c0_36], %68 {strides = array<i32>} : memref<1x4xf32, #tpu.memory_space<vmem>>, vector<1x4xf32>,
    return
  }
}

module attributes {stable_mosaic.version = 11 : i64} {
  func.func @_layer_maps_kernel(%arg0: memref<24x8xf32, #tpu.memory_space<vmem>>, %arg1: memref<24x24xf32, #tpu.memory_space<vmem>>, %arg2: memref<24x24xf32, #tpu.memory_space<vmem>>, %arg3: memref<3x3xf32, #tpu.memory_space<vmem>>, %arg4: memref<8x8xf32, #tpu.memory_space<vmem>>, %arg5: memref<24x3xf32, #tpu.memory_space<vmem>>, %arg6: memref<3x24xf32, #tpu.memory_space<vmem>>, %arg7: memref<24x24xf32, #tpu.memory_space<vmem>>, %arg8: memref<3x16x24xf32, #tpu.memory_space<vmem>>, %arg9: memref<3x16x24xf32, #tpu.memory_space<vmem>>, %arg10: memref<24x4xf32, #tpu.memory_space<vmem>>, %arg11: memref<24x4xf32, #tpu.memory_space<vmem>>, %arg12: memref<24x8xf32, #tpu.memory_space<vmem>>, %arg13: memref<1x4xf32, #tpu.memory_space<vmem>>, %arg14: memref<16x4xf32, #tpu.memory_space<vmem>>) attributes {dimension_semantics = [], scalar_prefetch = 0 : i64, scratch_operands = 0 : i64, tpu.core_type = #tpu.core_type<tc>} {
    %c0 = arith.constant 0 : index
    %c0_0 = arith.constant 0 : index
    %0 = vector.load %arg0[%c0, %c0_0] : memref<24x8xf32, #tpu.memory_space<vmem>>, vector<24x8xf32>
    %c0_1 = arith.constant 0 : index
    %c0_2 = arith.constant 0 : index
    %1 = vector.load %arg1[%c0_1, %c0_2] : memref<24x24xf32, #tpu.memory_space<vmem>>, vector<24x24xf32>
    %c0_3 = arith.constant 0 : index
    %c0_4 = arith.constant 0 : index
    %2 = vector.load %arg2[%c0_3, %c0_4] : memref<24x24xf32, #tpu.memory_space<vmem>>, vector<24x24xf32>
    %cst = arith.constant dense<0.000000e+00> : vector<24x8xf32>
    %3 = tpu.matmul %1, %0, %cst {dimension_numbers = #tpu.dot_dimension_numbers<[1], [0], [0], [1], [0, 0, 1, 1], [], []>} : vector<24x24xf32>, vector<24x8xf32>, vector<24x8xf32> -> vector<24x8xf32>
    %4 = arith.mulf %0, %3 : vector<24x8xf32>
    %5 = vector.shape_cast %4 : vector<24x8xf32> to vector<1x24x8xf32>
    %cst_5 = arith.constant dense<0.000000e+00> : vector<1xf32>
    %6 = vector.multi_reduction <add>, %5, %cst_5 [1, 2] : vector<1x24x8xf32> to vector<1xf32>
    %7 = vector.shape_cast %6 : vector<1xf32> to vector<1x1x1xf32>
    %8 = vector.extract %7[0, 0, 0] : f32 from vector<1x1x1xf32>
    %cst_6 = arith.constant dense<0.000000e+00> : vector<24x8xf32>
    %9 = tpu.matmul %2, %0, %cst_6 {dimension_numbers = #tpu.dot_dimension_numbers<[1], [0], [0], [1], [0, 0, 1, 1], [], []>} : vector<24x24xf32>, vector<24x8xf32>, vector<24x8xf32> -> vector<24x8xf32>
    %10 = arith.mulf %0, %9 : vector<24x8xf32>
    %11 = vector.shape_cast %10 : vector<24x8xf32> to vector<1x24x8xf32>
    %cst_7 = arith.constant dense<0.000000e+00> : vector<1xf32>
    %12 = vector.multi_reduction <add>, %11, %cst_7 [1, 2] : vector<1x24x8xf32> to vector<1xf32>
    %13 = vector.shape_cast %12 : vector<1xf32> to vector<1x1x1xf32>
    %14 = vector.extract %13[0, 0, 0] : f32 from vector<1x1x1xf32>
    %c0_8 = arith.constant 0 : index
    %c0_9 = arith.constant 0 : index
    %15 = vector.load %arg5[%c0_8, %c0_9] : memref<24x3xf32, #tpu.memory_space<vmem>>, vector<24x3xf32>
    %c0_10 = arith.constant 0 : index
    %c0_11 = arith.constant 0 : index
    %16 = vector.load %arg3[%c0_10, %c0_11] : memref<3x3xf32, #tpu.memory_space<vmem>>, vector<3x3xf32>
    %cst_12 = arith.constant dense<0.000000e+00> : vector<24x3xf32>
    %17 = tpu.matmul %15, %16, %cst_12 {dimension_numbers = #tpu.dot_dimension_numbers<[1], [0], [0], [1], [0, 0, 1, 1], [], []>} : vector<24x3xf32>, vector<3x3xf32>, vector<24x3xf32> -> vector<24x3xf32>
    %c0_13 = arith.constant 0 : index
    %c0_14 = arith.constant 0 : index
    %18 = vector.load %arg6[%c0_13, %c0_14] : memref<3x24xf32, #tpu.memory_space<vmem>>, vector<3x24xf32>
    %cst_15 = arith.constant dense<0.000000e+00> : vector<24x24xf32>
    %19 = tpu.matmul %17, %18, %cst_15 {dimension_numbers = #tpu.dot_dimension_numbers<[1], [0], [0], [1], [0, 0, 1, 1], [], []>} : vector<24x3xf32>, vector<3x24xf32>, vector<24x24xf32> -> vector<24x24xf32>
    %c0_16 = arith.constant 0 : index
    %c0_17 = arith.constant 0 : index
    %20 = vector.load %arg7[%c0_16, %c0_17] : memref<24x24xf32, #tpu.memory_space<vmem>>, vector<24x24xf32>
    %21 = arith.mulf %19, %20 : vector<24x24xf32>
    %cst_18 = arith.constant dense<0.000000e+00> : vector<24x8xf32>
    %22 = tpu.matmul %21, %0, %cst_18 {dimension_numbers = #tpu.dot_dimension_numbers<[1], [0], [0], [1], [0, 0, 1, 1], [], []>} : vector<24x24xf32>, vector<24x8xf32>, vector<24x8xf32> -> vector<24x8xf32>
    %c0_19 = arith.constant 0 : index
    %c0_20 = arith.constant 0 : index
    %23 = vector.load %arg4[%c0_19, %c0_20] : memref<8x8xf32, #tpu.memory_space<vmem>>, vector<8x8xf32>
    %cst_21 = arith.constant dense<0.000000e+00> : vector<24x8xf32>
    %24 = tpu.matmul %22, %23, %cst_21 {dimension_numbers = #tpu.dot_dimension_numbers<[1], [0], [0], [1], [0, 0, 1, 1], [], []>} : vector<24x8xf32>, vector<8x8xf32>, vector<24x8xf32> -> vector<24x8xf32>
    %cst_22 = arith.constant dense<0.000000e+00> : vector<24x8xf32>
    %25 = tpu.matmul %1, %24, %cst_22 {dimension_numbers = #tpu.dot_dimension_numbers<[1], [0], [0], [1], [0, 0, 1, 1], [], []>} : vector<24x24xf32>, vector<24x8xf32>, vector<24x8xf32> -> vector<24x8xf32>
    %cst_23 = arith.constant 0.000000e+00 : f32
    %26 = vector.broadcast %cst_23 : f32 to vector<24x8xf32>
    %27 = arith.cmpf ogt, %25, %26 : vector<24x8xf32>
    %28 = math.exp %25 : vector<24x8xf32>
    %cst_24 = arith.constant 1.000000e+00 : f32
    %29 = vector.broadcast %cst_24 : f32 to vector<24x8xf32>
    %30 = arith.subf %28, %29 : vector<24x8xf32>
    %31 = arith.select %27, %25, %30 : vector<24x8xi1>, vector<24x8xf32>
    %cst_25 = arith.constant dense<0.000000e+00> : vector<24x8xf32>
    %32 = tpu.matmul %1, %31, %cst_25 {dimension_numbers = #tpu.dot_dimension_numbers<[1], [0], [0], [1], [0, 0, 1, 1], [], []>} : vector<24x24xf32>, vector<24x8xf32>, vector<24x8xf32> -> vector<24x8xf32>
    %33 = arith.mulf %31, %32 : vector<24x8xf32>
    %34 = vector.shape_cast %33 : vector<24x8xf32> to vector<1x24x8xf32>
    %cst_26 = arith.constant dense<0.000000e+00> : vector<1xf32>
    %35 = vector.multi_reduction <add>, %34, %cst_26 [1, 2] : vector<1x24x8xf32> to vector<1xf32>
    %36 = vector.shape_cast %35 : vector<1xf32> to vector<1x1x1xf32>
    %37 = vector.extract %36[0, 0, 0] : f32 from vector<1x1x1xf32>
    %cst_27 = arith.constant dense<0.000000e+00> : vector<24x8xf32>
    %38 = tpu.matmul %2, %31, %cst_27 {dimension_numbers = #tpu.dot_dimension_numbers<[1], [0], [0], [1], [0, 0, 1, 1], [], []>} : vector<24x24xf32>, vector<24x8xf32>, vector<24x8xf32> -> vector<24x8xf32>
    %39 = arith.mulf %31, %38 : vector<24x8xf32>
    %40 = vector.shape_cast %39 : vector<24x8xf32> to vector<1x24x8xf32>
    %cst_28 = arith.constant dense<0.000000e+00> : vector<1xf32>
    %41 = vector.multi_reduction <add>, %40, %cst_28 [1, 2] : vector<1x24x8xf32> to vector<1xf32>
    %42 = vector.shape_cast %41 : vector<1xf32> to vector<1x1x1xf32>
    %43 = vector.extract %42[0, 0, 0] : f32 from vector<1x1x1xf32>
    %c0_29 = arith.constant 0 : index
    %c0_30 = arith.constant 0 : index
    %44 = vector.load %arg12[%c0_29, %c0_30] : memref<24x8xf32, #tpu.memory_space<vmem>>, vector<24x8xf32>
    tpu.vector_store %arg12[%c0_29, %c0_30], %31 {strides = array<i32>} : memref<24x8xf32, #tpu.memory_space<vmem>>, vector<24x8xf32>,
    %45 = tpu.iota {dimensions = array<i32: 1>} : vector<1x4xi32>
    %c0_i32 = arith.constant 0 : i32
    %46 = vector.broadcast %c0_i32 : i32 to vector<1x4xi32>
    %47 = arith.cmpi eq, %45, %46 : vector<1x4xi32>
    %cst_31 = arith.constant 0.000000e+00 : f32
    %48 = vector.broadcast %8 : f32 to vector<1x4xf32>
    %49 = vector.broadcast %cst_31 : f32 to vector<1x4xf32>
    %50 = arith.select %47, %48, %49 : vector<1x4xi1>, vector<1x4xf32>
    %c1_i32 = arith.constant 1 : i32
    %51 = vector.broadcast %c1_i32 : i32 to vector<1x4xi32>
    %52 = arith.cmpi eq, %45, %51 : vector<1x4xi32>
    %cst_32 = arith.constant 0.000000e+00 : f32
    %53 = vector.broadcast %37 : f32 to vector<1x4xf32>
    %54 = vector.broadcast %cst_32 : f32 to vector<1x4xf32>
    %55 = arith.select %52, %53, %54 : vector<1x4xi1>, vector<1x4xf32>
    %56 = arith.addf %50, %55 : vector<1x4xf32>
    %c2_i32 = arith.constant 2 : i32
    %57 = vector.broadcast %c2_i32 : i32 to vector<1x4xi32>
    %58 = arith.cmpi eq, %45, %57 : vector<1x4xi32>
    %cst_33 = arith.constant 0.000000e+00 : f32
    %59 = vector.broadcast %14 : f32 to vector<1x4xf32>
    %60 = vector.broadcast %cst_33 : f32 to vector<1x4xf32>
    %61 = arith.select %58, %59, %60 : vector<1x4xi1>, vector<1x4xf32>
    %62 = arith.addf %56, %61 : vector<1x4xf32>
    %c3_i32 = arith.constant 3 : i32
    %63 = vector.broadcast %c3_i32 : i32 to vector<1x4xi32>
    %64 = arith.cmpi eq, %45, %63 : vector<1x4xi32>
    %cst_34 = arith.constant 0.000000e+00 : f32
    %65 = vector.broadcast %43 : f32 to vector<1x4xf32>
    %66 = vector.broadcast %cst_34 : f32 to vector<1x4xf32>
    %67 = arith.select %64, %65, %66 : vector<1x4xi1>, vector<1x4xf32>
    %68 = arith.addf %62, %67 : vector<1x4xf32>
    %c0_35 = arith.constant 0 : index
    %c0_36 = arith.constant 0 : index
    %69 = vector.load %arg13[%c0_35, %c0_36] : memref<1x4xf32, #tpu.memory_space<vmem>>, vector<1x4xf32>
    tpu.vector_store %arg13[%c0_35, %c0_36], %68 {strides = array<i32>} : memref<1x4xf32, #tpu.memory_space<vmem>>, vector<1x4xf32>,
    %c0_37 = arith.constant 0 : index
    %c0_38 = arith.constant 0 : index
    %70 = vector.load %arg10[%c0_37, %c0_38] : memref<24x4xf32, #tpu.memory_space<vmem>>, vector<24x4xf32>
    %c0_39 = arith.constant 0 : index
    %c0_40 = arith.constant 0 : index
    %71 = vector.load %arg11[%c0_39, %c0_40] : memref<24x4xf32, #tpu.memory_space<vmem>>, vector<24x4xf32>
    %c0_41 = arith.constant 0 : index
    %c0_42 = arith.constant 0 : index
    %c0_43 = arith.constant 0 : index
    %72 = vector.load %arg8[%c0_41, %c0_42, %c0_43] : memref<3x16x24xf32, #tpu.memory_space<vmem>>, vector<1x16x24xf32>
    %73 = vector.shape_cast %72 : vector<1x16x24xf32> to vector<16x24xf32>
    %cst_44 = arith.constant dense<0.000000e+00> : vector<16x8xf32>
    %74 = tpu.matmul %73, %31, %cst_44 {dimension_numbers = #tpu.dot_dimension_numbers<[1], [0], [0], [1], [0, 0, 1, 1], [], []>} : vector<16x24xf32>, vector<24x8xf32>, vector<16x8xf32> -> vector<16x8xf32>
    %75 = vector.extract_strided_slice %70 {offsets = [0, 0], sizes = [8, 4], strides = [1, 1]} : vector<24x4xf32> to vector<8x4xf32>
    %cst_45 = arith.constant dense<0.000000e+00> : vector<16x4xf32>
    %76 = tpu.matmul %74, %75, %cst_45 {dimension_numbers = #tpu.dot_dimension_numbers<[1], [0], [0], [1], [0, 0, 1, 1], [], []>} : vector<16x8xf32>, vector<8x4xf32>, vector<16x4xf32> -> vector<16x4xf32>
    %c0_46 = arith.constant 0 : index
    %c0_47 = arith.constant 0 : index
    %c0_48 = arith.constant 0 : index
    %77 = vector.load %arg9[%c0_46, %c0_47, %c0_48] : memref<3x16x24xf32, #tpu.memory_space<vmem>>, vector<1x16x24xf32>
    %78 = vector.shape_cast %77 : vector<1x16x24xf32> to vector<16x24xf32>
    %cst_49 = arith.constant dense<0.000000e+00> : vector<16x8xf32>
    %79 = tpu.matmul %78, %31, %cst_49 {dimension_numbers = #tpu.dot_dimension_numbers<[1], [0], [0], [1], [0, 0, 1, 1], [], []>} : vector<16x24xf32>, vector<24x8xf32>, vector<16x8xf32> -> vector<16x8xf32>
    %80 = vector.extract_strided_slice %71 {offsets = [0, 0], sizes = [8, 4], strides = [1, 1]} : vector<24x4xf32> to vector<8x4xf32>
    %cst_50 = arith.constant dense<0.000000e+00> : vector<16x4xf32>
    %81 = tpu.matmul %79, %80, %cst_50 {dimension_numbers = #tpu.dot_dimension_numbers<[1], [0], [0], [1], [0, 0, 1, 1], [], []>} : vector<16x8xf32>, vector<8x4xf32>, vector<16x4xf32> -> vector<16x4xf32>
    %82 = arith.addf %76, %81 : vector<16x4xf32>
    %c1 = arith.constant 1 : index
    %c0_51 = arith.constant 0 : index
    %c0_52 = arith.constant 0 : index
    %83 = vector.load %arg8[%c1, %c0_51, %c0_52] : memref<3x16x24xf32, #tpu.memory_space<vmem>>, vector<1x16x24xf32>
    %84 = vector.shape_cast %83 : vector<1x16x24xf32> to vector<16x24xf32>
    %cst_53 = arith.constant dense<0.000000e+00> : vector<16x8xf32>
    %85 = tpu.matmul %84, %31, %cst_53 {dimension_numbers = #tpu.dot_dimension_numbers<[1], [0], [0], [1], [0, 0, 1, 1], [], []>} : vector<16x24xf32>, vector<24x8xf32>, vector<16x8xf32> -> vector<16x8xf32>
    %86 = vector.extract_strided_slice %70 {offsets = [8, 0], sizes = [8, 4], strides = [1, 1]} : vector<24x4xf32> to vector<8x4xf32>
    %cst_54 = arith.constant dense<0.000000e+00> : vector<16x4xf32>
    %87 = tpu.matmul %85, %86, %cst_54 {dimension_numbers = #tpu.dot_dimension_numbers<[1], [0], [0], [1], [0, 0, 1, 1], [], []>} : vector<16x8xf32>, vector<8x4xf32>, vector<16x4xf32> -> vector<16x4xf32>
    %c1_55 = arith.constant 1 : index
    %c0_56 = arith.constant 0 : index
    %c0_57 = arith.constant 0 : index
    %88 = vector.load %arg9[%c1_55, %c0_56, %c0_57] : memref<3x16x24xf32, #tpu.memory_space<vmem>>, vector<1x16x24xf32>
    %89 = vector.shape_cast %88 : vector<1x16x24xf32> to vector<16x24xf32>
    %cst_58 = arith.constant dense<0.000000e+00> : vector<16x8xf32>
    %90 = tpu.matmul %89, %31, %cst_58 {dimension_numbers = #tpu.dot_dimension_numbers<[1], [0], [0], [1], [0, 0, 1, 1], [], []>} : vector<16x24xf32>, vector<24x8xf32>, vector<16x8xf32> -> vector<16x8xf32>
    %91 = vector.extract_strided_slice %71 {offsets = [8, 0], sizes = [8, 4], strides = [1, 1]} : vector<24x4xf32> to vector<8x4xf32>
    %cst_59 = arith.constant dense<0.000000e+00> : vector<16x4xf32>
    %92 = tpu.matmul %90, %91, %cst_59 {dimension_numbers = #tpu.dot_dimension_numbers<[1], [0], [0], [1], [0, 0, 1, 1], [], []>} : vector<16x8xf32>, vector<8x4xf32>, vector<16x4xf32> -> vector<16x4xf32>
    %93 = arith.addf %87, %92 : vector<16x4xf32>
    %94 = arith.addf %82, %93 : vector<16x4xf32>
    %c2 = arith.constant 2 : index
    %c0_60 = arith.constant 0 : index
    %c0_61 = arith.constant 0 : index
    %95 = vector.load %arg8[%c2, %c0_60, %c0_61] : memref<3x16x24xf32, #tpu.memory_space<vmem>>, vector<1x16x24xf32>
    %96 = vector.shape_cast %95 : vector<1x16x24xf32> to vector<16x24xf32>
    %cst_62 = arith.constant dense<0.000000e+00> : vector<16x8xf32>
    %97 = tpu.matmul %96, %31, %cst_62 {dimension_numbers = #tpu.dot_dimension_numbers<[1], [0], [0], [1], [0, 0, 1, 1], [], []>} : vector<16x24xf32>, vector<24x8xf32>, vector<16x8xf32> -> vector<16x8xf32>
    %98 = vector.extract_strided_slice %70 {offsets = [16, 0], sizes = [8, 4], strides = [1, 1]} : vector<24x4xf32> to vector<8x4xf32>
    %cst_63 = arith.constant dense<0.000000e+00> : vector<16x4xf32>
    %99 = tpu.matmul %97, %98, %cst_63 {dimension_numbers = #tpu.dot_dimension_numbers<[1], [0], [0], [1], [0, 0, 1, 1], [], []>} : vector<16x8xf32>, vector<8x4xf32>, vector<16x4xf32> -> vector<16x4xf32>
    %c2_64 = arith.constant 2 : index
    %c0_65 = arith.constant 0 : index
    %c0_66 = arith.constant 0 : index
    %100 = vector.load %arg9[%c2_64, %c0_65, %c0_66] : memref<3x16x24xf32, #tpu.memory_space<vmem>>, vector<1x16x24xf32>
    %101 = vector.shape_cast %100 : vector<1x16x24xf32> to vector<16x24xf32>
    %cst_67 = arith.constant dense<0.000000e+00> : vector<16x8xf32>
    %102 = tpu.matmul %101, %31, %cst_67 {dimension_numbers = #tpu.dot_dimension_numbers<[1], [0], [0], [1], [0, 0, 1, 1], [], []>} : vector<16x24xf32>, vector<24x8xf32>, vector<16x8xf32> -> vector<16x8xf32>
    %103 = vector.extract_strided_slice %71 {offsets = [16, 0], sizes = [8, 4], strides = [1, 1]} : vector<24x4xf32> to vector<8x4xf32>
    %cst_68 = arith.constant dense<0.000000e+00> : vector<16x4xf32>
    %104 = tpu.matmul %102, %103, %cst_68 {dimension_numbers = #tpu.dot_dimension_numbers<[1], [0], [0], [1], [0, 0, 1, 1], [], []>} : vector<16x8xf32>, vector<8x4xf32>, vector<16x4xf32> -> vector<16x4xf32>
    %105 = arith.addf %99, %104 : vector<16x4xf32>
    %106 = arith.addf %94, %105 : vector<16x4xf32>
    %107 = math.tanh %106 : vector<16x4xf32>
    %c0_69 = arith.constant 0 : index
    %c0_70 = arith.constant 0 : index
    %108 = vector.load %arg14[%c0_69, %c0_70] : memref<16x4xf32, #tpu.memory_space<vmem>>, vector<16x4xf32>
    tpu.vector_store %arg14[%c0_69, %c0_70], %107 {strides = array<i32>} : memref<16x4xf32, #tpu.memory_space<vmem>>, vector<16x4xf32>,
    return
  }
}

</mosaic_0001>

<llo_original>
// kernel: forward.3
$region0: #{forward.3}
  #allocation0 [shape = 'u32[]', space=smem, size = 0x4, offset = 0x4, fixed_abs, tag = 'smem constant byte address 0x4 - core index']
  #allocation1 [shape = 'u32[144,128]{1,0:T(1,128)}', space=vmem, size = 0x12000, scoped, tag = 'internal scratch']
  %s0 = inlined_call_operand.vmem [shape: f32[8,4], index: 0, kind: input, shape index: {}]
  %s1 = inlined_call_operand.vmem [shape: f32[4,24], index: 1, kind: input, shape index: {}]
  %s2 = inlined_call_operand.vmem [shape: f32[1,24], index: 2, kind: input, shape index: {}]
  %s3 = inlined_call_operand.vmem [shape: f32[16,8], index: 3, kind: input, shape index: {}]
  %s4 = inlined_call_operand.vmem [shape: f32[16,8], index: 4, kind: input, shape index: {}]
  %s5 = inlined_call_operand.vmem [shape: f32[24,4], index: 5, kind: input, shape index: {}]
  %s6 = inlined_call_operand.vmem [shape: f32[24,4], index: 6, kind: input, shape index: {}]
  %s7 = inlined_call_operand.vmem [shape: f32[8,24], index: 7, kind: output, shape index: {0}]
  %s8 = inlined_call_operand.vmem [shape: f32[16,4], index: 8, kind: output, shape index: {1}]
  %9 = xla_tuple %s7, %s8
  %s10 = sld [smem:[#allocation0]]
  $region46: #{forward.3} parent=0
    _
  %s12 = ssub.s32 1, %s10
  %s13 = scalar_select 0, %s12, %s10
  // Predicated region
  $region2: #{forward.3} parent=0 // pred_check
    _
  $region3: #{forward.3} parent=0 // pred_check_branch
    %15 = sbr.rel (0) target = $region5
  $region4: #{forward.3} parent=0 // pred_region
    _
  $region5: #{forward.3} parent=0 // pred_fallthru
    _
  // Predicated region
  $region6: #{forward.3} parent=0 // pred_check
    _
  $region7: #{forward.3} parent=0 // pred_check_branch
    %17 = sbr.rel (0) target = $region9
  $region8: #{forward.3} parent=0 // pred_region
    _
  $region9: #{forward.3} parent=0 // pred_fallthru
    _
  // Predicated region
  $region10: #{forward.3} parent=0 // pred_check
    _
  $region11: #{forward.3} parent=0 // pred_check_branch
    %19 = sbr.rel (0) target = $region13
  $region12: #{forward.3} parent=0 // pred_region
    _
  $region13: #{forward.3} parent=0 // pred_fallthru
    _
  // Predicated region
  $region14: #{forward.3} parent=0 // pred_check
    _
  $region15: #{forward.3} parent=0 // pred_check_branch
    %21 = sbr.rel (0) target = $region17
  $region16: #{forward.3} parent=0 // pred_region
    _
  $region17: #{forward.3} parent=0 // pred_fallthru
    _
  // Predicated region
  $region18: #{forward.3} parent=0 // pred_check
    _
  $region19: #{forward.3} parent=0 // pred_check_branch
    %23 = sbr.rel (0) target = $region21
  $region20: #{forward.3} parent=0 // pred_region
    _
  $region21: #{forward.3} parent=0 // pred_fallthru
    _
  // Predicated region
  $region22: #{forward.3} parent=0 // pred_check
    _
  $region23: #{forward.3} parent=0 // pred_check_branch
    %25 = sbr.rel (0) target = $region25
  $region24: #{forward.3} parent=0 // pred_region
    _
  $region25: #{forward.3} parent=0 // pred_fallthru
    _
  // Predicated region
  $region26: #{forward.3} parent=0 // pred_check
    _
  $region27: #{forward.3} parent=0 // pred_check_branch
    %27 = sbr.rel (0) target = $region29
  $region28: #{forward.3} parent=0 // pred_region
    _
  $region29: #{forward.3} parent=0 // pred_fallthru
    _
  %v28 = vld [vmem:[%s0] sm:$0xff]
  %v29 = vld [vmem:[%s1] sm:$0xf]
  %v30 = vld [vmem:[%s2] sm:$0x1]
  %v32 = vlaneseq
  %v33 = vshrl.u32 %v32, 7
  %v34 = vsub.s32 0, %v33
  %v35 = vrot.slane %v30, %v34
  %vm37 = vcmask 31744
  %v39 = vsel %vm37, %v28, 0
  %vm41 = vcmask 1043456
  %v43 = vsel %vm41, %v29, 0
  %45 = vmatprep.subr.mxu0 0.0
  %46 = vmatpush1.msra.mxu0 %v43
  %47 = vmatprep.subr.mxu0 0.0
  %48 = vmatpush1.msra.mxu0 0.0
  %49 = vmatprep.subr.mxu0 0.0
  %50 = vmatpush1.msra.mxu0 0.0
  %51 = vmatprep.subr.mxu0 0.0
  %52 = vmatpush1.msra.mxu0 0.0
  %53 = vmatprep.subr.mxu0 0.0
  %54 = vmatpush1.msra.mxu0 0.0
  %55 = vmatprep.subr.mxu0 0.0
  %56 = vmatpush1.msra.mxu0 0.0
  %57 = vmatprep.subr.mxu0 0.0
  %58 = vmatpush1.msra.mxu0 0.0
  %59 = vmatprep.subr.mxu0 0.0
  %60 = vmatpush1.msra.mxu0 0.0
  %61 = vmatprep.subr.mxu0 0.0
  %62 = vmatpush1.msra.mxu0 0.0
  %63 = vmatprep.subr.mxu0 0.0
  %64 = vmatpush1.msra.mxu0 0.0
  %65 = vmatprep.subr.mxu0 0.0
  %66 = vmatpush1.msra.mxu0 0.0
  %67 = vmatprep.subr.mxu0 0.0
  %68 = vmatpush1.msra.mxu0 0.0
  %69 = vmatprep.subr.mxu0 0.0
  %70 = vmatpush1.msra.mxu0 0.0
  %71 = vmatprep.subr.mxu0 0.0
  %72 = vmatpush1.msra.mxu0 0.0
  %73 = vmatprep.subr.mxu0 0.0
  %74 = vmatpush1.msra.mxu0 0.0
  %75 = vmatprep.subr.mxu0 0.0
  %76 = vmatpush1.msra.mxu0 0.0
  %77 = vmatprep.subr.mxu0 0.0
  %78 = vmatpush1.msra.mxu0 0.0
  %79 = vmatprep.subr.mxu0 0.0
  %80 = vmatpush1.msra.mxu0 0.0
  %81 = vmatprep.subr.mxu0 0.0
  %82 = vmatpush1.msra.mxu0 0.0
  %83 = vmatprep.subr.mxu0 0.0
  %84 = vmatpush1.msra.mxu0 0.0
  %85 = vmatprep.subr.mxu0 0.0
  %86 = vmatpush1.msra.mxu0 0.0
  %87 = vmatprep.subr.mxu0 0.0
  %88 = vmatpush1.msra.mxu0 0.0
  %89 = vmatprep.subr.mxu0 0.0
  %90 = vmatpush1.msra.mxu0 0.0
  %91 = vmatprep.subr.mxu0 0.0
  %92 = vmatpush1.msra.mxu0 0.0
  %93 = vmatprep.subr.mxu0 0.0
  %94 = vmatpush1.msra.mxu0 0.0
  %95 = vmatprep.subr.mxu0 0.0
  %96 = vmatpush1.msra.mxu0 0.0
  %97 = vmatprep.subr.mxu0 0.0
  %98 = vmatpush1.msra.mxu0 0.0
  %99 = vmatprep.subr.mxu0 0.0
  %100 = vmatpush1.msra.mxu0 0.0
  %101 = vmatprep.subr.mxu0 0.0
  %102 = vmatpush1.msra.mxu0 0.0
  %103 = vmatprep.subr.mxu0 0.0
  %104 = vmatpush1.msra.mxu0 0.0
  %105 = vmatprep.subr.mxu0 0.0
  %106 = vmatpush1.msra.mxu0 0.0
  %107 = vmatprep.subr.mxu0 0.0
  %108 = vmatpush1.msra.mxu0 0.0
  %109 = vmatprep.mubr.f32.mxu0 0.0
  %110 = vmatmul.mubr.f32.gmra.mrb[0].mxu0 %v39
  %v111 = vpop.f32.mrb[0].mxu0
  %v112 = vadd.f32 %v35, %v111
  %v113 = vpop.f32.mrb[0].mxu0
  %114 = vdwg.mxu0
  %vm115 = vcmp.gt.f32.partialorder %v112, 0.0
  %v116 = vmul.f32 %v112, 1.442695
  %v117 = vpow.pop %v116
  %v118 = vsub.f32 %v117, 1.0
  %v119 = vsel %vm115, %v112, %v118
  %vm120 = vcmask 195584
  %121 = vst.msk [vmem:[%s7] sm:$0xff] %vm120, %v119
  %v122 = vld [vmem:[%s3] sm:$0xff]
  %v123 = vld [vmem:[%s3 + $0x8] sm:$0xff]
  %vm124 = vcmask 64512
  %v126 = vsel %vm124, %v122, 0
  %v129 = vsel %vm124, %v123, 0
  %131 = vmatprep.subr.mxu0 0.0
  %132 = vmatpush1.msra.mxu0 %v119
  %133 = vmatprep.subr.mxu0 0.0
  %134 = vmatpush1.msra.mxu0 0.0
  %135 = vmatprep.subr.mxu0 0.0
  %136 = vmatpush1.msra.mxu0 0.0
  %137 = vmatprep.subr.mxu0 0.0
  %138 = vmatpush1.msra.mxu0 0.0
  %139 = vmatprep.subr.mxu0 0.0
  %140 = vmatpush1.msra.mxu0 0.0
  %141 = vmatprep.subr.mxu0 0.0
  %142 = vmatpush1.msra.mxu0 0.0
  %143 = vmatprep.subr.mxu0 0.0
  %144 = vmatpush1.msra.mxu0 0.0
  %145 = vmatprep.subr.mxu0 0.0
  %146 = vmatpush1.msra.mxu0 0.0
  %147 = vmatprep.subr.mxu0 0.0
  %148 = vmatpush1.msra.mxu0 0.0
  %149 = vmatprep.subr.mxu0 0.0
  %150 = vmatpush1.msra.mxu0 0.0
  %151 = vmatprep.subr.mxu0 0.0
  %152 = vmatpush1.msra.mxu0 0.0
  %153 = vmatprep.subr.mxu0 0.0
  %154 = vmatpush1.msra.mxu0 0.0
  %155 = vmatprep.subr.mxu0 0.0
  %156 = vmatpush1.msra.mxu0 0.0
  %157 = vmatprep.subr.mxu0 0.0
  %158 = vmatpush1.msra.mxu0 0.0
  %159 = vmatprep.subr.mxu0 0.0
  %160 = vmatpush1.msra.mxu0 0.0
  %161 = vmatprep.subr.mxu0 0.0
  %162 = vmatpush1.msra.mxu0 0.0
  %163 = vmatprep.subr.mxu0 0.0
  %164 = vmatpush1.msra.mxu0 0.0
  %165 = vmatprep.subr.mxu0 0.0
  %166 = vmatpush1.msra.mxu0 0.0
  %167 = vmatprep.subr.mxu0 0.0
  %168 = vmatpush1.msra.mxu0 0.0
  %169 = vmatprep.subr.mxu0 0.0
  %170 = vmatpush1.msra.mxu0 0.0
  %171 = vmatprep.subr.mxu0 0.0
  %172 = vmatpush1.msra.mxu0 0.0
  %173 = vmatprep.subr.mxu0 0.0
  %174 = vmatpush1.msra.mxu0 0.0
  %175 = vmatprep.subr.mxu0 0.0
  %176 = vmatpush1.msra.mxu0 0.0
  %177 = vmatprep.subr.mxu0 0.0
  %178 = vmatpush1.msra.mxu0 0.0
  %179 = vmatprep.subr.mxu0 0.0
  %180 = vmatpush1.msra.mxu0 0.0
  %181 = vmatprep.subr.mxu0 0.0
  %182 = vmatpush1.msra.mxu0 0.0
  %183 = vmatprep.subr.mxu0 0.0
  %184 = vmatpush1.msra.mxu0 0.0
  %185 = vmatprep.subr.mxu0 0.0
  %186 = vmatpush1.msra.mxu0 0.0
  %187 = vmatprep.subr.mxu0 0.0
  %188 = vmatpush1.msra.mxu0 0.0
  %189 = vmatprep.subr.mxu0 0.0
  %190 = vmatpush1.msra.mxu0 0.0
  %191 = vmatprep.subr.mxu0 0.0
  %192 = vmatpush1.msra.mxu0 0.0
  %193 = vmatprep.subr.mxu0 0.0
  %194 = vmatpush1.msra.mxu0 0.0
  %195 = vmatprep.mubr.f32.mxu0 0.0
  %196 = vmatmul.mubr.f32.gmra.mrb[0].mxu0 %v126
  %v197 = vpop.f32.mrb[0].mxu0
  %v198 = vadd.f32 0.0, %v197
  %v199 = vpop.f32.mrb[0].mxu0
  %200 = vmatprep.mubr.f32.mxu0 0.0
  %201 = vmatmul.mubr.f32.gmra.mrb[0].mxu0 %v129
  %v202 = vpop.f32.mrb[0].mxu0
  %v203 = vadd.f32 0.0, %v202
  %v204 = vpop.f32.mrb[0].mxu0
  %205 = vdwg.mxu0
  %v206 = vld [vmem:[%s4] sm:$0xff]
  %v207 = vld [vmem:[%s4 + $0x8] sm:$0xff]
  %v209 = vsel %vm124, %v206, 0
  %v212 = vsel %vm124, %v207, 0
  %214 = vmatprep.subr.mxu0 0.0
  %215 = vmatpush1.msra.mxu0 %v119
  %216 = vmatprep.subr.mxu0 0.0
  %217 = vmatpush1.msra.mxu0 0.0
  %218 = vmatprep.subr.mxu0 0.0
  %219 = vmatpush1.msra.mxu0 0.0
  %220 = vmatprep.subr.mxu0 0.0
  %221 = vmatpush1.msra.mxu0 0.0
  %222 = vmatprep.subr.mxu0 0.0
  %223 = vmatpush1.msra.mxu0 0.0
  %224 = vmatprep.subr.mxu0 0.0
  %225 = vmatpush1.msra.mxu0 0.0
  %226 = vmatprep.subr.mxu0 0.0
  %227 = vmatpush1.msra.mxu0 0.0
  %228 = vmatprep.subr.mxu0 0.0
  %229 = vmatpush1.msra.mxu0 0.0
  %230 = vmatprep.subr.mxu0 0.0
  %231 = vmatpush1.msra.mxu0 0.0
  %232 = vmatprep.subr.mxu0 0.0
  %233 = vmatpush1.msra.mxu0 0.0
  %234 = vmatprep.subr.mxu0 0.0
  %235 = vmatpush1.msra.mxu0 0.0
  %236 = vmatprep.subr.mxu0 0.0
  %237 = vmatpush1.msra.mxu0 0.0
  %238 = vmatprep.subr.mxu0 0.0
  %239 = vmatpush1.msra.mxu0 0.0
  %240 = vmatprep.subr.mxu0 0.0
  %241 = vmatpush1.msra.mxu0 0.0
  %242 = vmatprep.subr.mxu0 0.0
  %243 = vmatpush1.msra.mxu0 0.0
  %244 = vmatprep.subr.mxu0 0.0
  %245 = vmatpush1.msra.mxu0 0.0
  %246 = vmatprep.subr.mxu0 0.0
  %247 = vmatpush1.msra.mxu0 0.0
  %248 = vmatprep.subr.mxu0 0.0
  %249 = vmatpush1.msra.mxu0 0.0
  %250 = vmatprep.subr.mxu0 0.0
  %251 = vmatpush1.msra.mxu0 0.0
  %252 = vmatprep.subr.mxu0 0.0
  %253 = vmatpush1.msra.mxu0 0.0
  %254 = vmatprep.subr.mxu0 0.0
  %255 = vmatpush1.msra.mxu0 0.0
  %256 = vmatprep.subr.mxu0 0.0
  %257 = vmatpush1.msra.mxu0 0.0
  %258 = vmatprep.subr.mxu0 0.0
  %259 = vmatpush1.msra.mxu0 0.0
  %260 = vmatprep.subr.mxu0 0.0
  %261 = vmatpush1.msra.mxu0 0.0
  %262 = vmatprep.subr.mxu0 0.0
  %263 = vmatpush1.msra.mxu0 0.0
  %264 = vmatprep.subr.mxu0 0.0
  %265 = vmatpush1.msra.mxu0 0.0
  %266 = vmatprep.subr.mxu0 0.0
  %267 = vmatpush1.msra.mxu0 0.0
  %268 = vmatprep.subr.mxu0 0.0
  %269 = vmatpush1.msra.mxu0 0.0
  %270 = vmatprep.subr.mxu0 0.0
  %271 = vmatpush1.msra.mxu0 0.0
  %272 = vmatprep.subr.mxu0 0.0
  %273 = vmatpush1.msra.mxu0 0.0
  %274 = vmatprep.subr.mxu0 0.0
  %275 = vmatpush1.msra.mxu0 0.0
  %276 = vmatprep.subr.mxu0 0.0
  %277 = vmatpush1.msra.mxu0 0.0
  %278 = vmatprep.mubr.f32.mxu0 0.0
  %279 = vmatmul.mubr.f32.gmra.mrb[0].mxu0 %v209
  %v280 = vpop.f32.mrb[0].mxu0
  %v281 = vadd.f32 0.0, %v280
  %v282 = vpop.f32.mrb[0].mxu0
  %283 = vmatprep.mubr.f32.mxu0 0.0
  %284 = vmatmul.mubr.f32.gmra.mrb[0].mxu0 %v212
  %v285 = vpop.f32.mrb[0].mxu0
  %v286 = vadd.f32 0.0, %v285
  %v287 = vpop.f32.mrb[0].mxu0
  %288 = vdwg.mxu0
  %v289 = vld [vmem:[%s5] sm:$0xff]
  %v290 = vld [vmem:[%s5 + $0x8] sm:$0xff]
  %v291 = vld [vmem:[%s5 + $0x10] sm:$0xff]
  %v292 = vld [vmem:[%s6] sm:$0xff]
  %v293 = vld [vmem:[%s6 + $0x8] sm:$0xff]
  %v294 = vld [vmem:[%s6 + $0x10] sm:$0xff]
  %v296 = vsel %vm120, %v281, 0
  %v299 = vsel %vm120, %v286, 0
  %301 = vmatprep.subr.mxu0 0.0
  %302 = vmatpush1.msra.mxu0 %v292
  %303 = vmatprep.subr.mxu0 0.0
  %304 = vmatpush1.msra.mxu0 %v293
  %305 = vmatprep.subr.mxu0 0.0
  %306 = vmatpush1.msra.mxu0 %v294
  %307 = vmatprep.subr.mxu0 0.0
  %308 = vmatpush1.msra.mxu0 0.0
  %309 = vmatprep.subr.mxu0 0.0
  %310 = vmatpush1.msra.mxu0 0.0
  %311 = vmatprep.subr.mxu0 0.0
  %312 = vmatpush1.msra.mxu0 0.0
  %313 = vmatprep.subr.mxu0 0.0
  %314 = vmatpush1.msra.mxu0 0.0
  %315 = vmatprep.subr.mxu0 0.0
  %316 = vmatpush1.msra.mxu0 0.0
  %317 = vmatprep.subr.mxu0 0.0
  %318 = vmatpush1.msra.mxu0 0.0
  %319 = vmatprep.subr.mxu0 0.0
  %320 = vmatpush1.msra.mxu0 0.0
  %321 = vmatprep.subr.mxu0 0.0
  %322 = vmatpush1.msra.mxu0 0.0
  %323 = vmatprep.subr.mxu0 0.0
  %324 = vmatpush1.msra.mxu0 0.0
  %325 = vmatprep.subr.mxu0 0.0
  %326 = vmatpush1.msra.mxu0 0.0
  %327 = vmatprep.subr.mxu0 0.0
  %328 = vmatpush1.msra.mxu0 0.0
  %329 = vmatprep.subr.mxu0 0.0
  %330 = vmatpush1.msra.mxu0 0.0
  %331 = vmatprep.subr.mxu0 0.0
  %332 = vmatpush1.msra.mxu0 0.0
  %333 = vmatprep.subr.mxu0 0.0
  %334 = vmatpush1.msra.mxu0 0.0
  %335 = vmatprep.subr.mxu0 0.0
  %336 = vmatpush1.msra.mxu0 0.0
  %337 = vmatprep.subr.mxu0 0.0
  %338 = vmatpush1.msra.mxu0 0.0
  %339 = vmatprep.subr.mxu0 0.0
  %340 = vmatpush1.msra.mxu0 0.0
  %341 = vmatprep.subr.mxu0 0.0
  %342 = vmatpush1.msra.mxu0 0.0
  %343 = vmatprep.subr.mxu0 0.0
  %344 = vmatpush1.msra.mxu0 0.0
  %345 = vmatprep.subr.mxu0 0.0
  %346 = vmatpush1.msra.mxu0 0.0
  %347 = vmatprep.subr.mxu0 0.0
  %348 = vmatpush1.msra.mxu0 0.0
  %349 = vmatprep.subr.mxu0 0.0
  %350 = vmatpush1.msra.mxu0 0.0
  %351 = vmatprep.subr.mxu0 0.0
  %352 = vmatpush1.msra.mxu0 0.0
  %353 = vmatprep.subr.mxu0 0.0
  %354 = vmatpush1.msra.mxu0 0.0
  %355 = vmatprep.subr.mxu0 0.0
  %356 = vmatpush1.msra.mxu0 0.0
  %357 = vmatprep.subr.mxu0 0.0
  %358 = vmatpush1.msra.mxu0 0.0
  %359 = vmatprep.subr.mxu0 0.0
  %360 = vmatpush1.msra.mxu0 0.0
  %361 = vmatprep.subr.mxu0 0.0
  %362 = vmatpush1.msra.mxu0 0.0
  %363 = vmatprep.subr.mxu0 0.0
  %364 = vmatpush1.msra.mxu0 0.0
  %365 = vmatprep.mubr.f32.mxu0 0.0
  %366 = vmatmul.mubr.f32.gmra.mrb[0].mxu0 %v296
  %v367 = vpop.f32.mrb[0].mxu0
  %v368 = vadd.f32 0.0, %v367
  %v369 = vpop.f32.mrb[0].mxu0
  %370 = vmatprep.mubr.f32.mxu0 0.0
  %371 = vmatmul.mubr.f32.gmra.mrb[0].mxu0 %v299
  %v372 = vpop.f32.mrb[0].mxu0
  %v373 = vadd.f32 0.0, %v372
  %v374 = vpop.f32.mrb[0].mxu0
  %375 = vdwg.mxu0
  %v377 = vsel %vm120, %v198, 0
  %v380 = vsel %vm120, %v203, 0
  %382 = vmatprep.subr.mxu0 0.0
  %383 = vmatpush1.msra.mxu0 %v289
  %384 = vmatprep.subr.mxu0 0.0
  %385 = vmatpush1.msra.mxu0 %v290
  %386 = vmatprep.subr.mxu0 0.0
  %387 = vmatpush1.msra.mxu0 %v291
  %388 = vmatprep.subr.mxu0 0.0
  %389 = vmatpush1.msra.mxu0 0.0
  %390 = vmatprep.subr.mxu0 0.0
  %391 = vmatpush1.msra.mxu0 0.0
  %392 = vmatprep.subr.mxu0 0.0
  %393 = vmatpush1.msra.mxu0 0.0
  %394 = vmatprep.subr.mxu0 0.0
  %395 = vmatpush1.msra.mxu0 0.0
  %396 = vmatprep.subr.mxu0 0.0
  %397 = vmatpush1.msra.mxu0 0.0
  %398 = vmatprep.subr.mxu0 0.0
  %399 = vmatpush1.msra.mxu0 0.0
  %400 = vmatprep.subr.mxu0 0.0
  %401 = vmatpush1.msra.mxu0 0.0
  %402 = vmatprep.subr.mxu0 0.0
  %403 = vmatpush1.msra.mxu0 0.0
  %404 = vmatprep.subr.mxu0 0.0
  %405 = vmatpush1.msra.mxu0 0.0
  %406 = vmatprep.subr.mxu0 0.0
  %407 = vmatpush1.msra.mxu0 0.0
  %408 = vmatprep.subr.mxu0 0.0
  %409 = vmatpush1.msra.mxu0 0.0
  %410 = vmatprep.subr.mxu0 0.0
  %411 = vmatpush1.msra.mxu0 0.0
  %412 = vmatprep.subr.mxu0 0.0
  %413 = vmatpush1.msra.mxu0 0.0
  %414 = vmatprep.subr.mxu0 0.0
  %415 = vmatpush1.msra.mxu0 0.0
  %416 = vmatprep.subr.mxu0 0.0
  %417 = vmatpush1.msra.mxu0 0.0
  %418 = vmatprep.subr.mxu0 0.0
  %419 = vmatpush1.msra.mxu0 0.0
  %420 = vmatprep.subr.mxu0 0.0
  %421 = vmatpush1.msra.mxu0 0.0
  %422 = vmatprep.subr.mxu0 0.0
  %423 = vmatpush1.msra.mxu0 0.0
  %424 = vmatprep.subr.mxu0 0.0
  %425 = vmatpush1.msra.mxu0 0.0
  %426 = vmatprep.subr.mxu0 0.0
  %427 = vmatpush1.msra.mxu0 0.0
  %428 = vmatprep.subr.mxu0 0.0
  %429 = vmatpush1.msra.mxu0 0.0
  %430 = vmatprep.subr.mxu0 0.0
  %431 = vmatpush1.msra.mxu0 0.0
  %432 = vmatprep.subr.mxu0 0.0
  %433 = vmatpush1.msra.mxu0 0.0
  %434 = vmatprep.subr.mxu0 0.0
  %435 = vmatpush1.msra.mxu0 0.0
  %436 = vmatprep.subr.mxu0 0.0
  %437 = vmatpush1.msra.mxu0 0.0
  %438 = vmatprep.subr.mxu0 0.0
  %439 = vmatpush1.msra.mxu0 0.0
  %440 = vmatprep.subr.mxu0 0.0
  %441 = vmatpush1.msra.mxu0 0.0
  %442 = vmatprep.subr.mxu0 0.0
  %443 = vmatpush1.msra.mxu0 0.0
  %444 = vmatprep.subr.mxu0 0.0
  %445 = vmatpush1.msra.mxu0 0.0
  %446 = vmatprep.mubr.f32.mxu0 0.0
  %447 = vmatmul.mubr.f32.gmra.mrb[0].mxu0 %v377
  %v448 = vpop.f32.mrb[0].mxu0
  %v449 = vadd.f32 %v368, %v448
  %v450 = vpop.f32.mrb[0].mxu0
  %451 = vmatprep.mubr.f32.mxu0 0.0
  %452 = vmatmul.mubr.f32.gmra.mrb[0].mxu0 %v380
  %v453 = vpop.f32.mrb[0].mxu0
  %v454 = vadd.f32 %v373, %v453
  %v455 = vpop.f32.mrb[0].mxu0
  %456 = vdwg.mxu0
  %v457 = vtanh.pop %v449
  %v458 = vtanh.pop %v454
  %459 = vst.msk [vmem:[%s8] sm:$0xff] %vm37, %v457
  %460 = vst.msk [vmem:[%s8 + $0x8] sm:$0xff] %vm37, %v458
  // Predicated region
  $region30: #{forward.3} parent=0 // pred_check
    _
  $region31: #{forward.3} parent=0 // pred_check_branch
    %462 = sbr.rel (0) target = $region33
  $region32: #{forward.3} parent=0 // pred_region
    _
  $region33: #{forward.3} parent=0 // pred_fallthru
    _
  // Predicated region
  $region34: #{forward.3} parent=0 // pred_check
    _
  $region35: #{forward.3} parent=0 // pred_check_branch
    %464 = sbr.rel (0) target = $region37
  $region36: #{forward.3} parent=0 // pred_region
    _
  $region37: #{forward.3} parent=0 // pred_fallthru
    _
  // Predicated region
  $region38: #{forward.3} parent=0 // pred_check
    _
  $region39: #{forward.3} parent=0 // pred_check_branch
    %466 = sbr.rel (0) target = $region41
  $region40: #{forward.3} parent=0 // pred_region
    _
  $region41: #{forward.3} parent=0 // pred_fallthru
    _
  // Predicated region
  $region42: #{forward.3} parent=0 // pred_check
    _
  $region43: #{forward.3} parent=0 // pred_check_branch
    %468 = sbr.rel (0) target = $region45
  $region44: #{forward.3} parent=0 // pred_region
    _
  $region45: #{forward.3} parent=0 // pred_fallthru
    _

// kernel: custom-call.11
$region0: #{custom-call.11}
  %s0 = inlined_call_operand.vmem [shape: f32[8,2,2], index: 0, kind: input, shape index: {}]
  %s1 = inlined_call_operand.vmem [shape: f32[8,2,2], index: 1, kind: input, shape index: {}]
  %s2 = inlined_call_operand.vmem [shape: f32[8,2,2], index: 2, kind: input, shape index: {}]
  %s3 = inlined_call_operand.vmem [shape: f32[8,2,2], index: 3, kind: input, shape index: {}]
  %s4 = inlined_call_operand.vmem [shape: f32[8,2], index: 4, kind: output, shape index: {0}]
  %s5 = inlined_call_operand.vmem [shape: f32[8,2], index: 5, kind: output, shape index: {1}]
  %s6 = inlined_call_operand.vmem [shape: f32[8,2,2], index: 6, kind: output, shape index: {2}]
  %s7 = inlined_call_operand.vmem [shape: f32[8,2,2], index: 7, kind: output, shape index: {3}]
  %s8 = inlined_call_operand.vmem [shape: f32[8,2,2], index: 8, kind: output, shape index: {4}]
  %s9 = inlined_call_operand.vmem [shape: f32[8,2,2], index: 9, kind: output, shape index: {5}]
  %10 = xla_tuple %s4, %s5, %s6, %s7, %s8, %s9
  $region1: #{custom-call.11} parent=0
    #allocation0 [shape = 'u8[4096]{0}', space=vmem, size = 0x1000, scoped, tag = 'operand span for operand 0']
    #allocation1 [shape = 'u8[2048]{0}', space=vmem, size = 0x800, scoped, tag = 'packed  for operand 0']
    #allocation2 [shape = 'u8[4096]{0}', space=vmem, size = 0x1000, scoped, tag = 'operand span for operand 1']
    #allocation3 [shape = 'u8[2048]{0}', space=vmem, size = 0x800, scoped, tag = 'packed  for operand 1']
    #allocation4 [shape = 'u8[4096]{0}', space=vmem, size = 0x1000, scoped, tag = 'operand span for operand 2']
    #allocation5 [shape = 'u8[2048]{0}', space=vmem, size = 0x800, scoped, tag = 'packed  for operand 2']
    #allocation6 [shape = 'u8[4096]{0}', space=vmem, size = 0x1000, scoped, tag = 'operand span for operand 3']
    #allocation7 [shape = 'u8[2048]{0}', space=vmem, size = 0x800, scoped, tag = 'packed  for operand 3']
    #allocation8 [shape = 'u8[8192]{0}', space=vmem, size = 0x2000, scoped, tag = 'operand span for operand 4']
    #allocation9 [shape = 'u8[8192]{0}', space=vmem, size = 0x2000, scoped, tag = 'operand span for operand 5']
    #allocation10 [shape = 'u8[4096]{0}', space=vmem, size = 0x1000, scoped, tag = 'operand span for operand 6']
    #allocation11 [shape = 'u8[2048]{0}', space=vmem, size = 0x800, scoped, tag = 'packed  for operand 6']
    #allocation12 [shape = 'u8[4096]{0}', space=vmem, size = 0x1000, scoped, tag = 'operand span for operand 7']
    #allocation13 [shape = 'u8[2048]{0}', space=vmem, size = 0x800, scoped, tag = 'packed  for operand 7']
    #allocation14 [shape = 'u8[4096]{0}', space=vmem, size = 0x1000, scoped, tag = 'operand span for operand 8']
    #allocation15 [shape = 'u8[2048]{0}', space=vmem, size = 0x800, scoped, tag = 'packed  for operand 8']
    #allocation16 [shape = 'u8[4096]{0}', space=vmem, size = 0x1000, scoped, tag = 'operand span for operand 9']
    #allocation17 [shape = 'u8[2048]{0}', space=vmem, size = 0x800, scoped, tag = 'packed  for operand 9']
    loop: start=0, step=1, limit=10
    $region2: #{custom-call.11} parent=1 // loop_pre_header
      _
    $region3: #{custom-call.11} parent=1 // loop_header
      %s12 = sphi 0, %s16
      %p13 = scmp.ge.s32.totalorder %s12, 10
      %s24 = sphi 0, %s26
      %s27 = sphi 0, %s24
      %s28 = sphi 0, %s27
      %s44 = sphi 0, %s28
      %s52 = sphi 0, %s54
      %s55 = sphi 0, %s52
      %s56 = sphi 0, %s55
      %s72 = sphi 0, %s56
    $region4: #{custom-call.11} parent=1 // loop_header_branch
      %15 = sbr.rel (%p13) target = $region8
    $region5: #{custom-call.11} parent=1 // loop_body
      %s17 = ssub.s32 %s12, 1
      %s18 = ssub.s32 %s12, 2
      %s19 = sadd.s32 %s12, 1
      %s20 = sshrl.u32 %s12, 3
      %s21 = sshrl.u32 %s19, 3
      %s22 = ssub.s32 %s20, %s21
      %p23 = scmp.eq.s32.totalorder %s22, 0
      %s25 = sadd.s32 %s24, 1
      %s26 = scalar_select %p23, %s24, %s25
      %p29 = pneg %p23
      %p30 = scmp.eq.s32.totalorder %s12, 7
      %p31 = por %p29, %p30
      %p32 = scmp.ne.s32.totalorder %s24, %s27
      %p33 = scmp.eq.s32.totalorder %s12, 0
      %p34 = por %p32, %p33
      %p35 = scmp.ne.s32.totalorder %s24, %s27
      %p36 = scmp.eq.s32.totalorder %s17, 7
      %p37 = por %p35, %p36
      %p38 = scmp.ne.s32.totalorder %s27, %s28
      %p39 = scmp.eq.s32.totalorder %s17, 0
      %p40 = por %p38, %p39
      %p41 = scmp.ne.s32.totalorder %s27, %s28
      %p42 = scmp.eq.s32.totalorder %s18, 7
      %p43 = por %p41, %p42
      %p45 = scmp.ne.s32.totalorder %s28, %s44
      %p46 = scmp.eq.s32.totalorder %s18, 0
      %p47 = por %p45, %p46
      %s48 = sshrl.u32 %s12, 3
      %s49 = sshrl.u32 %s19, 3
      %s50 = ssub.s32 %s48, %s49
      %p51 = scmp.eq.s32.totalorder %s50, 0
      %s53 = sadd.s32 %s52, 1
      %s54 = scalar_select %p51, %s52, %s53
      %p57 = pneg %p51
      %p58 = scmp.eq.s32.totalorder %s12, 7
      %p59 = por %p57, %p58
      %p60 = scmp.ne.s32.totalorder %s52, %s55
      %p61 = scmp.eq.s32.totalorder %s12, 0
      %p62 = por %p60, %p61
      %p63 = scmp.ne.s32.totalorder %s52, %s55
      %p64 = scmp.eq.s32.totalorder %s17, 7
      %p65 = por %p63, %p64
      %p66 = scmp.ne.s32.totalorder %s55, %s56
      %p67 = scmp.eq.s32.totalorder %s17, 0
      %p68 = por %p66, %p67
      %p69 = scmp.ne.s32.totalorder %s55, %s56
      %p70 = scmp.eq.s32.totalorder %s18, 7
      %p71 = por %p69, %p70
      %p73 = scmp.ne.s32.totalorder %s56, %s72
      %p74 = scmp.eq.s32.totalorder %s18, 0
      %p75 = por %p73, %p74
      %p76 = scmp.le.s32.totalorder 1, %s12
      %p77 = scmp.lt.s32.totalorder %s12, 9
      %p78 = pnand %p76, %p77
      %p79 = pneg %p78
      // Predicated region
      $region9: #{custom-call.11} parent=5 // pred_check
        _
      $region10: #{custom-call.11} parent=5 // pred_check_branch
        %81 = sbr.rel (%p78) target = $region12
      $region11: #{custom-call.11} parent=5 // pred_region
        %s82 = ssub.s32 %s12, 1
      $region12: #{custom-call.11} parent=5 // pred_fallthru
        _
      %p83 = scmp.lt.s32.totalorder %s12, 8
      // Predicated region
      $region13: #{custom-call.11} parent=5 // pred_check
        %p84 = pneg %p83
      $region14: #{custom-call.11} parent=5 // pred_check_branch
        %86 = sbr.rel (%p84) target = $region16
      $region15: #{custom-call.11} parent=5 // pred_region
        %s87 = sand.u32 %s12, 1
        %s88 = sand.u32 %s12, 1
        %s89 = smul.addr %s88, 2
        %s90 = scalar_lea.vmem [#allocation1], %s89
        %s91 = smul.addr %s12, 2
        %s92 = scalar_lea.vmem %s0, %s91
        // Predicated region
        $region17: #{custom-call.11} parent=15 // pred_check
          _
        $region18: #{custom-call.11} parent=15 // pred_check_branch
          %94 = sbr.rel (0) target = $region20
        $region19: #{custom-call.11} parent=15 // pred_region
          // Predicated region
          $region21: #{custom-call.11} parent=19 // pred_check
            _
          $region22: #{custom-call.11} parent=19 // pred_check_branch
            %96 = sbr.rel target = $region24
          $region23: #{custom-call.11} parent=19 // pred_region
            // Predicated region
            $region36: #{custom-call.11} parent=23 // pred_check
              _
            $region37: #{custom-call.11} parent=23 // pred_check_branch
              %111 = sbr.rel (0) target = $region39
            $region38: #{custom-call.11} parent=23 // pred_region
              loop: start=0, step=1, limit=1
              $region40: #{custom-call.11} parent=38 // loop_pre_header
                _
              $region41: #{custom-call.11} parent=38 // loop_header
                %s114 = sphi 0, %s118
                %p115 = scmp.ge.s32.totalorder %s114, 1
                %s119 = sphi %s92, %s92
                %s120 = sphi %s90, %s90
              $region42: #{custom-call.11} parent=38 // loop_header_branch
                %117 = sbr.rel (%p115) target = $region46
              $region43: #{custom-call.11} parent=38 // loop_body
                %v121 = vld [vmem:[%s119] sm:$0x3]
                %122 = vst [vmem:[%s120] sm:$0x3] %v121
              $region44: #{custom-call.11} parent=38 // loop_footer
                %s118 = sadd.s32 1, %s114
              $region45: #{custom-call.11} parent=38 // loop_footer_branch
                %113 = sbr.rel target = $region41
              $region46: #{custom-call.11} parent=38 // loop_exit
                _
            $region39: #{custom-call.11} parent=23 // pred_fallthru
              _
          $region24: #{custom-call.11} parent=19 // pred_fallthru
            _
          // Predicated region
          $region25: #{custom-call.11} parent=19 // pred_check
            _
          $region26: #{custom-call.11} parent=19 // pred_check_branch
            %98 = sbr.rel (0) target = $region28
          $region27: #{custom-call.11} parent=19 // pred_region
            loop: start=0, step=1, limit=1
            $region29: #{custom-call.11} parent=27 // loop_pre_header
              _
            $region30: #{custom-call.11} parent=27 // loop_header
              %s101 = sphi 0, %s105
              %p102 = scmp.ge.s32.totalorder %s101, 1
              %s106 = sphi %s92, %s92
              %s107 = sphi %s90, %s90
            $region31: #{custom-call.11} parent=27 // loop_header_branch
              %104 = sbr.rel (%p102) target = $region35
            $region32: #{custom-call.11} parent=27 // loop_body
              %v108 = vld [vmem:[%s106] sm:$0x3]
              %109 = vst [vmem:[%s107] sm:$0x3] %v108
            $region33: #{custom-call.11} parent=27 // loop_footer
              %s105 = sadd.s32 1, %s101
            $region34: #{custom-call.11} parent=27 // loop_footer_branch
              %100 = sbr.rel target = $region30
            $region35: #{custom-call.11} parent=27 // loop_exit
              _
          $region28: #{custom-call.11} parent=19 // pred_fallthru
            _
        $region20: #{custom-call.11} parent=15 // pred_fallthru
          _
        %123 = vnop
        %s124 = sand.u32 %s12, 1
        %s125 = sand.u32 %s12, 1
        %s126 = smul.addr %s125, 2
        %s127 = scalar_lea.vmem [#allocation3], %s126
        %s128 = smul.addr %s12, 2
        %s129 = scalar_lea.vmem %s1, %s128
        // Predicated region
        $region47: #{custom-call.11} parent=15 // pred_check
          _
        $region48: #{custom-call.11} parent=15 // pred_check_branch
          %131 = sbr.rel (0) target = $region50
        $region49: #{custom-call.11} parent=15 // pred_region
          // Predicated region
          $region51: #{custom-call.11} parent=49 // pred_check
            _
          $region52: #{custom-call.11} parent=49 // pred_check_branch
            %133 = sbr.rel target = $region54
          $region53: #{custom-call.11} parent=49 // pred_region
            // Predicated region
            $region66: #{custom-call.11} parent=53 // pred_check
              _
            $region67: #{custom-call.11} parent=53 // pred_check_branch
              %148 = sbr.rel (0) target = $region69
            $region68: #{custom-call.11} parent=53 // pred_region
              loop: start=0, step=1, limit=1
              $region70: #{custom-call.11} parent=68 // loop_pre_header
                _
              $region71: #{custom-call.11} parent=68 // loop_header
                %s151 = sphi 0, %s155
                %p152 = scmp.ge.s32.totalorder %s151, 1
                %s156 = sphi %s129, %s129
                %s157 = sphi %s127, %s127
              $region72: #{custom-call.11} parent=68 // loop_header_branch
                %154 = sbr.rel (%p152) target = $region76
              $region73: #{custom-call.11} parent=68 // loop_body
                %v158 = vld [vmem:[%s156] sm:$0x3]
                %159 = vst [vmem:[%s157] sm:$0x3] %v158
              $region74: #{custom-call.11} parent=68 // loop_footer
                %s155 = sadd.s32 1, %s151
              $region75: #{custom-call.11} parent=68 // loop_footer_branch
                %150 = sbr.rel target = $region71
              $region76: #{custom-call.11} parent=68 // loop_exit
                _
            $region69: #{custom-call.11} parent=53 // pred_fallthru
              _
          $region54: #{custom-call.11} parent=49 // pred_fallthru
            _
          // Predicated region
          $region55: #{custom-call.11} parent=49 // pred_check
            _
          $region56: #{custom-call.11} parent=49 // pred_check_branch
            %135 = sbr.rel (0) target = $region58
          $region57: #{custom-call.11} parent=49 // pred_region
            loop: start=0, step=1, limit=1
            $region59: #{custom-call.11} parent=57 // loop_pre_header
              _
            $region60: #{custom-call.11} parent=57 // loop_header
              %s138 = sphi 0, %s142
              %p139 = scmp.ge.s32.totalorder %s138, 1
              %s143 = sphi %s129, %s129
              %s144 = sphi %s127, %s127
            $region61: #{custom-call.11} parent=57 // loop_header_branch
              %141 = sbr.rel (%p139) target = $region65
            $region62: #{custom-call.11} parent=57 // loop_body
              %v145 = vld [vmem:[%s143] sm:$0x3]
              %146 = vst [vmem:[%s144] sm:$0x3] %v145
            $region63: #{custom-call.11} parent=57 // loop_footer
              %s142 = sadd.s32 1, %s138
            $region64: #{custom-call.11} parent=57 // loop_footer_branch
              %137 = sbr.rel target = $region60
            $region65: #{custom-call.11} parent=57 // loop_exit
              _
          $region58: #{custom-call.11} parent=49 // pred_fallthru
            _
        $region50: #{custom-call.11} parent=15 // pred_fallthru
          _
        %160 = vnop
        %s161 = sand.u32 %s12, 1
        %s162 = sand.u32 %s12, 1
        %s163 = smul.addr %s162, 2
        %s164 = scalar_lea.vmem [#allocation5], %s163
        %s165 = smul.addr %s12, 2
        %s166 = scalar_lea.vmem %s2, %s165
        // Predicated region
        $region77: #{custom-call.11} parent=15 // pred_check
          _
        $region78: #{custom-call.11} parent=15 // pred_check_branch
          %168 = sbr.rel (0) target = $region80
        $region79: #{custom-call.11} parent=15 // pred_region
          // Predicated region
          $region81: #{custom-call.11} parent=79 // pred_check
            _
          $region82: #{custom-call.11} parent=79 // pred_check_branch
            %170 = sbr.rel target = $region84
          $region83: #{custom-call.11} parent=79 // pred_region
            // Predicated region
            $region96: #{custom-call.11} parent=83 // pred_check
              _
            $region97: #{custom-call.11} parent=83 // pred_check_branch
              %185 = sbr.rel (0) target = $region99
            $region98: #{custom-call.11} parent=83 // pred_region
              loop: start=0, step=1, limit=1
              $region100: #{custom-call.11} parent=98 // loop_pre_header
                _
              $region101: #{custom-call.11} parent=98 // loop_header
                %s188 = sphi 0, %s192
                %p189 = scmp.ge.s32.totalorder %s188, 1
                %s193 = sphi %s166, %s166
                %s194 = sphi %s164, %s164
              $region102: #{custom-call.11} parent=98 // loop_header_branch
                %191 = sbr.rel (%p189) target = $region106
              $region103: #{custom-call.11} parent=98 // loop_body
                %v195 = vld [vmem:[%s193] sm:$0x3]
                %196 = vst [vmem:[%s194] sm:$0x3] %v195
              $region104: #{custom-call.11} parent=98 // loop_footer
                %s192 = sadd.s32 1, %s188
              $region105: #{custom-call.11} parent=98 // loop_footer_branch
                %187 = sbr.rel target = $region101
              $region106: #{custom-call.11} parent=98 // loop_exit
                _
            $region99: #{custom-call.11} parent=83 // pred_fallthru
              _
          $region84: #{custom-call.11} parent=79 // pred_fallthru
            _
          // Predicated region
          $region85: #{custom-call.11} parent=79 // pred_check
            _
          $region86: #{custom-call.11} parent=79 // pred_check_branch
            %172 = sbr.rel (0) target = $region88
          $region87: #{custom-call.11} parent=79 // pred_region
            loop: start=0, step=1, limit=1
            $region89: #{custom-call.11} parent=87 // loop_pre_header
              _
            $region90: #{custom-call.11} parent=87 // loop_header
              %s175 = sphi 0, %s179
              %p176 = scmp.ge.s32.totalorder %s175, 1
              %s180 = sphi %s166, %s166
              %s181 = sphi %s164, %s164
            $region91: #{custom-call.11} parent=87 // loop_header_branch
              %178 = sbr.rel (%p176) target = $region95
            $region92: #{custom-call.11} parent=87 // loop_body
              %v182 = vld [vmem:[%s180] sm:$0x3]
              %183 = vst [vmem:[%s181] sm:$0x3] %v182
            $region93: #{custom-call.11} parent=87 // loop_footer
              %s179 = sadd.s32 1, %s175
            $region94: #{custom-call.11} parent=87 // loop_footer_branch
              %174 = sbr.rel target = $region90
            $region95: #{custom-call.11} parent=87 // loop_exit
              _
          $region88: #{custom-call.11} parent=79 // pred_fallthru
            _
        $region80: #{custom-call.11} parent=15 // pred_fallthru
          _
        %197 = vnop
        %s198 = sand.u32 %s12, 1
        %s199 = sand.u32 %s12, 1
        %s200 = smul.addr %s199, 2
        %s201 = scalar_lea.vmem [#allocation7], %s200
        %s202 = smul.addr %s12, 2
        %s203 = scalar_lea.vmem %s3, %s202
        // Predicated region
        $region107: #{custom-call.11} parent=15 // pred_check
          _
        $region108: #{custom-call.11} parent=15 // pred_check_branch
          %205 = sbr.rel (0) target = $region110
        $region109: #{custom-call.11} parent=15 // pred_region
          // Predicated region
          $region111: #{custom-call.11} parent=109 // pred_check
            _
          $region112: #{custom-call.11} parent=109 // pred_check_branch
            %207 = sbr.rel target = $region114
          $region113: #{custom-call.11} parent=109 // pred_region
            // Predicated region
            $region126: #{custom-call.11} parent=113 // pred_check
              _
            $region127: #{custom-call.11} parent=113 // pred_check_branch
              %222 = sbr.rel (0) target = $region129
            $region128: #{custom-call.11} parent=113 // pred_region
              loop: start=0, step=1, limit=1
              $region130: #{custom-call.11} parent=128 // loop_pre_header
                _
              $region131: #{custom-call.11} parent=128 // loop_header
                %s225 = sphi 0, %s229
                %p226 = scmp.ge.s32.totalorder %s225, 1
                %s230 = sphi %s203, %s203
                %s231 = sphi %s201, %s201
              $region132: #{custom-call.11} parent=128 // loop_header_branch
                %228 = sbr.rel (%p226) target = $region136
              $region133: #{custom-call.11} parent=128 // loop_body
                %v232 = vld [vmem:[%s230] sm:$0x3]
                %233 = vst [vmem:[%s231] sm:$0x3] %v232
              $region134: #{custom-call.11} parent=128 // loop_footer
                %s229 = sadd.s32 1, %s225
              $region135: #{custom-call.11} parent=128 // loop_footer_branch
                %224 = sbr.rel target = $region131
              $region136: #{custom-call.11} parent=128 // loop_exit
                _
            $region129: #{custom-call.11} parent=113 // pred_fallthru
              _
          $region114: #{custom-call.11} parent=109 // pred_fallthru
            _
          // Predicated region
          $region115: #{custom-call.11} parent=109 // pred_check
            _
          $region116: #{custom-call.11} parent=109 // pred_check_branch
            %209 = sbr.rel (0) target = $region118
          $region117: #{custom-call.11} parent=109 // pred_region
            loop: start=0, step=1, limit=1
            $region119: #{custom-call.11} parent=117 // loop_pre_header
              _
            $region120: #{custom-call.11} parent=117 // loop_header
              %s212 = sphi 0, %s216
              %p213 = scmp.ge.s32.totalorder %s212, 1
              %s217 = sphi %s203, %s203
              %s218 = sphi %s201, %s201
            $region121: #{custom-call.11} parent=117 // loop_header_branch
              %215 = sbr.rel (%p213) target = $region125
            $region122: #{custom-call.11} parent=117 // loop_body
              %v219 = vld [vmem:[%s217] sm:$0x3]
              %220 = vst [vmem:[%s218] sm:$0x3] %v219
            $region123: #{custom-call.11} parent=117 // loop_footer
              %s216 = sadd.s32 1, %s212
            $region124: #{custom-call.11} parent=117 // loop_footer_branch
              %211 = sbr.rel target = $region120
            $region125: #{custom-call.11} parent=117 // loop_exit
              _
          $region118: #{custom-call.11} parent=109 // pred_fallthru
            _
        $region110: #{custom-call.11} parent=15 // pred_fallthru
          _
        %234 = vnop
      $region16: #{custom-call.11} parent=5 // pred_fallthru
        _
      %p235 = scmp.le.s32.totalorder 1, %s12
      %p236 = scmp.lt.s32.totalorder %s12, 9
      %p237 = pnand %p235, %p236
      %p238 = pneg %p237
      // Predicated region
      $region137: #{custom-call.11} parent=5 // pred_check
        _
      $region138: #{custom-call.11} parent=5 // pred_check_branch
        %240 = sbr.rel (%p237) target = $region140
      $region139: #{custom-call.11} parent=5 // pred_region
        #allocation18 [shape = 'f32[2,2]{1,0}', space=vmem, size = 0x1000, scoped, tag = 'a top-left matrix']
        #allocation19 [shape = 'f32[2,2]{1,0}', space=vmem, size = 0x1000, scoped, tag = 'a top-right matrix']
        #allocation20 [shape = 'f32[2,2]{1,0}', space=vmem, size = 0x1000, scoped, tag = 'a bottom-left matrix']
        #allocation21 [shape = 'f32[2,2]{1,0}', space=vmem, size = 0x1000, scoped, tag = 'a bottom-right matrix']
        %s241 = ssub.s32 %s12, 1
        %s242 = sand.u32 %s17, 1
        %s243 = sand.u32 %s17, 1
        %s244 = smul.addr %s243, 2
        %s245 = scalar_lea.vmem [#allocation1], %s244
        %s246 = sand.u32 %s17, 1
        %s247 = sand.u32 %s17, 1
        %s248 = smul.addr %s247, 2
        %s249 = scalar_lea.vmem [#allocation3], %s248
        %s250 = sand.u32 %s17, 1
        %s251 = sand.u32 %s17, 1
        %s252 = smul.addr %s251, 2
        %s253 = scalar_lea.vmem [#allocation5], %s252
        %s254 = sand.u32 %s17, 1
        %s255 = sand.u32 %s17, 1
        %s256 = smul.addr %s255, 2
        %s257 = scalar_lea.vmem [#allocation7], %s256
        %s258 = sand.u32 %s17, 1
        %s259 = sand.u32 %s17, 1
        %s260 = smul.addr %s259, 2
        %s261 = scalar_lea.vmem [#allocation1], %s260
        %s262 = sand.u32 %s17, 1
        %s263 = sand.u32 %s17, 1
        %s264 = smul.addr %s263, 2
        %s265 = scalar_lea.vmem [#allocation3], %s264
        %s266 = sand.u32 %s17, 1
        %s267 = sand.u32 %s17, 1
        %s268 = smul.addr %s267, 2
        %s269 = scalar_lea.vmem [#allocation5], %s268
        %s270 = sand.u32 %s17, 1
        %s271 = sand.u32 %s17, 1
        %s272 = smul.addr %s271, 2
        %s273 = scalar_lea.vmem [#allocation7], %s272
        %p274 = pneg %p40
        %p275 = pneg %p37
        %s276 = sand.u32 %s27, 1
        %s277 = sand.u32 %s27, 1
        %s278 = smul.addr %s277, 8
        %s279 = scalar_lea.vmem [#allocation8], %s278
        %p280 = pneg %p68
        %p281 = pneg %p65
        %s282 = sand.u32 %s55, 1
        %s283 = sand.u32 %s55, 1
        %s284 = smul.addr %s283, 8
        %s285 = scalar_lea.vmem [#allocation9], %s284
        %s286 = sand.u32 %s17, 1
        %s287 = sand.u32 %s17, 1
        %s288 = smul.addr %s287, 2
        %s289 = scalar_lea.vmem [#allocation11], %s288
        %s290 = sand.u32 %s17, 1
        %s291 = sand.u32 %s17, 1
        %s292 = smul.addr %s291, 2
        %s293 = scalar_lea.vmem [#allocation13], %s292
        %s294 = sand.u32 %s17, 1
        %s295 = sand.u32 %s17, 1
        %s296 = smul.addr %s295, 2
        %s297 = scalar_lea.vmem [#allocation15], %s296
        %s298 = sand.u32 %s17, 1
        %s299 = sand.u32 %s17, 1
        %s300 = smul.addr %s299, 2
        %s301 = scalar_lea.vmem [#allocation17], %s300
        %s303 = sshllo.u32 0, 2
        %v304 = vld [vmem:[%s261] sm:%s303]
        %305 = vst [vmem:[#allocation0] sm:%s303] %v304
        %s307 = sshllo.u32 0, 2
        %v308 = vld [vmem:[%s265] sm:%s307]
        %309 = vst [vmem:[#allocation2] sm:%s307] %v308
        %s311 = sshllo.u32 0, 2
        %v312 = vld [vmem:[%s269] sm:%s311]
        %313 = vst [vmem:[#allocation4] sm:%s311] %v312
        %s315 = sshllo.u32 0, 2
        %v316 = vld [vmem:[%s273] sm:%s315]
        %317 = vst [vmem:[#allocation6] sm:%s315] %v316
        %s318 = sshrl.u32 %s17, 3
        %s319 = sshrl.u32 %s17, 3
        %s320 = smov [#allocation18]
        %v321 = vld [vmem:[#allocation0] sm:$0xff]
        %322 = vst [vmem:[%s320] sm:$0xff] %v321
        %s323 = smov [#allocation19]
        %v324 = vld [vmem:[#allocation2] sm:$0xff]
        %325 = vst [vmem:[%s323] sm:$0xff] %v324
        %s326 = smov [#allocation20]
        %v327 = vld [vmem:[#allocation4] sm:$0xff]
        %328 = vst [vmem:[%s326] sm:$0xff] %v327
        %s329 = smov [#allocation21]
        %v330 = vld [vmem:[#allocation6] sm:$0xff]
        %331 = vst [vmem:[%s329] sm:$0xff] %v330
        %332 = vst [vmem:[#allocation10] sm:$0xff] 0.0
        %333 = vst [vmem:[#allocation12] sm:$0xff] 0.0
        %334 = vst [vmem:[#allocation14] sm:$0xff] 0.0
        %335 = vst [vmem:[#allocation16] sm:$0xff] 0.0
        %s336 = smov [#allocation10]
        %v337 = vlaneseq
        %v338 = vand.u32 %v337, 127
        %v339 = vmov %v338
        %v340 = vlaneseq
        %v341 = vshrl.u32 %v340, 7
        %v342 = vmov %v341
        %v343 = vld [vmem:[%s336] sm:$0x3]
        %vm346 = vcmp.eq.s32.totalorder %v342, %v339
        %v347 = vsel %vm346, 1.0, %v343
        %348 = vst [vmem:[%s336] sm:$0x3] %v347
        %s349 = smov [#allocation16]
        %v350 = vlaneseq
        %v351 = vand.u32 %v350, 127
        %v352 = vmov %v351
        %v353 = vlaneseq
        %v354 = vshrl.u32 %v353, 7
        %v355 = vmov %v354
        %v356 = vld [vmem:[%s349] sm:$0x3]
        %vm359 = vcmp.eq.s32.totalorder %v355, %v352
        %v360 = vsel %vm359, 1.0, %v356
        %361 = vst [vmem:[%s349] sm:$0x3] %v360
        // While loop
        $region141: #{custom-call.11} parent=139 // loop_pre_header
          _
        $region142: #{custom-call.11} parent=139 // loop_header
          %s363 = sphi 0, %s905
          %v364 = vlaneseq
          %v365 = vand.u32 %v364, 127
          %v366 = vmov %v365
          %v367 = vlaneseq
          %v368 = vshrl.u32 %v367, 7
          %v369 = vmov %v368
          %s370 = smov [#allocation18]
          %v371 = vlaneseq
          %v372 = vand.u32 %v371, 127
          %vm373 = vcmp.ge.s32.totalorder %v372, 0
          %vm374 = vcmp.lt.s32.totalorder %v372, 2
          %vm375 = vmand %vm373, %vm374
          %v376 = vld [vmem:[%s370] sm:$0x3]
          %v377 = vsel %vm375, %v376, 0.0
          %v378 = vmul.f32 %v377, %v377
          %vm381 = vcmp.eq.s32.totalorder %v369, %v366
          %v382 = vsel %vm381, 0.0, %v378
          %v383 = vlaneseq
          %v384 = vand.u32 %v383, 127
          %v385 = vmov %v384
          %v386 = vlaneseq
          %v387 = vshrl.u32 %v386, 7
          %v388 = vmov %v387
          %s389 = smov [#allocation19]
          %v390 = vlaneseq
          %v391 = vand.u32 %v390, 127
          %vm392 = vcmp.ge.s32.totalorder %v391, 0
          %vm393 = vcmp.lt.s32.totalorder %v391, 2
          %vm394 = vmand %vm392, %vm393
          %v395 = vld [vmem:[%s389] sm:$0x3]
          %v396 = vsel %vm394, %v395, 0.0
          %v397 = vmul.f32 %v396, %v396
          %v398 = vadd.f32 %v382, %v397
          %v399 = vadd.f32 %v378, %v397
          %v400 = vlaneseq
          %v401 = vand.u32 %v400, 127
          %v402 = vmov %v401
          %v403 = vlaneseq
          %v404 = vshrl.u32 %v403, 7
          %v405 = vmov %v404
          %s406 = smov [#allocation20]
          %v407 = vlaneseq
          %v408 = vand.u32 %v407, 127
          %vm409 = vcmp.ge.s32.totalorder %v408, 0
          %vm410 = vcmp.lt.s32.totalorder %v408, 2
          %vm411 = vmand %vm409, %vm410
          %v412 = vld [vmem:[%s406] sm:$0x3]
          %v413 = vsel %vm411, %v412, 0.0
          %v414 = vmul.f32 %v413, %v413
          %v415 = vadd.f32 %v398, %v414
          %v416 = vadd.f32 %v399, %v414
          %v417 = vlaneseq
          %v418 = vand.u32 %v417, 127
          %v419 = vmov %v418
          %v420 = vlaneseq
          %v421 = vshrl.u32 %v420, 7
          %v422 = vmov %v421
          %s423 = smov [#allocation21]
          %v424 = vlaneseq
          %v425 = vand.u32 %v424, 127
          %vm426 = vcmp.ge.s32.totalorder %v425, 0
          %vm427 = vcmp.lt.s32.totalorder %v425, 2
          %vm428 = vmand %vm426, %vm427
          %v429 = vld [vmem:[%s423] sm:$0x3]
          %v430 = vsel %vm428, %v429, 0.0
          %v431 = vmul.f32 %v430, %v430
          %vm434 = vcmp.eq.s32.totalorder %v422, %v419
          %v435 = vsel %vm434, 0.0, %v431
          %v436 = vadd.f32 %v415, %v435
          %v437 = vadd.f32 %v416, %v431
          %438 = vadd.xlane.f32.xlu0 %v437
          %v439 = vpop.xlane.xlu0 %438
          %v440 = vrot.slane %v439, 4
          %v441 = vadd.f32 %v439, %v440
          %v442 = vrot.slane %v441, 2
          %v443 = vadd.f32 %v441, %v442
          %v444 = vrot.slane %v443, 1
          %v445 = vadd.f32 %v443, %v444
          %446 = vadd.xlane.f32.xlu0 %v436
          %v447 = vpop.xlane.xlu0 %446
          %v448 = vrot.slane %v447, 4
          %v449 = vadd.f32 %v447, %v448
          %v450 = vrot.slane %v449, 2
          %v451 = vadd.f32 %v449, %v450
          %v452 = vrot.slane %v451, 1
          %v453 = vadd.f32 %v451, %v452
          %s454 = vtos %v453
          %s455 = vtos %v445
          %s456 = smul.f32 1e-10, %s455
          %p457 = scmp.le.f32.partialorder %s454, %s456
          %p458 = scmp.ge.s32.totalorder %s363, 15
          %p459 = por %p457, %p458
        $region143: #{custom-call.11} parent=139 // loop_header_branch
          %907 = sbr.rel (%p459) target = $region147
        $region144: #{custom-call.11} parent=139 // loop_body
          loop: start=0, step=1, limit=3
          $region148: #{custom-call.11} parent=144 // loop_pre_header
            _
          $region149: #{custom-call.11} parent=144 // loop_header
            %s461 = sphi 0, %s465
            %p462 = scmp.ge.s32.totalorder %s461, 3
          $region150: #{custom-call.11} parent=144 // loop_header_branch
            %464 = sbr.rel (%p462) target = $region154
          $region151: #{custom-call.11} parent=144 // loop_body
            #allocation22 [shape = 'f32[1024]{0}', space=vmem, size = 0x1000, scoped, tag = 'a_tl_diag vmem']
            #allocation23 [shape = 'f32[1024]{0}', space=vmem, size = 0x1000, scoped, tag = 'a_tr_diag vmem']
            #allocation24 [shape = 'f32[1024]{0}', space=vmem, size = 0x1000, scoped, tag = 'a_br_diag vmem']
            #allocation25 [shape = 'f32[1024]{0}', space=vmem, size = 0x1000, scoped, tag = 'rt1 vmem']
            #allocation26 [shape = 'f32[1024]{0}', space=vmem, size = 0x1000, scoped, tag = 'rt2 vmem']
            #allocation27 [shape = 'f32[1024]{0}', space=vmem, size = 0x1000, scoped, tag = 'c vmem']
            #allocation28 [shape = 'f32[1024]{0}', space=vmem, size = 0x1000, scoped, tag = 's vmem']
            #allocation29 [shape = 'f32[4096]{0}', space=vmem, size = 0x4000, scoped, tag = 'c broadcast']
            #allocation30 [shape = 'f32[4096]{0}', space=vmem, size = 0x4000, scoped, tag = 's broadcast']
            %s466 = smov [#allocation18]
            %s467 = smov [#allocation22]
            %v468 = vlaneseq
            %v469 = vand.u32 %v468, 127
            %v470 = vmov %v469
            %v471 = vlaneseq
            %v472 = vshrl.u32 %v471, 7
            %v473 = vmov %v472
            %v474 = vld [vmem:[%s466] sm:$0x3]
            %vm477 = vcmp.eq.s32.totalorder %v473, %v470
            %v478 = vsel %vm477, %v474, 0.0
            %v479 = vrot.slane %v478, 4
            %v480 = vadd.f32 %v478, %v479
            %v481 = vrot.slane %v480, 2
            %v482 = vadd.f32 %v480, %v481
            %v483 = vrot.slane %v482, 1
            %v484 = vadd.f32 %v482, %v483
            %485 = vst [vmem:[%s467] sm:$0x1] %v484
            %s486 = smov [#allocation19]
            %s487 = smov [#allocation23]
            %v488 = vlaneseq
            %v489 = vand.u32 %v488, 127
            %v490 = vmov %v489
            %v491 = vlaneseq
            %v492 = vshrl.u32 %v491, 7
            %v493 = vmov %v492
            %v494 = vld [vmem:[%s486] sm:$0x3]
            %vm497 = vcmp.eq.s32.totalorder %v493, %v490
            %v498 = vsel %vm497, %v494, 0.0
            %v499 = vrot.slane %v498, 4
            %v500 = vadd.f32 %v498, %v499
            %v501 = vrot.slane %v500, 2
            %v502 = vadd.f32 %v500, %v501
            %v503 = vrot.slane %v502, 1
            %v504 = vadd.f32 %v502, %v503
            %505 = vst [vmem:[%s487] sm:$0x1] %v504
            %s506 = smov [#allocation21]
            %s507 = smov [#allocation24]
            %v508 = vlaneseq
            %v509 = vand.u32 %v508, 127
            %v510 = vmov %v509
            %v511 = vlaneseq
            %v512 = vshrl.u32 %v511, 7
            %v513 = vmov %v512
            %v514 = vld [vmem:[%s506] sm:$0x3]
            %vm517 = vcmp.eq.s32.totalorder %v513, %v510
            %v518 = vsel %vm517, %v514, 0.0
            %v519 = vrot.slane %v518, 4
            %v520 = vadd.f32 %v518, %v519
            %v521 = vrot.slane %v520, 2
            %v522 = vadd.f32 %v520, %v521
            %v523 = vrot.slane %v522, 1
            %v524 = vadd.f32 %v522, %v523
            %525 = vst [vmem:[%s507] sm:$0x1] %v524
            %s526 = smov [#allocation27]
            %s527 = smov [#allocation28]
            %s528 = smov [#allocation22]
            %v529 = vld [vmem:[%s528] sm:$0xff]
            %s530 = smov [#allocation23]
            %v531 = vld [vmem:[%s530] sm:$0xff]
            %s532 = smov [#allocation24]
            %v533 = vld [vmem:[%s532] sm:$0xff]
            %v534 = vsub.f32 %v533, %v529
            %v535 = vmul.f32 2.0, %v531
            %v536 = vrcp.pop %v535
            %v537 = vmul.f32 %v534, %v536
            %vm538 = vcmp.ge.f32.partialorder %v537, 0.0
            %v539 = vmul.f32 %v537, %v537
            %v540 = vadd.f32 1.0, %v539
            %v541 = vrsqrt.pop %v540
            %v542 = vmul.f32 %v540, %v541
            %vm543 = vcmp.eq.f32.partialorder %v540, inf
            %v544 = vsel %vm543, %v540, %v542
            %vm545 = vcmp.eq.f32.partialorder %v540, 0.0
            %v546 = vand.u32 %v540, 2147483648
            %v547 = vsel %vm545, %v546, %v544
            %v548 = vxor.u32 %v547, 2147483648
            %v549 = vsel %vm538, %v547, %v548
            %v550 = vadd.f32 %v537, %v549
            %v551 = vrcp.pop %v550
            %v552 = vand.u32 2147483647, %v529
            %v553 = vand.u32 2147483647, %v531
            %v554 = vand.u32 2147483647, %v533
            %v555 = vmin.f32 %v552, %v554
            %v556 = vmul.f32 1.1920929e-08, %v555
            %vm557 = vcmp.le.f32.partialorder %v553, %v556
            %v558 = vsel %vm557, 0.0, %v551
            %v559 = vmul.f32 %v558, %v558
            %v560 = vadd.f32 1.0, %v559
            %v561 = vrsqrt.pop %v560
            %v562 = vmul.f32 %v558, %v561
            %v563 = vmul.f32 %v558, %v531
            %v564 = vsub.f32 %v529, %v563
            %v565 = vmul.f32 %v558, %v531
            %v566 = vadd.f32 %v533, %v565
            %s567 = smov [#allocation25]
            %568 = vst [vmem:[%s567] sm:$0xff] %v564
            %s569 = smov [#allocation26]
            %570 = vst [vmem:[%s569] sm:$0xff] %v566
            %s571 = smov %s526
            %572 = vst [vmem:[%s571] sm:$0xff] %v561
            %s573 = smov %s527
            %574 = vst [vmem:[%s573] sm:$0xff] %v562
            %s575 = smov [#allocation27]
            %v576 = vld [vmem:[%s575] ss:$0 sm:$0xff]
            %v577 = vlaneseq
            %v578 = vand.u32 %v577, 127
            %v579 = vmov %v578
            %v580 = vlaneseq
            %v581 = vshrl.u32 %v580, 7
            %v582 = vmov %v581
            %vm584 = vcmp.eq.s32.totalorder %v582, %v579
            %v585 = vsel %vm584, %v576, 0.0
            %586 = vadd.xlane.f32.xlu0 %v585
            %v587 = vpop.xlane.xlu0 %586
            %s588 = smov [#allocation29]
            %589 = vst [vmem:[%s588] sm:$0xff] %v587
            %s590 = smov [#allocation28]
            %v591 = vld [vmem:[%s590] ss:$0 sm:$0xff]
            %v592 = vlaneseq
            %v593 = vand.u32 %v592, 127
            %v594 = vmov %v593
            %v595 = vlaneseq
            %v596 = vshrl.u32 %v595, 7
            %v597 = vmov %v596
            %vm599 = vcmp.eq.s32.totalorder %v597, %v594
            %v600 = vsel %vm599, %v591, 0.0
            %601 = vadd.xlane.f32.xlu0 %v600
            %v602 = vpop.xlane.xlu0 %601
            %s603 = smov [#allocation30]
            %604 = vst [vmem:[%s603] sm:$0xff] %v602
            %s605 = smov [#allocation29]
            %v606 = vld [vmem:[%s605] sm:$0xff]
            %s607 = smov [#allocation30]
            %v608 = vld [vmem:[%s607] sm:$0xff]
            %s609 = smov [#allocation18]
            %s610 = smov [#allocation19]
            %s611 = smov [#allocation20]
            %s612 = smov [#allocation21]
            %v613 = vld [vmem:[%s609] sm:$0x3]
            %v614 = vld [vmem:[%s610] sm:$0x3]
            %v615 = vld [vmem:[%s611] sm:$0x3]
            %v616 = vld [vmem:[%s612] sm:$0x3]
            %v617 = vmul.f32 %v606, %v613
            %v618 = vmul.f32 %v608, %v615
            %v619 = vsub.f32 %v617, %v618
            %v620 = vmul.f32 %v606, %v614
            %v621 = vmul.f32 %v608, %v616
            %v622 = vsub.f32 %v620, %v621
            %v623 = vmul.f32 %v608, %v613
            %v624 = vmul.f32 %v606, %v615
            %v625 = vadd.f32 %v623, %v624
            %v626 = vmul.f32 %v608, %v614
            %v627 = vmul.f32 %v606, %v616
            %v628 = vadd.f32 %v626, %v627
            %629 = vst [vmem:[%s609] sm:$0x3] %v619
            %630 = vst [vmem:[%s610] sm:$0x3] %v622
            %631 = vst [vmem:[%s611] sm:$0x3] %v625
            %632 = vst [vmem:[%s612] sm:$0x3] %v628
            %s633 = smov [#allocation27]
            %v634 = vld [vmem:[%s633] ss:$0 sm:$0xff]
            %s635 = smov [#allocation28]
            %v636 = vld [vmem:[%s635] ss:$0 sm:$0xff]
            %s637 = smov [#allocation18]
            %s638 = smov [#allocation19]
            %s639 = smov [#allocation20]
            %s640 = smov [#allocation21]
            %v641 = vld [vmem:[%s637] sm:$0x3]
            %v642 = vld [vmem:[%s638] sm:$0x3]
            %v643 = vld [vmem:[%s639] sm:$0x3]
            %v644 = vld [vmem:[%s640] sm:$0x3]
            %v645 = vmul.f32 %v634, %v641
            %v646 = vmul.f32 %v636, %v642
            %v647 = vsub.f32 %v645, %v646
            %v648 = vmul.f32 %v636, %v641
            %v649 = vmul.f32 %v634, %v642
            %v650 = vadd.f32 %v648, %v649
            %v651 = vmul.f32 %v634, %v643
            %v652 = vmul.f32 %v636, %v644
            %v653 = vsub.f32 %v651, %v652
            %v654 = vmul.f32 %v636, %v643
            %v655 = vmul.f32 %v634, %v644
            %v656 = vadd.f32 %v654, %v655
            %657 = vst [vmem:[%s637] sm:$0x3] %v647
            %658 = vst [vmem:[%s638] sm:$0x3] %v650
            %659 = vst [vmem:[%s639] sm:$0x3] %v653
            %660 = vst [vmem:[%s640] sm:$0x3] %v656
            %s661 = smov [#allocation18]
            %s662 = smov [#allocation25]
            %v663 = vlaneseq
            %v664 = vand.u32 %v663, 127
            %v665 = vmov %v664
            %v666 = vlaneseq
            %v667 = vshrl.u32 %v666, 7
            %v668 = vmov %v667
            %v669 = vld [vmem:[%s662] ss:$0 sm:$0xff]
            %v670 = vld [vmem:[%s661] sm:$0x3]
            %vm673 = vcmp.eq.s32.totalorder %v668, %v665
            %v674 = vsel %vm673, %v669, %v670
            %675 = vst [vmem:[%s661] sm:$0x3] %v674
            %s676 = smov [#allocation19]
            %v677 = vlaneseq
            %v678 = vand.u32 %v677, 127
            %v679 = vmov %v678
            %v680 = vlaneseq
            %v681 = vshrl.u32 %v680, 7
            %v682 = vmov %v681
            %v683 = vld [vmem:[%s676] sm:$0x3]
            %vm686 = vcmp.eq.s32.totalorder %v682, %v679
            %v687 = vsel %vm686, 0.0, %v683
            %688 = vst [vmem:[%s676] sm:$0x3] %v687
            %s689 = smov [#allocation20]
            %v690 = vlaneseq
            %v691 = vand.u32 %v690, 127
            %v692 = vmov %v691
            %v693 = vlaneseq
            %v694 = vshrl.u32 %v693, 7
            %v695 = vmov %v694
            %v696 = vld [vmem:[%s689] sm:$0x3]
            %vm699 = vcmp.eq.s32.totalorder %v695, %v692
            %v700 = vsel %vm699, 0.0, %v696
            %701 = vst [vmem:[%s689] sm:$0x3] %v700
            %s702 = smov [#allocation21]
            %s703 = smov [#allocation26]
            %v704 = vlaneseq
            %v705 = vand.u32 %v704, 127
            %v706 = vmov %v705
            %v707 = vlaneseq
            %v708 = vshrl.u32 %v707, 7
            %v709 = vmov %v708
            %v710 = vld [vmem:[%s703] ss:$0 sm:$0xff]
            %v711 = vld [vmem:[%s702] sm:$0x3]
            %vm714 = vcmp.eq.s32.totalorder %v709, %v706
            %v715 = vsel %vm714, %v710, %v711
            %716 = vst [vmem:[%s702] sm:$0x3] %v715
            %s717 = smov [#allocation18]
            %s718 = smov [#allocation19]
            %v719 = vld [vmem:[%s718] sm:$0x3]
            %720 = vrot.lane.b32.xlu0 %v719, 1
            %v721 = vpop.permute.xlu0 %720
            %v722 = vld [vmem:[%s717] sm:$0x3]
            %v723 = vld [vmem:[%s717] sm:$0x3]
            %724 = vrot.lane.b32.xlu0 %v723, 1
            %v725 = vpop.permute.xlu0 %724
            %v726 = vlaneseq
            %v727 = vand.u32 %v726, 127
            %vm728 = vcmp.eq.s32.totalorder %v727, 0
            %v729 = vsel %vm728, %v723, %v725
            %v730 = vlaneseq
            %v731 = vand.u32 %v730, 127
            %vm732 = vcmp.eq.s32.totalorder %v731, 1
            %v733 = vsel %vm732, %v721, %v729
            %v734 = vlaneseq
            %v735 = vand.u32 %v734, 127
            %vm736 = vcmp.ge.s32.totalorder %v735, 0
            %vm737 = vcmp.lt.s32.totalorder %v735, 2
            %vm738 = vmand %vm736, %vm737
            %v739 = vsel %vm738, %v733, 0.0
            %v740 = vld [vmem:[%s718] sm:$0x3]
            %741 = vrot.lane.b32.xlu0 %v740, 127
            %v742 = vpop.permute.xlu0 %741
            %v743 = vlaneseq
            %v744 = vand.u32 %v743, 127
            %vm745 = vcmp.eq.s32.totalorder %v744, 1
            %v746 = vsel %vm745, %v722, %v742
            %747 = vst [vmem:[%s717] sm:$0x3] %v739
            %748 = vst [vmem:[%s718] sm:$0x3] %v746
            %s749 = smov [#allocation20]
            %s750 = smov [#allocation21]
            %v751 = vld [vmem:[%s750] sm:$0x3]
            %752 = vrot.lane.b32.xlu0 %v751, 1
            %v753 = vpop.permute.xlu0 %752
            %v754 = vld [vmem:[%s749] sm:$0x3]
            %v755 = vld [vmem:[%s749] sm:$0x3]
            %756 = vrot.lane.b32.xlu0 %v755, 1
            %v757 = vpop.permute.xlu0 %756
            %v758 = vlaneseq
            %v759 = vand.u32 %v758, 127
            %vm760 = vcmp.eq.s32.totalorder %v759, 0
            %v761 = vsel %vm760, %v755, %v757
            %v762 = vlaneseq
            %v763 = vand.u32 %v762, 127
            %vm764 = vcmp.eq.s32.totalorder %v763, 1
            %v765 = vsel %vm764, %v753, %v761
            %v766 = vlaneseq
            %v767 = vand.u32 %v766, 127
            %vm768 = vcmp.ge.s32.totalorder %v767, 0
            %vm769 = vcmp.lt.s32.totalorder %v767, 2
            %vm770 = vmand %vm768, %vm769
            %v771 = vsel %vm770, %v765, 0.0
            %v772 = vld [vmem:[%s750] sm:$0x3]
            %773 = vrot.lane.b32.xlu0 %v772, 127
            %v774 = vpop.permute.xlu0 %773
            %v775 = vlaneseq
            %v776 = vand.u32 %v775, 127
            %vm777 = vcmp.eq.s32.totalorder %v776, 1
            %v778 = vsel %vm777, %v754, %v774
            %779 = vst [vmem:[%s749] sm:$0x3] %v771
            %780 = vst [vmem:[%s750] sm:$0x3] %v778
            %s781 = smov [#allocation18]
            %s782 = smov [#allocation20]
            %v783 = vld [vmem:[%s781] ss:$0 sm:$0xff]
            %s785 = scalar_lea.vmem %s781, 4294967295
            %v786 = vld [vmem:[%s785] sm:$0x2]
            %v787 = vlaneseq
            %v788 = vshrl.u32 %v787, 7
            %vm789 = vcmp.eq.s32.totalorder %v788, 0
            %v790 = vsel %vm789, %v783, %v786
            %s791 = scalar_lea.vmem %s781, 1
            %v792 = vld [vmem:[%s791] ss:$0 sm:$0xff]
            %793 = vst [vmem:[%s781] sm:$0x3] %v790
            %v794 = vld [vmem:[%s782] ss:$0 sm:$0xff]
            %s795 = scalar_lea.vmem %s781, 1
            %796 = vst [vmem:[%s795] sm:$0x1] %v794
            %s797 = scalar_lea.vmem %s782, 1
            %v798 = vld [vmem:[%s797] sm:$0x1]
            %v799 = vlaneseq
            %v800 = vshrl.u32 %v799, 7
            %vm801 = vcmp.eq.s32.totalorder %v800, 1
            %v802 = vsel %vm801, %v792, %v798
            %v803 = vld [vmem:[%s782] ss:$0 sm:$0xff]
            %804 = vst [vmem:[%s782] sm:$0x3] %v802
            %s805 = smov [#allocation19]
            %s806 = smov [#allocation21]
            %v807 = vld [vmem:[%s805] ss:$0 sm:$0xff]
            %s809 = scalar_lea.vmem %s805, 4294967295
            %v810 = vld [vmem:[%s809] sm:$0x2]
            %v811 = vlaneseq
            %v812 = vshrl.u32 %v811, 7
            %vm813 = vcmp.eq.s32.totalorder %v812, 0
            %v814 = vsel %vm813, %v807, %v810
            %s815 = scalar_lea.vmem %s805, 1
            %v816 = vld [vmem:[%s815] ss:$0 sm:$0xff]
            %817 = vst [vmem:[%s805] sm:$0x3] %v814
            %v818 = vld [vmem:[%s806] ss:$0 sm:$0xff]
            %s819 = scalar_lea.vmem %s805, 1
            %820 = vst [vmem:[%s819] sm:$0x1] %v818
            %s821 = scalar_lea.vmem %s806, 1
            %v822 = vld [vmem:[%s821] sm:$0x1]
            %v823 = vlaneseq
            %v824 = vshrl.u32 %v823, 7
            %vm825 = vcmp.eq.s32.totalorder %v824, 1
            %v826 = vsel %vm825, %v816, %v822
            %v827 = vld [vmem:[%s806] ss:$0 sm:$0xff]
            %828 = vst [vmem:[%s806] sm:$0x3] %v826
            %s829 = smov [#allocation29]
            %v830 = vld [vmem:[%s829] sm:$0xff]
            %s831 = smov [#allocation30]
            %v832 = vld [vmem:[%s831] sm:$0xff]
            %s833 = smov [#allocation10]
            %s834 = smov [#allocation12]
            %s835 = smov [#allocation14]
            %s836 = smov [#allocation16]
            %v837 = vld [vmem:[%s833] sm:$0x3]
            %v838 = vld [vmem:[%s834] sm:$0x3]
            %v839 = vld [vmem:[%s835] sm:$0x3]
            %v840 = vld [vmem:[%s836] sm:$0x3]
            %v841 = vmul.f32 %v830, %v837
            %v842 = vmul.f32 %v832, %v839
            %v843 = vsub.f32 %v841, %v842
            %v844 = vmul.f32 %v830, %v838
            %v845 = vmul.f32 %v832, %v840
            %v846 = vsub.f32 %v844, %v845
            %v847 = vmul.f32 %v832, %v837
            %v848 = vmul.f32 %v830, %v839
            %v849 = vadd.f32 %v847, %v848
            %v850 = vmul.f32 %v832, %v838
            %v851 = vmul.f32 %v830, %v840
            %v852 = vadd.f32 %v850, %v851
            %853 = vst [vmem:[%s833] sm:$0x3] %v843
            %854 = vst [vmem:[%s834] sm:$0x3] %v846
            %855 = vst [vmem:[%s835] sm:$0x3] %v849
            %856 = vst [vmem:[%s836] sm:$0x3] %v852
            %s857 = smov [#allocation10]
            %s858 = smov [#allocation14]
            %v859 = vld [vmem:[%s857] ss:$0 sm:$0xff]
            %s861 = scalar_lea.vmem %s857, 4294967295
            %v862 = vld [vmem:[%s861] sm:$0x2]
            %v863 = vlaneseq
            %v864 = vshrl.u32 %v863, 7
            %vm865 = vcmp.eq.s32.totalorder %v864, 0
            %v866 = vsel %vm865, %v859, %v862
            %s867 = scalar_lea.vmem %s857, 1
            %v868 = vld [vmem:[%s867] ss:$0 sm:$0xff]
            %869 = vst [vmem:[%s857] sm:$0x3] %v866
            %v870 = vld [vmem:[%s858] ss:$0 sm:$0xff]
            %s871 = scalar_lea.vmem %s857, 1
            %872 = vst [vmem:[%s871] sm:$0x1] %v870
            %s873 = scalar_lea.vmem %s858, 1
            %v874 = vld [vmem:[%s873] sm:$0x1]
            %v875 = vlaneseq
            %v876 = vshrl.u32 %v875, 7
            %vm877 = vcmp.eq.s32.totalorder %v876, 1
            %v878 = vsel %vm877, %v868, %v874
            %v879 = vld [vmem:[%s858] ss:$0 sm:$0xff]
            %880 = vst [vmem:[%s858] sm:$0x3] %v878
            %s881 = smov [#allocation12]
            %s882 = smov [#allocation16]
            %v883 = vld [vmem:[%s881] ss:$0 sm:$0xff]
            %s885 = scalar_lea.vmem %s881, 4294967295
            %v886 = vld [vmem:[%s885] sm:$0x2]
            %v887 = vlaneseq
            %v888 = vshrl.u32 %v887, 7
            %vm889 = vcmp.eq.s32.totalorder %v888, 0
            %v890 = vsel %vm889, %v883, %v886
            %s891 = scalar_lea.vmem %s881, 1
            %v892 = vld [vmem:[%s891] ss:$0 sm:$0xff]
            %893 = vst [vmem:[%s881] sm:$0x3] %v890
            %v894 = vld [vmem:[%s882] ss:$0 sm:$0xff]
            %s895 = scalar_lea.vmem %s881, 1
            %896 = vst [vmem:[%s895] sm:$0x1] %v894
            %s897 = scalar_lea.vmem %s882, 1
            %v898 = vld [vmem:[%s897] sm:$0x1]
            %v899 = vlaneseq
            %v900 = vshrl.u32 %v899, 7
            %vm901 = vcmp.eq.s32.totalorder %v900, 1
            %v902 = vsel %vm901, %v892, %v898
            %v903 = vld [vmem:[%s882] ss:$0 sm:$0xff]
            %904 = vst [vmem:[%s882] sm:$0x3] %v902
          $region152: #{custom-call.11} parent=144 // loop_footer
            %s465 = sadd.s32 1, %s461
          $region153: #{custom-call.11} parent=144 // loop_footer_branch
            %460 = sbr.rel target = $region149
          $region154: #{custom-call.11} parent=144 // loop_exit
            _
          %s905 = sadd.s32 %s363, 1
        $region145: #{custom-call.11} parent=139 // loop_footer
          _
        $region146: #{custom-call.11} parent=139 // loop_footer_branch
          %362 = sbr.rel target = $region142
        $region147: #{custom-call.11} parent=139 // loop_exit
          _
        %s908 = sand.u32 %s17, 7
        %s909 = scalar_lea.vmem %s279, %s908 [#allocation8]
        %s910 = sand.u32 %s17, 7
        %s911 = scalar_lea.vmem %s285, %s910 [#allocation9]
        %s912 = smov [#allocation18]
        %s913 = smov %s909
        %v914 = vlaneseq
        %v915 = vand.u32 %v914, 127
        %v916 = vmov %v915
        %v917 = vlaneseq
        %v918 = vshrl.u32 %v917, 7
        %v919 = vmov %v918
        %v920 = vld [vmem:[%s912] sm:$0x3]
        %vm923 = vcmp.eq.s32.totalorder %v919, %v916
        %v924 = vsel %vm923, %v920, 0.0
        %v925 = vrot.slane %v924, 4
        %v926 = vadd.f32 %v924, %v925
        %v927 = vrot.slane %v926, 2
        %v928 = vadd.f32 %v926, %v927
        %v929 = vrot.slane %v928, 1
        %v930 = vadd.f32 %v928, %v929
        %931 = vst [vmem:[%s913] sm:$0x1] %v930
        %s932 = smov [#allocation21]
        %s933 = smov %s911
        %v934 = vlaneseq
        %v935 = vand.u32 %v934, 127
        %v936 = vmov %v935
        %v937 = vlaneseq
        %v938 = vshrl.u32 %v937, 7
        %v939 = vmov %v938
        %v940 = vld [vmem:[%s932] sm:$0x3]
        %vm943 = vcmp.eq.s32.totalorder %v939, %v936
        %v944 = vsel %vm943, %v940, 0.0
        %v945 = vrot.slane %v944, 4
        %v946 = vadd.f32 %v944, %v945
        %v947 = vrot.slane %v946, 2
        %v948 = vadd.f32 %v946, %v947
        %v949 = vrot.slane %v948, 1
        %v950 = vadd.f32 %v948, %v949
        %951 = vst [vmem:[%s933] sm:$0x1] %v950
        %s953 = sshllo.u32 0, 2
        %v955 = vld [vmem:[#allocation10] sm:%s953]
        %s956 = sshllo.u32 0, 2
        %957 = vst [vmem:[%s289] sm:%s956] %v955
        %s959 = sshllo.u32 0, 2
        %v961 = vld [vmem:[#allocation12] sm:%s959]
        %s962 = sshllo.u32 0, 2
        %963 = vst [vmem:[%s293] sm:%s962] %v961
        %s965 = sshllo.u32 0, 2
        %v967 = vld [vmem:[#allocation14] sm:%s965]
        %s968 = sshllo.u32 0, 2
        %969 = vst [vmem:[%s297] sm:%s968] %v967
        %s971 = sshllo.u32 0, 2
        %v973 = vld [vmem:[#allocation16] sm:%s971]
        %s974 = sshllo.u32 0, 2
        %975 = vst [vmem:[%s301] sm:%s974] %v973
        %s976 = sand.u32 %s27, 1
        %s977 = sand.u32 %s27, 1
        %s978 = smul.addr %s977, 8
        %s979 = scalar_lea.vmem [#allocation8], %s978
        %s980 = sand.u32 %s55, 1
        %s981 = sand.u32 %s55, 1
        %s982 = smul.addr %s981, 8
        %s983 = scalar_lea.vmem [#allocation9], %s982
        %s984 = sand.u32 %s17, 1
        %s985 = sand.u32 %s17, 1
        %s986 = smul.addr %s985, 2
        %s987 = scalar_lea.vmem [#allocation11], %s986
        %s988 = sand.u32 %s17, 1
        %s989 = sand.u32 %s17, 1
        %s990 = smul.addr %s989, 2
        %s991 = scalar_lea.vmem [#allocation13], %s990
        %s992 = sand.u32 %s17, 1
        %s993 = sand.u32 %s17, 1
        %s994 = smul.addr %s993, 2
        %s995 = scalar_lea.vmem [#allocation15], %s994
        %s996 = sand.u32 %s17, 1
        %s997 = sand.u32 %s17, 1
        %s998 = smul.addr %s997, 2
        %s999 = scalar_lea.vmem [#allocation17], %s998
        // Predicated region
        $region155: #{custom-call.11} parent=139 // pred_check
          %p1000 = pneg %p37
        $region156: #{custom-call.11} parent=139 // pred_check_branch
          %1002 = sbr.rel (%p1000) target = $region158
        $region157: #{custom-call.11} parent=139 // pred_region
          %s1003 = sshrl.u32 %s17, 3
          %s1004 = smul.addr %s1003, 8
          %s1005 = scalar_lea.vmem %s4, %s1004
          // Predicated region
          $region159: #{custom-call.11} parent=157 // pred_check
            _
          $region160: #{custom-call.11} parent=157 // pred_check_branch
            %1007 = sbr.rel (0) target = $region162
          $region161: #{custom-call.11} parent=157 // pred_region
            // Predicated region
            $region163: #{custom-call.11} parent=161 // pred_check
              _
            $region164: #{custom-call.11} parent=161 // pred_check_branch
              %1009 = sbr.rel (0) target = $region166
            $region165: #{custom-call.11} parent=161 // pred_region
              // Predicated region
              $region178: #{custom-call.11} parent=165 // pred_check
                _
              $region179: #{custom-call.11} parent=165 // pred_check_branch
                %1024 = sbr.rel (0) target = $region181
              $region180: #{custom-call.11} parent=165 // pred_region
                loop: start=0, step=1, limit=1
                $region182: #{custom-call.11} parent=180 // loop_pre_header
                  _
                $region183: #{custom-call.11} parent=180 // loop_header
                  %s1026 = sphi 0, %s1030
                  %p1027 = scmp.ge.s32.totalorder %s1026, 1
                  %s1031 = sphi %s979, %s979
                  %s1032 = sphi %s1005, %s1005
                $region184: #{custom-call.11} parent=180 // loop_header_branch
                  %1029 = sbr.rel (%p1027) target = $region188
                $region185: #{custom-call.11} parent=180 // loop_body
                  %v1033 = vld [vmem:[%s1031] sm:$0xff]
                  %1034 = vst [vmem:[%s1032] sm:$0xff] %v1033
                $region186: #{custom-call.11} parent=180 // loop_footer
                  %s1030 = sadd.s32 1, %s1026
                $region187: #{custom-call.11} parent=180 // loop_footer_branch
                  %1025 = sbr.rel target = $region183
                $region188: #{custom-call.11} parent=180 // loop_exit
                  _
              $region181: #{custom-call.11} parent=165 // pred_fallthru
                _
              // Predicated region
              $region189: #{custom-call.11} parent=165 // pred_check
                _
              $region190: #{custom-call.11} parent=165 // pred_check_branch
                %1036 = sbr.rel target = $region192
              $region191: #{custom-call.11} parent=165 // pred_region
                _
              $region192: #{custom-call.11} parent=165 // pred_fallthru
                _
            $region166: #{custom-call.11} parent=161 // pred_fallthru
              _
            // Predicated region
            $region167: #{custom-call.11} parent=161 // pred_check
              _
            $region168: #{custom-call.11} parent=161 // pred_check_branch
              %1011 = sbr.rel target = $region170
            $region169: #{custom-call.11} parent=161 // pred_region
              loop: start=0, step=1, limit=1
              $region171: #{custom-call.11} parent=169 // loop_pre_header
                _
              $region172: #{custom-call.11} parent=169 // loop_header
                %s1014 = sphi 0, %s1018
                %p1015 = scmp.ge.s32.totalorder %s1014, 1
                %s1019 = sphi %s979, %s979
                %s1020 = sphi %s1005, %s1005
              $region173: #{custom-call.11} parent=169 // loop_header_branch
                %1017 = sbr.rel (%p1015) target = $region177
              $region174: #{custom-call.11} parent=169 // loop_body
                %v1021 = vld [vmem:[%s1019] sm:$0xff]
                %1022 = vst [vmem:[%s1020] sm:$0xff] %v1021
              $region175: #{custom-call.11} parent=169 // loop_footer
                %s1018 = sadd.s32 1, %s1014
              $region176: #{custom-call.11} parent=169 // loop_footer_branch
                %1013 = sbr.rel target = $region172
              $region177: #{custom-call.11} parent=169 // loop_exit
                _
            $region170: #{custom-call.11} parent=161 // pred_fallthru
              _
          $region162: #{custom-call.11} parent=157 // pred_fallthru
            _
          %1037 = vnop
        $region158: #{custom-call.11} parent=139 // pred_fallthru
          _
        // Predicated region
        $region193: #{custom-call.11} parent=139 // pred_check
          %p1038 = pneg %p65
        $region194: #{custom-call.11} parent=139 // pred_check_branch
          %1040 = sbr.rel (%p1038) target = $region196
        $region195: #{custom-call.11} parent=139 // pred_region
          %s1041 = sshrl.u32 %s17, 3
          %s1042 = smul.addr %s1041, 8
          %s1043 = scalar_lea.vmem %s5, %s1042
          // Predicated region
          $region197: #{custom-call.11} parent=195 // pred_check
            _
          $region198: #{custom-call.11} parent=195 // pred_check_branch
            %1045 = sbr.rel (0) target = $region200
          $region199: #{custom-call.11} parent=195 // pred_region
            // Predicated region
            $region201: #{custom-call.11} parent=199 // pred_check
              _
            $region202: #{custom-call.11} parent=199 // pred_check_branch
              %1047 = sbr.rel (0) target = $region204
            $region203: #{custom-call.11} parent=199 // pred_region
              // Predicated region
              $region216: #{custom-call.11} parent=203 // pred_check
                _
              $region217: #{custom-call.11} parent=203 // pred_check_branch
                %1062 = sbr.rel (0) target = $region219
              $region218: #{custom-call.11} parent=203 // pred_region
                loop: start=0, step=1, limit=1
                $region220: #{custom-call.11} parent=218 // loop_pre_header
                  _
                $region221: #{custom-call.11} parent=218 // loop_header
                  %s1064 = sphi 0, %s1068
                  %p1065 = scmp.ge.s32.totalorder %s1064, 1
                  %s1069 = sphi %s983, %s983
                  %s1070 = sphi %s1043, %s1043
                $region222: #{custom-call.11} parent=218 // loop_header_branch
                  %1067 = sbr.rel (%p1065) target = $region226
                $region223: #{custom-call.11} parent=218 // loop_body
                  %v1071 = vld [vmem:[%s1069] sm:$0xff]
                  %1072 = vst [vmem:[%s1070] sm:$0xff] %v1071
                $region224: #{custom-call.11} parent=218 // loop_footer
                  %s1068 = sadd.s32 1, %s1064
                $region225: #{custom-call.11} parent=218 // loop_footer_branch
                  %1063 = sbr.rel target = $region221
                $region226: #{custom-call.11} parent=218 // loop_exit
                  _
              $region219: #{custom-call.11} parent=203 // pred_fallthru
                _
              // Predicated region
              $region227: #{custom-call.11} parent=203 // pred_check
                _
              $region228: #{custom-call.11} parent=203 // pred_check_branch
                %1074 = sbr.rel target = $region230
              $region229: #{custom-call.11} parent=203 // pred_region
                _
              $region230: #{custom-call.11} parent=203 // pred_fallthru
                _
            $region204: #{custom-call.11} parent=199 // pred_fallthru
              _
            // Predicated region
            $region205: #{custom-call.11} parent=199 // pred_check
              _
            $region206: #{custom-call.11} parent=199 // pred_check_branch
              %1049 = sbr.rel target = $region208
            $region207: #{custom-call.11} parent=199 // pred_region
              loop: start=0, step=1, limit=1
              $region209: #{custom-call.11} parent=207 // loop_pre_header
                _
              $region210: #{custom-call.11} parent=207 // loop_header
                %s1052 = sphi 0, %s1056
                %p1053 = scmp.ge.s32.totalorder %s1052, 1
                %s1057 = sphi %s983, %s983
                %s1058 = sphi %s1043, %s1043
              $region211: #{custom-call.11} parent=207 // loop_header_branch
                %1055 = sbr.rel (%p1053) target = $region215
              $region212: #{custom-call.11} parent=207 // loop_body
                %v1059 = vld [vmem:[%s1057] sm:$0xff]
                %1060 = vst [vmem:[%s1058] sm:$0xff] %v1059
              $region213: #{custom-call.11} parent=207 // loop_footer
                %s1056 = sadd.s32 1, %s1052
              $region214: #{custom-call.11} parent=207 // loop_footer_branch
                %1051 = sbr.rel target = $region210
              $region215: #{custom-call.11} parent=207 // loop_exit
                _
            $region208: #{custom-call.11} parent=199 // pred_fallthru
              _
          $region200: #{custom-call.11} parent=195 // pred_fallthru
            _
          %1075 = vnop
        $region196: #{custom-call.11} parent=139 // pred_fallthru
          _
        %s1076 = smul.addr %s17, 2
        %s1077 = scalar_lea.vmem %s6, %s1076
        // Predicated region
        $region231: #{custom-call.11} parent=139 // pred_check
          _
        $region232: #{custom-call.11} parent=139 // pred_check_branch
          %1079 = sbr.rel (0) target = $region234
        $region233: #{custom-call.11} parent=139 // pred_region
          // Predicated region
          $region235: #{custom-call.11} parent=233 // pred_check
            _
          $region236: #{custom-call.11} parent=233 // pred_check_branch
            %1081 = sbr.rel target = $region238
          $region237: #{custom-call.11} parent=233 // pred_region
            // Predicated region
            $region250: #{custom-call.11} parent=237 // pred_check
              _
            $region251: #{custom-call.11} parent=237 // pred_check_branch
              %1096 = sbr.rel (0) target = $region253
            $region252: #{custom-call.11} parent=237 // pred_region
              loop: start=0, step=1, limit=1
              $region254: #{custom-call.11} parent=252 // loop_pre_header
                _
              $region255: #{custom-call.11} parent=252 // loop_header
                %s1099 = sphi 0, %s1103
                %p1100 = scmp.ge.s32.totalorder %s1099, 1
                %s1104 = sphi %s987, %s987
                %s1105 = sphi %s1077, %s1077
              $region256: #{custom-call.11} parent=252 // loop_header_branch
                %1102 = sbr.rel (%p1100) target = $region260
              $region257: #{custom-call.11} parent=252 // loop_body
                %v1106 = vld [vmem:[%s1104] sm:$0x3]
                %1107 = vst [vmem:[%s1105] sm:$0x3] %v1106
              $region258: #{custom-call.11} parent=252 // loop_footer
                %s1103 = sadd.s32 1, %s1099
              $region259: #{custom-call.11} parent=252 // loop_footer_branch
                %1098 = sbr.rel target = $region255
              $region260: #{custom-call.11} parent=252 // loop_exit
                _
            $region253: #{custom-call.11} parent=237 // pred_fallthru
              _
          $region238: #{custom-call.11} parent=233 // pred_fallthru
            _
          // Predicated region
          $region239: #{custom-call.11} parent=233 // pred_check
            _
          $region240: #{custom-call.11} parent=233 // pred_check_branch
            %1083 = sbr.rel (0) target = $region242
          $region241: #{custom-call.11} parent=233 // pred_region
            loop: start=0, step=1, limit=1
            $region243: #{custom-call.11} parent=241 // loop_pre_header
              _
            $region244: #{custom-call.11} parent=241 // loop_header
              %s1086 = sphi 0, %s1090
              %p1087 = scmp.ge.s32.totalorder %s1086, 1
              %s1091 = sphi %s987, %s987
              %s1092 = sphi %s1077, %s1077
            $region245: #{custom-call.11} parent=241 // loop_header_branch
              %1089 = sbr.rel (%p1087) target = $region249
            $region246: #{custom-call.11} parent=241 // loop_body
              %v1093 = vld [vmem:[%s1091] sm:$0x3]
              %1094 = vst [vmem:[%s1092] sm:$0x3] %v1093
            $region247: #{custom-call.11} parent=241 // loop_footer
              %s1090 = sadd.s32 1, %s1086
            $region248: #{custom-call.11} parent=241 // loop_footer_branch
              %1085 = sbr.rel target = $region244
            $region249: #{custom-call.11} parent=241 // loop_exit
              _
          $region242: #{custom-call.11} parent=233 // pred_fallthru
            _
        $region234: #{custom-call.11} parent=139 // pred_fallthru
          _
        %1108 = vnop
        %s1109 = smul.addr %s17, 2
        %s1110 = scalar_lea.vmem %s7, %s1109
        // Predicated region
        $region261: #{custom-call.11} parent=139 // pred_check
          _
        $region262: #{custom-call.11} parent=139 // pred_check_branch
          %1112 = sbr.rel (0) target = $region264
        $region263: #{custom-call.11} parent=139 // pred_region
          // Predicated region
          $region265: #{custom-call.11} parent=263 // pred_check
            _
          $region266: #{custom-call.11} parent=263 // pred_check_branch
            %1114 = sbr.rel target = $region268
          $region267: #{custom-call.11} parent=263 // pred_region
            // Predicated region
            $region280: #{custom-call.11} parent=267 // pred_check
              _
            $region281: #{custom-call.11} parent=267 // pred_check_branch
              %1129 = sbr.rel (0) target = $region283
            $region282: #{custom-call.11} parent=267 // pred_region
              loop: start=0, step=1, limit=1
              $region284: #{custom-call.11} parent=282 // loop_pre_header
                _
              $region285: #{custom-call.11} parent=282 // loop_header
                %s1132 = sphi 0, %s1136
                %p1133 = scmp.ge.s32.totalorder %s1132, 1
                %s1137 = sphi %s991, %s991
                %s1138 = sphi %s1110, %s1110
              $region286: #{custom-call.11} parent=282 // loop_header_branch
                %1135 = sbr.rel (%p1133) target = $region290
              $region287: #{custom-call.11} parent=282 // loop_body
                %v1139 = vld [vmem:[%s1137] sm:$0x3]
                %1140 = vst [vmem:[%s1138] sm:$0x3] %v1139
              $region288: #{custom-call.11} parent=282 // loop_footer
                %s1136 = sadd.s32 1, %s1132
              $region289: #{custom-call.11} parent=282 // loop_footer_branch
                %1131 = sbr.rel target = $region285
              $region290: #{custom-call.11} parent=282 // loop_exit
                _
            $region283: #{custom-call.11} parent=267 // pred_fallthru
              _
          $region268: #{custom-call.11} parent=263 // pred_fallthru
            _
          // Predicated region
          $region269: #{custom-call.11} parent=263 // pred_check
            _
          $region270: #{custom-call.11} parent=263 // pred_check_branch
            %1116 = sbr.rel (0) target = $region272
          $region271: #{custom-call.11} parent=263 // pred_region
            loop: start=0, step=1, limit=1
            $region273: #{custom-call.11} parent=271 // loop_pre_header
              _
            $region274: #{custom-call.11} parent=271 // loop_header
              %s1119 = sphi 0, %s1123
              %p1120 = scmp.ge.s32.totalorder %s1119, 1
              %s1124 = sphi %s991, %s991
              %s1125 = sphi %s1110, %s1110
            $region275: #{custom-call.11} parent=271 // loop_header_branch
              %1122 = sbr.rel (%p1120) target = $region279
            $region276: #{custom-call.11} parent=271 // loop_body
              %v1126 = vld [vmem:[%s1124] sm:$0x3]
              %1127 = vst [vmem:[%s1125] sm:$0x3] %v1126
            $region277: #{custom-call.11} parent=271 // loop_footer
              %s1123 = sadd.s32 1, %s1119
            $region278: #{custom-call.11} parent=271 // loop_footer_branch
              %1118 = sbr.rel target = $region274
            $region279: #{custom-call.11} parent=271 // loop_exit
              _
          $region272: #{custom-call.11} parent=263 // pred_fallthru
            _
        $region264: #{custom-call.11} parent=139 // pred_fallthru
          _
        %1141 = vnop
        %s1142 = smul.addr %s17, 2
        %s1143 = scalar_lea.vmem %s8, %s1142
        // Predicated region
        $region291: #{custom-call.11} parent=139 // pred_check
          _
        $region292: #{custom-call.11} parent=139 // pred_check_branch
          %1145 = sbr.rel (0) target = $region294
        $region293: #{custom-call.11} parent=139 // pred_region
          // Predicated region
          $region295: #{custom-call.11} parent=293 // pred_check
            _
          $region296: #{custom-call.11} parent=293 // pred_check_branch
            %1147 = sbr.rel target = $region298
          $region297: #{custom-call.11} parent=293 // pred_region
            // Predicated region
            $region310: #{custom-call.11} parent=297 // pred_check
              _
            $region311: #{custom-call.11} parent=297 // pred_check_branch
              %1162 = sbr.rel (0) target = $region313
            $region312: #{custom-call.11} parent=297 // pred_region
              loop: start=0, step=1, limit=1
              $region314: #{custom-call.11} parent=312 // loop_pre_header
                _
              $region315: #{custom-call.11} parent=312 // loop_header
                %s1165 = sphi 0, %s1169
                %p1166 = scmp.ge.s32.totalorder %s1165, 1
                %s1170 = sphi %s995, %s995
                %s1171 = sphi %s1143, %s1143
              $region316: #{custom-call.11} parent=312 // loop_header_branch
                %1168 = sbr.rel (%p1166) target = $region320
              $region317: #{custom-call.11} parent=312 // loop_body
                %v1172 = vld [vmem:[%s1170] sm:$0x3]
                %1173 = vst [vmem:[%s1171] sm:$0x3] %v1172
              $region318: #{custom-call.11} parent=312 // loop_footer
                %s1169 = sadd.s32 1, %s1165
              $region319: #{custom-call.11} parent=312 // loop_footer_branch
                %1164 = sbr.rel target = $region315
              $region320: #{custom-call.11} parent=312 // loop_exit
                _
            $region313: #{custom-call.11} parent=297 // pred_fallthru
              _
          $region298: #{custom-call.11} parent=293 // pred_fallthru
            _
          // Predicated region
          $region299: #{custom-call.11} parent=293 // pred_check
            _
          $region300: #{custom-call.11} parent=293 // pred_check_branch
            %1149 = sbr.rel (0) target = $region302
          $region301: #{custom-call.11} parent=293 // pred_region
            loop: start=0, step=1, limit=1
            $region303: #{custom-call.11} parent=301 // loop_pre_header
              _
            $region304: #{custom-call.11} parent=301 // loop_header
              %s1152 = sphi 0, %s1156
              %p1153 = scmp.ge.s32.totalorder %s1152, 1
              %s1157 = sphi %s995, %s995
              %s1158 = sphi %s1143, %s1143
            $region305: #{custom-call.11} parent=301 // loop_header_branch
              %1155 = sbr.rel (%p1153) target = $region309
            $region306: #{custom-call.11} parent=301 // loop_body
              %v1159 = vld [vmem:[%s1157] sm:$0x3]
              %1160 = vst [vmem:[%s1158] sm:$0x3] %v1159
            $region307: #{custom-call.11} parent=301 // loop_footer
              %s1156 = sadd.s32 1, %s1152
            $region308: #{custom-call.11} parent=301 // loop_footer_branch
              %1151 = sbr.rel target = $region304
            $region309: #{custom-call.11} parent=301 // loop_exit
              _
          $region302: #{custom-call.11} parent=293 // pred_fallthru
            _
        $region294: #{custom-call.11} parent=139 // pred_fallthru
          _
        %1174 = vnop
        %s1175 = smul.addr %s17, 2
        %s1176 = scalar_lea.vmem %s9, %s1175
        // Predicated region
        $region321: #{custom-call.11} parent=139 // pred_check
          _
        $region322: #{custom-call.11} parent=139 // pred_check_branch
          %1178 = sbr.rel (0) target = $region324
        $region323: #{custom-call.11} parent=139 // pred_region
          // Predicated region
          $region325: #{custom-call.11} parent=323 // pred_check
            _
          $region326: #{custom-call.11} parent=323 // pred_check_branch
            %1180 = sbr.rel target = $region328
          $region327: #{custom-call.11} parent=323 // pred_region
            // Predicated region
            $region340: #{custom-call.11} parent=327 // pred_check
              _
            $region341: #{custom-call.11} parent=327 // pred_check_branch
              %1195 = sbr.rel (0) target = $region343
            $region342: #{custom-call.11} parent=327 // pred_region
              loop: start=0, step=1, limit=1
              $region344: #{custom-call.11} parent=342 // loop_pre_header
                _
              $region345: #{custom-call.11} parent=342 // loop_header
                %s1198 = sphi 0, %s1202
                %p1199 = scmp.ge.s32.totalorder %s1198, 1
                %s1203 = sphi %s999, %s999
                %s1204 = sphi %s1176, %s1176
              $region346: #{custom-call.11} parent=342 // loop_header_branch
                %1201 = sbr.rel (%p1199) target = $region350
              $region347: #{custom-call.11} parent=342 // loop_body
                %v1205 = vld [vmem:[%s1203] sm:$0x3]
                %1206 = vst [vmem:[%s1204] sm:$0x3] %v1205
              $region348: #{custom-call.11} parent=342 // loop_footer
                %s1202 = sadd.s32 1, %s1198
              $region349: #{custom-call.11} parent=342 // loop_footer_branch
                %1197 = sbr.rel target = $region345
              $region350: #{custom-call.11} parent=342 // loop_exit
                _
            $region343: #{custom-call.11} parent=327 // pred_fallthru
              _
          $region328: #{custom-call.11} parent=323 // pred_fallthru
            _
          // Predicated region
          $region329: #{custom-call.11} parent=323 // pred_check
            _
          $region330: #{custom-call.11} parent=323 // pred_check_branch
            %1182 = sbr.rel (0) target = $region332
          $region331: #{custom-call.11} parent=323 // pred_region
            loop: start=0, step=1, limit=1
            $region333: #{custom-call.11} parent=331 // loop_pre_header
              _
            $region334: #{custom-call.11} parent=331 // loop_header
              %s1185 = sphi 0, %s1189
              %p1186 = scmp.ge.s32.totalorder %s1185, 1
              %s1190 = sphi %s999, %s999
              %s1191 = sphi %s1176, %s1176
            $region335: #{custom-call.11} parent=331 // loop_header_branch
              %1188 = sbr.rel (%p1186) target = $region339
            $region336: #{custom-call.11} parent=331 // loop_body
              %v1192 = vld [vmem:[%s1190] sm:$0x3]
              %1193 = vst [vmem:[%s1191] sm:$0x3] %v1192
            $region337: #{custom-call.11} parent=331 // loop_footer
              %s1189 = sadd.s32 1, %s1185
            $region338: #{custom-call.11} parent=331 // loop_footer_branch
              %1184 = sbr.rel target = $region334
            $region339: #{custom-call.11} parent=331 // loop_exit
              _
          $region332: #{custom-call.11} parent=323 // pred_fallthru
            _
        $region324: #{custom-call.11} parent=139 // pred_fallthru
          _
        %1207 = vnop
      $region140: #{custom-call.11} parent=5 // pred_fallthru
        _
      %p1208 = scmp.le.s32.totalorder 2, %s12
      // Predicated region
      $region351: #{custom-call.11} parent=5 // pred_check
        %p1209 = pneg %p1208
      $region352: #{custom-call.11} parent=5 // pred_check_branch
        %1211 = sbr.rel (%p1209) target = $region354
      $region353: #{custom-call.11} parent=5 // pred_region
        %s1212 = ssub.s32 %s12, 2
        // Predicated region
        $region355: #{custom-call.11} parent=353 // pred_check
          %p1213 = pneg %p43
        $region356: #{custom-call.11} parent=353 // pred_check_branch
          %1215 = sbr.rel (%p1213) target = $region358
        $region357: #{custom-call.11} parent=353 // pred_region
          %s1216 = sand.u32 %s28, 1
          %s1217 = sand.u32 %s28, 1
          %s1218 = smul.addr %s1217, 8
          %s1219 = scalar_lea.vmem [#allocation8], %s1218
        $region358: #{custom-call.11} parent=353 // pred_fallthru
          _
        // Predicated region
        $region359: #{custom-call.11} parent=353 // pred_check
          %p1220 = pneg %p71
        $region360: #{custom-call.11} parent=353 // pred_check_branch
          %1222 = sbr.rel (%p1220) target = $region362
        $region361: #{custom-call.11} parent=353 // pred_region
          %s1223 = sand.u32 %s56, 1
          %s1224 = sand.u32 %s56, 1
          %s1225 = smul.addr %s1224, 8
          %s1226 = scalar_lea.vmem [#allocation9], %s1225
        $region362: #{custom-call.11} parent=353 // pred_fallthru
          _
        %s1227 = sand.u32 %s18, 1
        %s1228 = sand.u32 %s18, 1
        %s1229 = smul.addr %s1228, 2
        %s1230 = scalar_lea.vmem [#allocation11], %s1229
        %s1231 = sand.u32 %s18, 1
        %s1232 = sand.u32 %s18, 1
        %s1233 = smul.addr %s1232, 2
        %s1234 = scalar_lea.vmem [#allocation13], %s1233
        %s1235 = sand.u32 %s18, 1
        %s1236 = sand.u32 %s18, 1
        %s1237 = smul.addr %s1236, 2
        %s1238 = scalar_lea.vmem [#allocation15], %s1237
        %s1239 = sand.u32 %s18, 1
        %s1240 = sand.u32 %s18, 1
        %s1241 = smul.addr %s1240, 2
        %s1242 = scalar_lea.vmem [#allocation17], %s1241
      $region354: #{custom-call.11} parent=5 // pred_fallthru
        _
    $region6: #{custom-call.11} parent=1 // loop_footer
      %s16 = sadd.s32 1, %s12
    $region7: #{custom-call.11} parent=1 // loop_footer_branch
      %11 = sbr.rel target = $region3
    $region8: #{custom-call.11} parent=1 // loop_exit
      _

// kernel: forward.5
$region0: #{forward.5}
  #allocation0 [shape = 'u32[]', space=smem, size = 0x4, offset = 0x4, fixed_abs, tag = 'smem constant byte address 0x4 - core index']
  #allocation1 [shape = 'u32[144,128]{1,0:T(1,128)}', space=vmem, size = 0x12000, scoped, tag = 'internal scratch']
  %s0 = inlined_call_operand.vmem [shape: f32[24,8], index: 0, kind: input, shape index: {}]
  %s1 = inlined_call_operand.vmem [shape: f32[24,24], index: 1, kind: input, shape index: {}]
  %s2 = inlined_call_operand.vmem [shape: f32[24,24], index: 2, kind: input, shape index: {}]
  %s3 = inlined_call_operand.vmem [shape: f32[3,3], index: 3, kind: input, shape index: {}]
  %s4 = inlined_call_operand.vmem [shape: f32[8,8], index: 4, kind: input, shape index: {}]
  %s5 = inlined_call_operand.vmem [shape: f32[24,3], index: 5, kind: input, shape index: {}]
  %s6 = inlined_call_operand.vmem [shape: f32[3,24], index: 6, kind: input, shape index: {}]
  %s7 = inlined_call_operand.vmem [shape: f32[24,24], index: 7, kind: input, shape index: {}]
  %s8 = inlined_call_operand.hbm [shape: f32[24,8], index: 8, kind: output, shape index: {0}]
  %s9 = inlined_call_operand.vmem [shape: f32[1,4], index: 9, kind: output, shape index: {1}]
  %10 = xla_tuple %s8, %s9
  %s11 = sld [smem:[#allocation0]]
  $region50: #{forward.5} parent=0
    _
  %s13 = ssub.s32 1, %s11
  %s14 = scalar_select 0, %s13, %s11
  $region1: #{forward.5} parent=0
    #allocation2 [shape = 'u8[12288]{0}', space=vmem, size = 0x3000, scoped, tag = 'output window, operand 0, single buffered']
    #allocation3 [shape = 's32[1]{0}', space=sflag, size = 0x4, scoped, tag = 'scoped memory for forward.5']
    %15 = vsyncpa [#allocation3], 0
    // Predicated region
    $region2: #{forward.5} parent=1 // pred_check
      _
    $region3: #{forward.5} parent=1 // pred_check_branch
      %17 = sbr.rel (0) target = $region5
    $region4: #{forward.5} parent=1 // pred_region
      _
    $region5: #{forward.5} parent=1 // pred_fallthru
      _
    // Predicated region
    $region6: #{forward.5} parent=1 // pred_check
      _
    $region7: #{forward.5} parent=1 // pred_check_branch
      %19 = sbr.rel (0) target = $region9
    $region8: #{forward.5} parent=1 // pred_region
      _
    $region9: #{forward.5} parent=1 // pred_fallthru
      _
    // Predicated region
    $region10: #{forward.5} parent=1 // pred_check
      _
    $region11: #{forward.5} parent=1 // pred_check_branch
      %21 = sbr.rel (0) target = $region13
    $region12: #{forward.5} parent=1 // pred_region
      _
    $region13: #{forward.5} parent=1 // pred_fallthru
      _
    // Predicated region
    $region14: #{forward.5} parent=1 // pred_check
      _
    $region15: #{forward.5} parent=1 // pred_check_branch
      %23 = sbr.rel (0) target = $region17
    $region16: #{forward.5} parent=1 // pred_region
      _
    $region17: #{forward.5} parent=1 // pred_fallthru
      _
    // Predicated region
    $region18: #{forward.5} parent=1 // pred_check
      _
    $region19: #{forward.5} parent=1 // pred_check_branch
      %25 = sbr.rel (0) target = $region21
    $region20: #{forward.5} parent=1 // pred_region
      _
    $region21: #{forward.5} parent=1 // pred_fallthru
      _
    // Predicated region
    $region22: #{forward.5} parent=1 // pred_check
      _
    $region23: #{forward.5} parent=1 // pred_check_branch
      %27 = sbr.rel (0) target = $region25
    $region24: #{forward.5} parent=1 // pred_region
      _
    $region25: #{forward.5} parent=1 // pred_fallthru
      _
    // Predicated region
    $region26: #{forward.5} parent=1 // pred_check
      _
    $region27: #{forward.5} parent=1 // pred_check_branch
      %29 = sbr.rel (0) target = $region29
    $region28: #{forward.5} parent=1 // pred_region
      _
    $region29: #{forward.5} parent=1 // pred_fallthru
      _
    // Predicated region
    $region30: #{forward.5} parent=1 // pred_check
      _
    $region31: #{forward.5} parent=1 // pred_check_branch
      %31 = sbr.rel (0) target = $region33
    $region32: #{forward.5} parent=1 // pred_region
      _
    $region33: #{forward.5} parent=1 // pred_fallthru
      _
    %v32 = vld [vmem:[%s0] sm:$0xff]
    %v33 = vld [vmem:[%s0 + $0x8] sm:$0xff]
    %v34 = vld [vmem:[%s0 + $0x10] sm:$0xff]
    %v35 = vld [vmem:[%s1] sm:$0xff]
    %v36 = vld [vmem:[%s1 + $0x8] sm:$0xff]
    %v37 = vld [vmem:[%s1 + $0x10] sm:$0xff]
    %v38 = vld [vmem:[%s2] sm:$0xff]
    %v39 = vld [vmem:[%s2 + $0x8] sm:$0xff]
    %v40 = vld [vmem:[%s2 + $0x10] sm:$0xff]
    %vm41 = vcmask 195584
    %v43 = vsel %vm41, %v35, 0
    %v46 = vsel %vm41, %v36, 0
    %v49 = vsel %vm41, %v37, 0
    %51 = vmatprep.subr.mxu0 0.0
    %52 = vmatpush1.msra.mxu0 %v32
    %53 = vmatprep.subr.mxu0 0.0
    %54 = vmatpush1.msra.mxu0 %v33
    %55 = vmatprep.subr.mxu0 0.0
    %56 = vmatpush1.msra.mxu0 %v34
    %57 = vmatprep.subr.mxu0 0.0
    %58 = vmatpush1.msra.mxu0 0.0
    %59 = vmatprep.subr.mxu0 0.0
    %60 = vmatpush1.msra.mxu0 0.0
    %61 = vmatprep.subr.mxu0 0.0
    %62 = vmatpush1.msra.mxu0 0.0
    %63 = vmatprep.subr.mxu0 0.0
    %64 = vmatpush1.msra.mxu0 0.0
    %65 = vmatprep.subr.mxu0 0.0
    %66 = vmatpush1.msra.mxu0 0.0
    %67 = vmatprep.subr.mxu0 0.0
    %68 = vmatpush1.msra.mxu0 0.0
    %69 = vmatprep.subr.mxu0 0.0
    %70 = vmatpush1.msra.mxu0 0.0
    %71 = vmatprep.subr.mxu0 0.0
    %72 = vmatpush1.msra.mxu0 0.0
    %73 = vmatprep.subr.mxu0 0.0
    %74 = vmatpush1.msra.mxu0 0.0
    %75 = vmatprep.subr.mxu0 0.0
    %76 = vmatpush1.msra.mxu0 0.0
    %77 = vmatprep.subr.mxu0 0.0
    %78 = vmatpush1.msra.mxu0 0.0
    %79 = vmatprep.subr.mxu0 0.0
    %80 = vmatpush1.msra.mxu0 0.0
    %81 = vmatprep.subr.mxu0 0.0
    %82 = vmatpush1.msra.mxu0 0.0
    %83 = vmatprep.subr.mxu0 0.0
    %84 = vmatpush1.msra.mxu0 0.0
    %85 = vmatprep.subr.mxu0 0.0
    %86 = vmatpush1.msra.mxu0 0.0
    %87 = vmatprep.subr.mxu0 0.0
    %88 = vmatpush1.msra.mxu0 0.0
    %89 = vmatprep.subr.mxu0 0.0
    %90 = vmatpush1.msra.mxu0 0.0
    %91 = vmatprep.subr.mxu0 0.0
    %92 = vmatpush1.msra.mxu0 0.0
    %93 = vmatprep.subr.mxu0 0.0
    %94 = vmatpush1.msra.mxu0 0.0
    %95 = vmatprep.subr.mxu0 0.0
    %96 = vmatpush1.msra.mxu0 0.0
    %97 = vmatprep.subr.mxu0 0.0
    %98 = vmatpush1.msra.mxu0 0.0
    %99 = vmatprep.subr.mxu0 0.0
    %100 = vmatpush1.msra.mxu0 0.0
    %101 = vmatprep.subr.mxu0 0.0
    %102 = vmatpush1.msra.mxu0 0.0
    %103 = vmatprep.subr.mxu0 0.0
    %104 = vmatpush1.msra.mxu0 0.0
    %105 = vmatprep.subr.mxu0 0.0
    %106 = vmatpush1.msra.mxu0 0.0
    %107 = vmatprep.subr.mxu0 0.0
    %108 = vmatpush1.msra.mxu0 0.0
    %109 = vmatprep.subr.mxu0 0.0
    %110 = vmatpush1.msra.mxu0 0.0
    %111 = vmatprep.subr.mxu0 0.0
    %112 = vmatpush1.msra.mxu0 0.0
    %113 = vmatprep.subr.mxu0 0.0
    %114 = vmatpush1.msra.mxu0 0.0
    %115 = vmatprep.mubr.f32.mxu0 0.0
    %116 = vmatmul.mubr.f32.gmra.mrb[0].mxu0 %v43
    %v117 = vpop.f32.mrb[0].mxu0
    %v118 = vadd.f32 0.0, %v117
    %v119 = vpop.f32.mrb[0].mxu0
    %120 = vmatprep.mubr.f32.mxu0 0.0
    %121 = vmatmul.mubr.f32.gmra.mrb[0].mxu0 %v46
    %v122 = vpop.f32.mrb[0].mxu0
    %v123 = vadd.f32 0.0, %v122
    %v124 = vpop.f32.mrb[0].mxu0
    %125 = vmatprep.mubr.f32.mxu0 0.0
    %126 = vmatmul.mubr.f32.gmra.mrb[0].mxu0 %v49
    %v127 = vpop.f32.mrb[0].mxu0
    %v128 = vadd.f32 0.0, %v127
    %v129 = vpop.f32.mrb[0].mxu0
    %130 = vdwg.mxu0
    %v131 = vmul.f32 %v32, %v118
    %v132 = vmul.f32 %v33, %v123
    %v133 = vmul.f32 %v34, %v128
    %vm134 = vcmask 64512
    %v135 = vsel %vm134, %v131, 0.0
    %v136 = vsel %vm134, %v132, 0.0
    %v137 = vadd.f32 %v135, %v136
    %v138 = vsel %vm134, %v133, 0.0
    %v139 = vadd.f32 %v137, %v138
    %140 = vadd.xlane.f32.xlu0 %v139
    %v141 = vpop.xlane.xlu0 %140
    %v142 = vrot.slane %v141, 4
    %v143 = vadd.f32 %v141, %v142
    %v144 = vrot.slane %v143, 2
    %v145 = vadd.f32 %v143, %v144
    %v146 = vrot.slane %v145, 1
    %v147 = vadd.f32 %v145, %v146
    %s148 = vtos %v147
    %v150 = vsel %vm41, %v38, 0
    %v153 = vsel %vm41, %v39, 0
    %v156 = vsel %vm41, %v40, 0
    %158 = vmatprep.subr.mxu0 0.0
    %159 = vmatpush1.msra.mxu0 %v32
    %160 = vmatprep.subr.mxu0 0.0
    %161 = vmatpush1.msra.mxu0 %v33
    %162 = vmatprep.subr.mxu0 0.0
    %163 = vmatpush1.msra.mxu0 %v34
    %164 = vmatprep.subr.mxu0 0.0
    %165 = vmatpush1.msra.mxu0 0.0
    %166 = vmatprep.subr.mxu0 0.0
    %167 = vmatpush1.msra.mxu0 0.0
    %168 = vmatprep.subr.mxu0 0.0
    %169 = vmatpush1.msra.mxu0 0.0
    %170 = vmatprep.subr.mxu0 0.0
    %171 = vmatpush1.msra.mxu0 0.0
    %172 = vmatprep.subr.mxu0 0.0
    %173 = vmatpush1.msra.mxu0 0.0
    %174 = vmatprep.subr.mxu0 0.0
    %175 = vmatpush1.msra.mxu0 0.0
    %176 = vmatprep.subr.mxu0 0.0
    %177 = vmatpush1.msra.mxu0 0.0
    %178 = vmatprep.subr.mxu0 0.0
    %179 = vmatpush1.msra.mxu0 0.0
    %180 = vmatprep.subr.mxu0 0.0
    %181 = vmatpush1.msra.mxu0 0.0
    %182 = vmatprep.subr.mxu0 0.0
    %183 = vmatpush1.msra.mxu0 0.0
    %184 = vmatprep.subr.mxu0 0.0
    %185 = vmatpush1.msra.mxu0 0.0
    %186 = vmatprep.subr.mxu0 0.0
    %187 = vmatpush1.msra.mxu0 0.0
    %188 = vmatprep.subr.mxu0 0.0
    %189 = vmatpush1.msra.mxu0 0.0
    %190 = vmatprep.subr.mxu0 0.0
    %191 = vmatpush1.msra.mxu0 0.0
    %192 = vmatprep.subr.mxu0 0.0
    %193 = vmatpush1.msra.mxu0 0.0
    %194 = vmatprep.subr.mxu0 0.0
    %195 = vmatpush1.msra.mxu0 0.0
    %196 = vmatprep.subr.mxu0 0.0
    %197 = vmatpush1.msra.mxu0 0.0
    %198 = vmatprep.subr.mxu0 0.0
    %199 = vmatpush1.msra.mxu0 0.0
    %200 = vmatprep.subr.mxu0 0.0
    %201 = vmatpush1.msra.mxu0 0.0
    %202 = vmatprep.subr.mxu0 0.0
    %203 = vmatpush1.msra.mxu0 0.0
    %204 = vmatprep.subr.mxu0 0.0
    %205 = vmatpush1.msra.mxu0 0.0
    %206 = vmatprep.subr.mxu0 0.0
    %207 = vmatpush1.msra.mxu0 0.0
    %208 = vmatprep.subr.mxu0 0.0
    %209 = vmatpush1.msra.mxu0 0.0
    %210 = vmatprep.subr.mxu0 0.0
    %211 = vmatpush1.msra.mxu0 0.0
    %212 = vmatprep.subr.mxu0 0.0
    %213 = vmatpush1.msra.mxu0 0.0
    %214 = vmatprep.subr.mxu0 0.0
    %215 = vmatpush1.msra.mxu0 0.0
    %216 = vmatprep.subr.mxu0 0.0
    %217 = vmatpush1.msra.mxu0 0.0
    %218 = vmatprep.subr.mxu0 0.0
    %219 = vmatpush1.msra.mxu0 0.0
    %220 = vmatprep.subr.mxu0 0.0
    %221 = vmatpush1.msra.mxu0 0.0
    %222 = vmatprep.mubr.f32.mxu0 0.0
    %223 = vmatmul.mubr.f32.gmra.mrb[0].mxu0 %v150
    %v224 = vpop.f32.mrb[0].mxu0
    %v225 = vadd.f32 0.0, %v224
    %v226 = vpop.f32.mrb[0].mxu0
    %227 = vmatprep.mubr.f32.mxu0 0.0
    %228 = vmatmul.mubr.f32.gmra.mrb[0].mxu0 %v153
    %v229 = vpop.f32.mrb[0].mxu0
    %v230 = vadd.f32 0.0, %v229
    %v231 = vpop.f32.mrb[0].mxu0
    %232 = vmatprep.mubr.f32.mxu0 0.0
    %233 = vmatmul.mubr.f32.gmra.mrb[0].mxu0 %v156
    %v234 = vpop.f32.mrb[0].mxu0
    %v235 = vadd.f32 0.0, %v234
    %v236 = vpop.f32.mrb[0].mxu0
    %237 = vdwg.mxu0
    %v238 = vmul.f32 %v32, %v225
    %v239 = vmul.f32 %v33, %v230
    %v240 = vmul.f32 %v34, %v235
    %v241 = vsel %vm134, %v238, 0.0
    %v242 = vsel %vm134, %v239, 0.0
    %v243 = vadd.f32 %v241, %v242
    %v244 = vsel %vm134, %v240, 0.0
    %v245 = vadd.f32 %v243, %v244
    %246 = vadd.xlane.f32.xlu0 %v245
    %v247 = vpop.xlane.xlu0 %246
    %v248 = vrot.slane %v247, 4
    %v249 = vadd.f32 %v247, %v248
    %v250 = vrot.slane %v249, 2
    %v251 = vadd.f32 %v249, %v250
    %v252 = vrot.slane %v251, 1
    %v253 = vadd.f32 %v251, %v252
    %s254 = vtos %v253
    %v255 = vld [vmem:[%s5] sm:$0xff]
    %v256 = vld [vmem:[%s5 + $0x8] sm:$0xff]
    %v257 = vld [vmem:[%s5 + $0x10] sm:$0xff]
    %v258 = vld [vmem:[%s3] sm:$0x7]
    %vm259 = vcmask 23552
    %v261 = vsel %vm259, %v255, 0
    %v264 = vsel %vm259, %v256, 0
    %v267 = vsel %vm259, %v257, 0
    %vm269 = vcmask 1042432
    %v271 = vsel %vm269, %v258, 0
    %273 = vmatprep.subr.mxu0 0.0
    %274 = vmatpush1.msra.mxu0 %v271
    %275 = vmatprep.subr.mxu0 0.0
    %276 = vmatpush1.msra.mxu0 0.0
    %277 = vmatprep.subr.mxu0 0.0
    %278 = vmatpush1.msra.mxu0 0.0
    %279 = vmatprep.subr.mxu0 0.0
    %280 = vmatpush1.msra.mxu0 0.0
    %281 = vmatprep.subr.mxu0 0.0
    %282 = vmatpush1.msra.mxu0 0.0
    %283 = vmatprep.subr.mxu0 0.0
    %284 = vmatpush1.msra.mxu0 0.0
    %285 = vmatprep.subr.mxu0 0.0
    %286 = vmatpush1.msra.mxu0 0.0
    %287 = vmatprep.subr.mxu0 0.0
    %288 = vmatpush1.msra.mxu0 0.0
    %289 = vmatprep.subr.mxu0 0.0
    %290 = vmatpush1.msra.mxu0 0.0
    %291 = vmatprep.subr.mxu0 0.0
    %292 = vmatpush1.msra.mxu0 0.0
    %293 = vmatprep.subr.mxu0 0.0
    %294 = vmatpush1.msra.mxu0 0.0
    %295 = vmatprep.subr.mxu0 0.0
    %296 = vmatpush1.msra.mxu0 0.0
    %297 = vmatprep.subr.mxu0 0.0
    %298 = vmatpush1.msra.mxu0 0.0
    %299 = vmatprep.subr.mxu0 0.0
    %300 = vmatpush1.msra.mxu0 0.0
    %301 = vmatprep.subr.mxu0 0.0
    %302 = vmatpush1.msra.mxu0 0.0
    %303 = vmatprep.subr.mxu0 0.0
    %304 = vmatpush1.msra.mxu0 0.0
    %305 = vmatprep.subr.mxu0 0.0
    %306 = vmatpush1.msra.mxu0 0.0
    %307 = vmatprep.subr.mxu0 0.0
    %308 = vmatpush1.msra.mxu0 0.0
    %309 = vmatprep.subr.mxu0 0.0
    %310 = vmatpush1.msra.mxu0 0.0
    %311 = vmatprep.subr.mxu0 0.0
    %312 = vmatpush1.msra.mxu0 0.0
    %313 = vmatprep.subr.mxu0 0.0
    %314 = vmatpush1.msra.mxu0 0.0
    %315 = vmatprep.subr.mxu0 0.0
    %316 = vmatpush1.msra.mxu0 0.0
    %317 = vmatprep.subr.mxu0 0.0
    %318 = vmatpush1.msra.mxu0 0.0
    %319 = vmatprep.subr.mxu0 0.0
    %320 = vmatpush1.msra.mxu0 0.0
    %321 = vmatprep.subr.mxu0 0.0
    %322 = vmatpush1.msra.mxu0 0.0
    %323 = vmatprep.subr.mxu0 0.0
    %324 = vmatpush1.msra.mxu0 0.0
    %325 = vmatprep.subr.mxu0 0.0
    %326 = vmatpush1.msra.mxu0 0.0
    %327 = vmatprep.subr.mxu0 0.0
    %328 = vmatpush1.msra.mxu0 0.0
    %329 = vmatprep.subr.mxu0 0.0
    %330 = vmatpush1.msra.mxu0 0.0
    %331 = vmatprep.subr.mxu0 0.0
    %332 = vmatpush1.msra.mxu0 0.0
    %333 = vmatprep.subr.mxu0 0.0
    %334 = vmatpush1.msra.mxu0 0.0
    %335 = vmatprep.subr.mxu0 0.0
    %336 = vmatpush1.msra.mxu0 0.0
    %337 = vmatprep.mubr.f32.mxu0 0.0
    %338 = vmatmul.mubr.f32.gmra.mrb[0].mxu0 %v261
    %v339 = vpop.f32.mrb[0].mxu0
    %v340 = vadd.f32 0.0, %v339
    %v341 = vpop.f32.mrb[0].mxu0
    %342 = vmatprep.mubr.f32.mxu0 0.0
    %343 = vmatmul.mubr.f32.gmra.mrb[0].mxu0 %v264
    %v344 = vpop.f32.mrb[0].mxu0
    %v345 = vadd.f32 0.0, %v344
    %v346 = vpop.f32.mrb[0].mxu0
    %347 = vmatprep.mubr.f32.mxu0 0.0
    %348 = vmatmul.mubr.f32.gmra.mrb[0].mxu0 %v267
    %v349 = vpop.f32.mrb[0].mxu0
    %v350 = vadd.f32 0.0, %v349
    %v351 = vpop.f32.mrb[0].mxu0
    %352 = vdwg.mxu0
    %v353 = vld [vmem:[%s6] sm:$0x7]
    %v355 = vsel %vm259, %v340, 0
    %v358 = vsel %vm259, %v345, 0
    %v361 = vsel %vm259, %v350, 0
    %v364 = vsel %vm269, %v353, 0
    %366 = vmatprep.subr.mxu0 0.0
    %367 = vmatpush1.msra.mxu0 %v364
    %368 = vmatprep.subr.mxu0 0.0
    %369 = vmatpush1.msra.mxu0 0.0
    %370 = vmatprep.subr.mxu0 0.0
    %371 = vmatpush1.msra.mxu0 0.0
    %372 = vmatprep.subr.mxu0 0.0
    %373 = vmatpush1.msra.mxu0 0.0
    %374 = vmatprep.subr.mxu0 0.0
    %375 = vmatpush1.msra.mxu0 0.0
    %376 = vmatprep.subr.mxu0 0.0
    %377 = vmatpush1.msra.mxu0 0.0
    %378 = vmatprep.subr.mxu0 0.0
    %379 = vmatpush1.msra.mxu0 0.0
    %380 = vmatprep.subr.mxu0 0.0
    %381 = vmatpush1.msra.mxu0 0.0
    %382 = vmatprep.subr.mxu0 0.0
    %383 = vmatpush1.msra.mxu0 0.0
    %384 = vmatprep.subr.mxu0 0.0
    %385 = vmatpush1.msra.mxu0 0.0
    %386 = vmatprep.subr.mxu0 0.0
    %387 = vmatpush1.msra.mxu0 0.0
    %388 = vmatprep.subr.mxu0 0.0
    %389 = vmatpush1.msra.mxu0 0.0
    %390 = vmatprep.subr.mxu0 0.0
    %391 = vmatpush1.msra.mxu0 0.0
    %392 = vmatprep.subr.mxu0 0.0
    %393 = vmatpush1.msra.mxu0 0.0
    %394 = vmatprep.subr.mxu0 0.0
    %395 = vmatpush1.msra.mxu0 0.0
    %396 = vmatprep.subr.mxu0 0.0
    %397 = vmatpush1.msra.mxu0 0.0
    %398 = vmatprep.subr.mxu0 0.0
    %399 = vmatpush1.msra.mxu0 0.0
    %400 = vmatprep.subr.mxu0 0.0
    %401 = vmatpush1.msra.mxu0 0.0
    %402 = vmatprep.subr.mxu0 0.0
    %403 = vmatpush1.msra.mxu0 0.0
    %404 = vmatprep.subr.mxu0 0.0
    %405 = vmatpush1.msra.mxu0 0.0
    %406 = vmatprep.subr.mxu0 0.0
    %407 = vmatpush1.msra.mxu0 0.0
    %408 = vmatprep.subr.mxu0 0.0
    %409 = vmatpush1.msra.mxu0 0.0
    %410 = vmatprep.subr.mxu0 0.0
    %411 = vmatpush1.msra.mxu0 0.0
    %412 = vmatprep.subr.mxu0 0.0
    %413 = vmatpush1.msra.mxu0 0.0
    %414 = vmatprep.subr.mxu0 0.0
    %415 = vmatpush1.msra.mxu0 0.0
    %416 = vmatprep.subr.mxu0 0.0
    %417 = vmatpush1.msra.mxu0 0.0
    %418 = vmatprep.subr.mxu0 0.0
    %419 = vmatpush1.msra.mxu0 0.0
    %420 = vmatprep.subr.mxu0 0.0
    %421 = vmatpush1.msra.mxu0 0.0
    %422 = vmatprep.subr.mxu0 0.0
    %423 = vmatpush1.msra.mxu0 0.0
    %424 = vmatprep.subr.mxu0 0.0
    %425 = vmatpush1.msra.mxu0 0.0
    %426 = vmatprep.subr.mxu0 0.0
    %427 = vmatpush1.msra.mxu0 0.0
    %428 = vmatprep.subr.mxu0 0.0
    %429 = vmatpush1.msra.mxu0 0.0
    %430 = vmatprep.mubr.f32.mxu0 0.0
    %431 = vmatmul.mubr.f32.gmra.mrb[0].mxu0 %v355
    %v432 = vpop.f32.mrb[0].mxu0
    %v433 = vadd.f32 0.0, %v432
    %v434 = vpop.f32.mrb[0].mxu0
    %435 = vmatprep.mubr.f32.mxu0 0.0
    %436 = vmatmul.mubr.f32.gmra.mrb[0].mxu0 %v358
    %v437 = vpop.f32.mrb[0].mxu0
    %v438 = vadd.f32 0.0, %v437
    %v439 = vpop.f32.mrb[0].mxu0
    %440 = vmatprep.mubr.f32.mxu0 0.0
    %441 = vmatmul.mubr.f32.gmra.mrb[0].mxu0 %v361
    %v442 = vpop.f32.mrb[0].mxu0
    %v443 = vadd.f32 0.0, %v442
    %v444 = vpop.f32.mrb[0].mxu0
    %445 = vdwg.mxu0
    %v446 = vld [vmem:[%s7] sm:$0xff]
    %v447 = vld [vmem:[%s7 + $0x8] sm:$0xff]
    %v448 = vld [vmem:[%s7 + $0x10] sm:$0xff]
    %v449 = vmul.f32 %v433, %v446
    %v450 = vmul.f32 %v438, %v447
    %v451 = vmul.f32 %v443, %v448
    %v453 = vsel %vm41, %v449, 0
    %v456 = vsel %vm41, %v450, 0
    %v459 = vsel %vm41, %v451, 0
    %461 = vmatprep.subr.mxu0 0.0
    %462 = vmatpush1.msra.mxu0 %v32
    %463 = vmatprep.subr.mxu0 0.0
    %464 = vmatpush1.msra.mxu0 %v33
    %465 = vmatprep.subr.mxu0 0.0
    %466 = vmatpush1.msra.mxu0 %v34
    %467 = vmatprep.subr.mxu0 0.0
    %468 = vmatpush1.msra.mxu0 0.0
    %469 = vmatprep.subr.mxu0 0.0
    %470 = vmatpush1.msra.mxu0 0.0
    %471 = vmatprep.subr.mxu0 0.0
    %472 = vmatpush1.msra.mxu0 0.0
    %473 = vmatprep.subr.mxu0 0.0
    %474 = vmatpush1.msra.mxu0 0.0
    %475 = vmatprep.subr.mxu0 0.0
    %476 = vmatpush1.msra.mxu0 0.0
    %477 = vmatprep.subr.mxu0 0.0
    %478 = vmatpush1.msra.mxu0 0.0
    %479 = vmatprep.subr.mxu0 0.0
    %480 = vmatpush1.msra.mxu0 0.0
    %481 = vmatprep.subr.mxu0 0.0
    %482 = vmatpush1.msra.mxu0 0.0
    %483 = vmatprep.subr.mxu0 0.0
    %484 = vmatpush1.msra.mxu0 0.0
    %485 = vmatprep.subr.mxu0 0.0
    %486 = vmatpush1.msra.mxu0 0.0
    %487 = vmatprep.subr.mxu0 0.0
    %488 = vmatpush1.msra.mxu0 0.0
    %489 = vmatprep.subr.mxu0 0.0
    %490 = vmatpush1.msra.mxu0 0.0
    %491 = vmatprep.subr.mxu0 0.0
    %492 = vmatpush1.msra.mxu0 0.0
    %493 = vmatprep.subr.mxu0 0.0
    %494 = vmatpush1.msra.mxu0 0.0
    %495 = vmatprep.subr.mxu0 0.0
    %496 = vmatpush1.msra.mxu0 0.0
    %497 = vmatprep.subr.mxu0 0.0
    %498 = vmatpush1.msra.mxu0 0.0
    %499 = vmatprep.subr.mxu0 0.0
    %500 = vmatpush1.msra.mxu0 0.0
    %501 = vmatprep.subr.mxu0 0.0
    %502 = vmatpush1.msra.mxu0 0.0
    %503 = vmatprep.subr.mxu0 0.0
    %504 = vmatpush1.msra.mxu0 0.0
    %505 = vmatprep.subr.mxu0 0.0
    %506 = vmatpush1.msra.mxu0 0.0
    %507 = vmatprep.subr.mxu0 0.0
    %508 = vmatpush1.msra.mxu0 0.0
    %509 = vmatprep.subr.mxu0 0.0
    %510 = vmatpush1.msra.mxu0 0.0
    %511 = vmatprep.subr.mxu0 0.0
    %512 = vmatpush1.msra.mxu0 0.0
    %513 = vmatprep.subr.mxu0 0.0
    %514 = vmatpush1.msra.mxu0 0.0
    %515 = vmatprep.subr.mxu0 0.0
    %516 = vmatpush1.msra.mxu0 0.0
    %517 = vmatprep.subr.mxu0 0.0
    %518 = vmatpush1.msra.mxu0 0.0
    %519 = vmatprep.subr.mxu0 0.0
    %520 = vmatpush1.msra.mxu0 0.0
    %521 = vmatprep.subr.mxu0 0.0
    %522 = vmatpush1.msra.mxu0 0.0
    %523 = vmatprep.subr.mxu0 0.0
    %524 = vmatpush1.msra.mxu0 0.0
    %525 = vmatprep.mubr.f32.mxu0 0.0
    %526 = vmatmul.mubr.f32.gmra.mrb[0].mxu0 %v453
    %v527 = vpop.f32.mrb[0].mxu0
    %v528 = vadd.f32 0.0, %v527
    %v529 = vpop.f32.mrb[0].mxu0
    %530 = vmatprep.mubr.f32.mxu0 0.0
    %531 = vmatmul.mubr.f32.gmra.mrb[0].mxu0 %v456
    %v532 = vpop.f32.mrb[0].mxu0
    %v533 = vadd.f32 0.0, %v532
    %v534 = vpop.f32.mrb[0].mxu0
    %535 = vmatprep.mubr.f32.mxu0 0.0
    %536 = vmatmul.mubr.f32.gmra.mrb[0].mxu0 %v459
    %v537 = vpop.f32.mrb[0].mxu0
    %v538 = vadd.f32 0.0, %v537
    %v539 = vpop.f32.mrb[0].mxu0
    %540 = vdwg.mxu0
    %v541 = vld [vmem:[%s4] sm:$0xff]
    %v543 = vsel %vm134, %v528, 0
    %v546 = vsel %vm134, %v533, 0
    %v549 = vsel %vm134, %v538, 0
    %551 = vmatprep.subr.mxu0 0.0
    %552 = vmatpush1.msra.mxu0 %v541
    %553 = vmatprep.subr.mxu0 0.0
    %554 = vmatpush1.msra.mxu0 0.0
    %555 = vmatprep.subr.mxu0 0.0
    %556 = vmatpush1.msra.mxu0 0.0
    %557 = vmatprep.subr.mxu0 0.0
    %558 = vmatpush1.msra.mxu0 0.0
    %559 = vmatprep.subr.mxu0 0.0
    %560 = vmatpush1.msra.mxu0 0.0
    %561 = vmatprep.subr.mxu0 0.0
    %562 = vmatpush1.msra.mxu0 0.0
    %563 = vmatprep.subr.mxu0 0.0
    %564 = vmatpush1.msra.mxu0 0.0
    %565 = vmatprep.subr.mxu0 0.0
    %566 = vmatpush1.msra.mxu0 0.0
    %567 = vmatprep.subr.mxu0 0.0
    %568 = vmatpush1.msra.mxu0 0.0
    %569 = vmatprep.subr.mxu0 0.0
    %570 = vmatpush1.msra.mxu0 0.0
    %571 = vmatprep.subr.mxu0 0.0
    %572 = vmatpush1.msra.mxu0 0.0
    %573 = vmatprep.subr.mxu0 0.0
    %574 = vmatpush1.msra.mxu0 0.0
    %575 = vmatprep.subr.mxu0 0.0
    %576 = vmatpush1.msra.mxu0 0.0
    %577 = vmatprep.subr.mxu0 0.0
    %578 = vmatpush1.msra.mxu0 0.0
    %579 = vmatprep.subr.mxu0 0.0
    %580 = vmatpush1.msra.mxu0 0.0
    %581 = vmatprep.subr.mxu0 0.0
    %582 = vmatpush1.msra.mxu0 0.0
    %583 = vmatprep.subr.mxu0 0.0
    %584 = vmatpush1.msra.mxu0 0.0
    %585 = vmatprep.subr.mxu0 0.0
    %586 = vmatpush1.msra.mxu0 0.0
    %587 = vmatprep.subr.mxu0 0.0
    %588 = vmatpush1.msra.mxu0 0.0
    %589 = vmatprep.subr.mxu0 0.0
    %590 = vmatpush1.msra.mxu0 0.0
    %591 = vmatprep.subr.mxu0 0.0
    %592 = vmatpush1.msra.mxu0 0.0
    %593 = vmatprep.subr.mxu0 0.0
    %594 = vmatpush1.msra.mxu0 0.0
    %595 = vmatprep.subr.mxu0 0.0
    %596 = vmatpush1.msra.mxu0 0.0
    %597 = vmatprep.subr.mxu0 0.0
    %598 = vmatpush1.msra.mxu0 0.0
    %599 = vmatprep.subr.mxu0 0.0
    %600 = vmatpush1.msra.mxu0 0.0
    %601 = vmatprep.subr.mxu0 0.0
    %602 = vmatpush1.msra.mxu0 0.0
    %603 = vmatprep.subr.mxu0 0.0
    %604 = vmatpush1.msra.mxu0 0.0
    %605 = vmatprep.subr.mxu0 0.0
    %606 = vmatpush1.msra.mxu0 0.0
    %607 = vmatprep.subr.mxu0 0.0
    %608 = vmatpush1.msra.mxu0 0.0
    %609 = vmatprep.subr.mxu0 0.0
    %610 = vmatpush1.msra.mxu0 0.0
    %611 = vmatprep.subr.mxu0 0.0
    %612 = vmatpush1.msra.mxu0 0.0
    %613 = vmatprep.subr.mxu0 0.0
    %614 = vmatpush1.msra.mxu0 0.0
    %615 = vmatprep.mubr.f32.mxu0 0.0
    %616 = vmatmul.mubr.f32.gmra.mrb[0].mxu0 %v543
    %v617 = vpop.f32.mrb[0].mxu0
    %v618 = vadd.f32 0.0, %v617
    %v619 = vpop.f32.mrb[0].mxu0
    %620 = vmatprep.mubr.f32.mxu0 0.0
    %621 = vmatmul.mubr.f32.gmra.mrb[0].mxu0 %v546
    %v622 = vpop.f32.mrb[0].mxu0
    %v623 = vadd.f32 0.0, %v622
    %v624 = vpop.f32.mrb[0].mxu0
    %625 = vmatprep.mubr.f32.mxu0 0.0
    %626 = vmatmul.mubr.f32.gmra.mrb[0].mxu0 %v549
    %v627 = vpop.f32.mrb[0].mxu0
    %v628 = vadd.f32 0.0, %v627
    %v629 = vpop.f32.mrb[0].mxu0
    %630 = vdwg.mxu0
    %631 = vmatprep.subr.mxu0 0.0
    %632 = vmatpush1.msra.mxu0 %v618
    %633 = vmatprep.subr.mxu0 0.0
    %634 = vmatpush1.msra.mxu0 %v623
    %635 = vmatprep.subr.mxu0 0.0
    %636 = vmatpush1.msra.mxu0 %v628
    %637 = vmatprep.subr.mxu0 0.0
    %638 = vmatpush1.msra.mxu0 0.0
    %639 = vmatprep.subr.mxu0 0.0
    %640 = vmatpush1.msra.mxu0 0.0
    %641 = vmatprep.subr.mxu0 0.0
    %642 = vmatpush1.msra.mxu0 0.0
    %643 = vmatprep.subr.mxu0 0.0
    %644 = vmatpush1.msra.mxu0 0.0
    %645 = vmatprep.subr.mxu0 0.0
    %646 = vmatpush1.msra.mxu0 0.0
    %647 = vmatprep.subr.mxu0 0.0
    %648 = vmatpush1.msra.mxu0 0.0
    %649 = vmatprep.subr.mxu0 0.0
    %650 = vmatpush1.msra.mxu0 0.0
    %651 = vmatprep.subr.mxu0 0.0
    %652 = vmatpush1.msra.mxu0 0.0
    %653 = vmatprep.subr.mxu0 0.0
    %654 = vmatpush1.msra.mxu0 0.0
    %655 = vmatprep.subr.mxu0 0.0
    %656 = vmatpush1.msra.mxu0 0.0
    %657 = vmatprep.subr.mxu0 0.0
    %658 = vmatpush1.msra.mxu0 0.0
    %659 = vmatprep.subr.mxu0 0.0
    %660 = vmatpush1.msra.mxu0 0.0
    %661 = vmatprep.subr.mxu0 0.0
    %662 = vmatpush1.msra.mxu0 0.0
    %663 = vmatprep.subr.mxu0 0.0
    %664 = vmatpush1.msra.mxu0 0.0
    %665 = vmatprep.subr.mxu0 0.0
    %666 = vmatpush1.msra.mxu0 0.0
    %667 = vmatprep.subr.mxu0 0.0
    %668 = vmatpush1.msra.mxu0 0.0
    %669 = vmatprep.subr.mxu0 0.0
    %670 = vmatpush1.msra.mxu0 0.0
    %671 = vmatprep.subr.mxu0 0.0
    %672 = vmatpush1.msra.mxu0 0.0
    %673 = vmatprep.subr.mxu0 0.0
    %674 = vmatpush1.msra.mxu0 0.0
    %675 = vmatprep.subr.mxu0 0.0
    %676 = vmatpush1.msra.mxu0 0.0
    %677 = vmatprep.subr.mxu0 0.0
    %678 = vmatpush1.msra.mxu0 0.0
    %679 = vmatprep.subr.mxu0 0.0
    %680 = vmatpush1.msra.mxu0 0.0
    %681 = vmatprep.subr.mxu0 0.0
    %682 = vmatpush1.msra.mxu0 0.0
    %683 = vmatprep.subr.mxu0 0.0
    %684 = vmatpush1.msra.mxu0 0.0
    %685 = vmatprep.subr.mxu0 0.0
    %686 = vmatpush1.msra.mxu0 0.0
    %687 = vmatprep.subr.mxu0 0.0
    %688 = vmatpush1.msra.mxu0 0.0
    %689 = vmatprep.subr.mxu0 0.0
    %690 = vmatpush1.msra.mxu0 0.0
    %691 = vmatprep.subr.mxu0 0.0
    %692 = vmatpush1.msra.mxu0 0.0
    %693 = vmatprep.subr.mxu0 0.0
    %694 = vmatpush1.msra.mxu0 0.0
    %695 = vmatprep.mubr.f32.mxu0 0.0
    %696 = vmatmul.mubr.f32.gmra.mrb[0].mxu0 %v43
    %v697 = vpop.f32.mrb[0].mxu0
    %v698 = vadd.f32 0.0, %v697
    %v699 = vpop.f32.mrb[0].mxu0
    %700 = vmatprep.mubr.f32.mxu0 0.0
    %701 = vmatmul.mubr.f32.gmra.mrb[0].mxu0 %v46
    %v702 = vpop.f32.mrb[0].mxu0
    %v703 = vadd.f32 0.0, %v702
    %v704 = vpop.f32.mrb[0].mxu0
    %705 = vmatprep.mubr.f32.mxu0 0.0
    %706 = vmatmul.mubr.f32.gmra.mrb[0].mxu0 %v49
    %v707 = vpop.f32.mrb[0].mxu0
    %v708 = vadd.f32 0.0, %v707
    %v709 = vpop.f32.mrb[0].mxu0
    %710 = vdwg.mxu0
    %vm711 = vcmp.gt.f32.partialorder %v698, 0.0
    %vm712 = vcmp.gt.f32.partialorder %v703, 0.0
    %vm713 = vcmp.gt.f32.partialorder %v708, 0.0
    %v714 = vmul.f32 %v698, 1.442695
    %v715 = vpow.pop %v714
    %v716 = vmul.f32 %v703, 1.442695
    %v717 = vpow.pop %v716
    %v718 = vmul.f32 %v708, 1.442695
    %v719 = vpow.pop %v718
    %v720 = vsub.f32 %v715, 1.0
    %v721 = vsub.f32 %v717, 1.0
    %v722 = vsub.f32 %v719, 1.0
    %v723 = vsel %vm711, %v698, %v720
    %v724 = vsel %vm712, %v703, %v721
    %v725 = vsel %vm713, %v708, %v722
    %726 = vmatprep.subr.mxu0 0.0
    %727 = vmatpush1.msra.mxu0 %v723
    %728 = vmatprep.subr.mxu0 0.0
    %729 = vmatpush1.msra.mxu0 %v724
    %730 = vmatprep.subr.mxu0 0.0
    %731 = vmatpush1.msra.mxu0 %v725
    %732 = vmatprep.subr.mxu0 0.0
    %733 = vmatpush1.msra.mxu0 0.0
    %734 = vmatprep.subr.mxu0 0.0
    %735 = vmatpush1.msra.mxu0 0.0
    %736 = vmatprep.subr.mxu0 0.0
    %737 = vmatpush1.msra.mxu0 0.0
    %738 = vmatprep.subr.mxu0 0.0
    %739 = vmatpush1.msra.mxu0 0.0
    %740 = vmatprep.subr.mxu0 0.0
    %741 = vmatpush1.msra.mxu0 0.0
    %742 = vmatprep.subr.mxu0 0.0
    %743 = vmatpush1.msra.mxu0 0.0
    %744 = vmatprep.subr.mxu0 0.0
    %745 = vmatpush1.msra.mxu0 0.0
    %746 = vmatprep.subr.mxu0 0.0
    %747 = vmatpush1.msra.mxu0 0.0
    %748 = vmatprep.subr.mxu0 0.0
    %749 = vmatpush1.msra.mxu0 0.0
    %750 = vmatprep.subr.mxu0 0.0
    %751 = vmatpush1.msra.mxu0 0.0
    %752 = vmatprep.subr.mxu0 0.0
    %753 = vmatpush1.msra.mxu0 0.0
    %754 = vmatprep.subr.mxu0 0.0
    %755 = vmatpush1.msra.mxu0 0.0
    %756 = vmatprep.subr.mxu0 0.0
    %757 = vmatpush1.msra.mxu0 0.0
    %758 = vmatprep.subr.mxu0 0.0
    %759 = vmatpush1.msra.mxu0 0.0
    %760 = vmatprep.subr.mxu0 0.0
    %761 = vmatpush1.msra.mxu0 0.0
    %762 = vmatprep.subr.mxu0 0.0
    %763 = vmatpush1.msra.mxu0 0.0
    %764 = vmatprep.subr.mxu0 0.0
    %765 = vmatpush1.msra.mxu0 0.0
    %766 = vmatprep.subr.mxu0 0.0
    %767 = vmatpush1.msra.mxu0 0.0
    %768 = vmatprep.subr.mxu0 0.0
    %769 = vmatpush1.msra.mxu0 0.0
    %770 = vmatprep.subr.mxu0 0.0
    %771 = vmatpush1.msra.mxu0 0.0
    %772 = vmatprep.subr.mxu0 0.0
    %773 = vmatpush1.msra.mxu0 0.0
    %774 = vmatprep.subr.mxu0 0.0
    %775 = vmatpush1.msra.mxu0 0.0
    %776 = vmatprep.subr.mxu0 0.0
    %777 = vmatpush1.msra.mxu0 0.0
    %778 = vmatprep.subr.mxu0 0.0
    %779 = vmatpush1.msra.mxu0 0.0
    %780 = vmatprep.subr.mxu0 0.0
    %781 = vmatpush1.msra.mxu0 0.0
    %782 = vmatprep.subr.mxu0 0.0
    %783 = vmatpush1.msra.mxu0 0.0
    %784 = vmatprep.subr.mxu0 0.0
    %785 = vmatpush1.msra.mxu0 0.0
    %786 = vmatprep.subr.mxu0 0.0
    %787 = vmatpush1.msra.mxu0 0.0
    %788 = vmatprep.subr.mxu0 0.0
    %789 = vmatpush1.msra.mxu0 0.0
    %790 = vmatprep.mubr.f32.mxu0 0.0
    %791 = vmatmul.mubr.f32.gmra.mrb[0].mxu0 %v43
    %v792 = vpop.f32.mrb[0].mxu0
    %v793 = vadd.f32 0.0, %v792
    %v794 = vpop.f32.mrb[0].mxu0
    %795 = vmatprep.mubr.f32.mxu0 0.0
    %796 = vmatmul.mubr.f32.gmra.mrb[0].mxu0 %v46
    %v797 = vpop.f32.mrb[0].mxu0
    %v798 = vadd.f32 0.0, %v797
    %v799 = vpop.f32.mrb[0].mxu0
    %800 = vmatprep.mubr.f32.mxu0 0.0
    %801 = vmatmul.mubr.f32.gmra.mrb[0].mxu0 %v49
    %v802 = vpop.f32.mrb[0].mxu0
    %v803 = vadd.f32 0.0, %v802
    %v804 = vpop.f32.mrb[0].mxu0
    %805 = vdwg.mxu0
    %v806 = vmul.f32 %v723, %v793
    %v807 = vmul.f32 %v724, %v798
    %v808 = vmul.f32 %v725, %v803
    %v809 = vsel %vm134, %v806, 0.0
    %v810 = vsel %vm134, %v807, 0.0
    %v811 = vadd.f32 %v809, %v810
    %v812 = vsel %vm134, %v808, 0.0
    %v813 = vadd.f32 %v811, %v812
    %814 = vadd.xlane.f32.xlu0 %v813
    %v815 = vpop.xlane.xlu0 %814
    %v816 = vrot.slane %v815, 4
    %v817 = vadd.f32 %v815, %v816
    %v818 = vrot.slane %v817, 2
    %v819 = vadd.f32 %v817, %v818
    %v820 = vrot.slane %v819, 1
    %v821 = vadd.f32 %v819, %v820
    %s822 = vtos %v821
    %823 = vmatprep.subr.mxu0 0.0
    %824 = vmatpush1.msra.mxu0 %v723
    %825 = vmatprep.subr.mxu0 0.0
    %826 = vmatpush1.msra.mxu0 %v724
    %827 = vmatprep.subr.mxu0 0.0
    %828 = vmatpush1.msra.mxu0 %v725
    %829 = vmatprep.subr.mxu0 0.0
    %830 = vmatpush1.msra.mxu0 0.0
    %831 = vmatprep.subr.mxu0 0.0
    %832 = vmatpush1.msra.mxu0 0.0
    %833 = vmatprep.subr.mxu0 0.0
    %834 = vmatpush1.msra.mxu0 0.0
    %835 = vmatprep.subr.mxu0 0.0
    %836 = vmatpush1.msra.mxu0 0.0
    %837 = vmatprep.subr.mxu0 0.0
    %838 = vmatpush1.msra.mxu0 0.0
    %839 = vmatprep.subr.mxu0 0.0
    %840 = vmatpush1.msra.mxu0 0.0
    %841 = vmatprep.subr.mxu0 0.0
    %842 = vmatpush1.msra.mxu0 0.0
    %843 = vmatprep.subr.mxu0 0.0
    %844 = vmatpush1.msra.mxu0 0.0
    %845 = vmatprep.subr.mxu0 0.0
    %846 = vmatpush1.msra.mxu0 0.0
    %847 = vmatprep.subr.mxu0 0.0
    %848 = vmatpush1.msra.mxu0 0.0
    %849 = vmatprep.subr.mxu0 0.0
    %850 = vmatpush1.msra.mxu0 0.0
    %851 = vmatprep.subr.mxu0 0.0
    %852 = vmatpush1.msra.mxu0 0.0
    %853 = vmatprep.subr.mxu0 0.0
    %854 = vmatpush1.msra.mxu0 0.0
    %855 = vmatprep.subr.mxu0 0.0
    %856 = vmatpush1.msra.mxu0 0.0
    %857 = vmatprep.subr.mxu0 0.0
    %858 = vmatpush1.msra.mxu0 0.0
    %859 = vmatprep.subr.mxu0 0.0
    %860 = vmatpush1.msra.mxu0 0.0
    %861 = vmatprep.subr.mxu0 0.0
    %862 = vmatpush1.msra.mxu0 0.0
    %863 = vmatprep.subr.mxu0 0.0
    %864 = vmatpush1.msra.mxu0 0.0
    %865 = vmatprep.subr.mxu0 0.0
    %866 = vmatpush1.msra.mxu0 0.0
    %867 = vmatprep.subr.mxu0 0.0
    %868 = vmatpush1.msra.mxu0 0.0
    %869 = vmatprep.subr.mxu0 0.0
    %870 = vmatpush1.msra.mxu0 0.0
    %871 = vmatprep.subr.mxu0 0.0
    %872 = vmatpush1.msra.mxu0 0.0
    %873 = vmatprep.subr.mxu0 0.0
    %874 = vmatpush1.msra.mxu0 0.0
    %875 = vmatprep.subr.mxu0 0.0
    %876 = vmatpush1.msra.mxu0 0.0
    %877 = vmatprep.subr.mxu0 0.0
    %878 = vmatpush1.msra.mxu0 0.0
    %879 = vmatprep.subr.mxu0 0.0
    %880 = vmatpush1.msra.mxu0 0.0
    %881 = vmatprep.subr.mxu0 0.0
    %882 = vmatpush1.msra.mxu0 0.0
    %883 = vmatprep.subr.mxu0 0.0
    %884 = vmatpush1.msra.mxu0 0.0
    %885 = vmatprep.subr.mxu0 0.0
    %886 = vmatpush1.msra.mxu0 0.0
    %887 = vmatprep.mubr.f32.mxu0 0.0
    %888 = vmatmul.mubr.f32.gmra.mrb[0].mxu0 %v150
    %v889 = vpop.f32.mrb[0].mxu0
    %v890 = vadd.f32 0.0, %v889
    %v891 = vpop.f32.mrb[0].mxu0
    %892 = vmatprep.mubr.f32.mxu0 0.0
    %893 = vmatmul.mubr.f32.gmra.mrb[0].mxu0 %v153
    %v894 = vpop.f32.mrb[0].mxu0
    %v895 = vadd.f32 0.0, %v894
    %v896 = vpop.f32.mrb[0].mxu0
    %897 = vmatprep.mubr.f32.mxu0 0.0
    %898 = vmatmul.mubr.f32.gmra.mrb[0].mxu0 %v156
    %v899 = vpop.f32.mrb[0].mxu0
    %v900 = vadd.f32 0.0, %v899
    %v901 = vpop.f32.mrb[0].mxu0
    %902 = vdwg.mxu0
    %v903 = vmul.f32 %v723, %v890
    %v904 = vmul.f32 %v724, %v895
    %v905 = vmul.f32 %v725, %v900
    %v906 = vsel %vm134, %v903, 0.0
    %v907 = vsel %vm134, %v904, 0.0
    %v908 = vadd.f32 %v906, %v907
    %v909 = vsel %vm134, %v905, 0.0
    %v910 = vadd.f32 %v908, %v909
    %911 = vadd.xlane.f32.xlu0 %v910
    %v912 = vpop.xlane.xlu0 %911
    %v913 = vrot.slane %v912, 4
    %v914 = vadd.f32 %v912, %v913
    %v915 = vrot.slane %v914, 2
    %v916 = vadd.f32 %v914, %v915
    %v917 = vrot.slane %v916, 1
    %v918 = vadd.f32 %v916, %v917
    %s919 = vtos %v918
    %920 = vst.msk [vmem:[#allocation2] sm:$0xff] %vm134, %v723
    %921 = vst.msk [vmem:[#allocation2 + $0x8] sm:$0xff] %vm134, %v724
    %922 = vst.msk [vmem:[#allocation2 + $0x10] sm:$0xff] %vm134, %v725
    %v923 = vlaneseq
    %v924 = vand.u32 %v923, 127
    %vm925 = vcmp.eq.s32.totalorder %v924, 0
    %v926 = vstv %s148
    %v927 = vsel %vm925, %v926, 0.0
    %vm928 = vcmp.eq.s32.totalorder %v924, 1
    %v929 = vstv %s822
    %v930 = vsel %vm928, %v929, 0.0
    %v931 = vadd.f32 %v927, %v930
    %vm932 = vcmp.eq.s32.totalorder %v924, 2
    %v933 = vstv %s254
    %v934 = vsel %vm932, %v933, 0.0
    %v935 = vadd.f32 %v931, %v934
    %vm936 = vcmp.eq.s32.totalorder %v924, 3
    %v937 = vstv %s919
    %v938 = vsel %vm936, %v937, 0.0
    %v939 = vadd.f32 %v935, %v938
    %vm940 = vcmask 24576
    %941 = vst.msk [vmem:[%s9] sm:$0x1] %vm940, %v939
    // Predicated region
    $region34: #{forward.5} parent=1 // pred_check
      _
    $region35: #{forward.5} parent=1 // pred_check_branch
      %943 = sbr.rel (0) target = $region37
    $region36: #{forward.5} parent=1 // pred_region
      %s945 = ssub.s32 384, 384
      %946 = vsyncadd [#allocation3], %s945
      %s947 = sshll.u32 [#allocation2], 4
      %s948 = int_to_ptr.vmem [resolvable:$true] %s947
      %953 = dma.vmem_to_hbm [thread:$0]  %s948, 384, %s8, [#allocation3], 128, 128, 8
    $region37: #{forward.5} parent=1 // pred_fallthru
      _
    // Predicated region
    $region38: #{forward.5} parent=1 // pred_check
      _
    $region39: #{forward.5} parent=1 // pred_check_branch
      %955 = sbr.rel (0) target = $region41
    $region40: #{forward.5} parent=1 // pred_region
      _
    $region41: #{forward.5} parent=1 // pred_fallthru
      _
    // Predicated region
    $region42: #{forward.5} parent=1 // pred_check
      _
    $region43: #{forward.5} parent=1 // pred_check_branch
      %957 = sbr.rel (0) target = $region45
    $region44: #{forward.5} parent=1 // pred_region
      %958 = dma.done [#allocation3], 384
    $region45: #{forward.5} parent=1 // pred_fallthru
      _
    // Predicated region
    $region46: #{forward.5} parent=1 // pred_check
      _
    $region47: #{forward.5} parent=1 // pred_check_branch
      %960 = sbr.rel (0) target = $region49
    $region48: #{forward.5} parent=1 // pred_region
      _
    $region49: #{forward.5} parent=1 // pred_fallthru
      _
    %961 = vsyncpa [#allocation3], 1

// kernel: forward.4
$region0: #{forward.4}
  #allocation0 [shape = 'u32[]', space=smem, size = 0x4, offset = 0x4, fixed_abs, tag = 'smem constant byte address 0x4 - core index']
  #allocation1 [shape = 'u32[144,128]{1,0:T(1,128)}', space=vmem, size = 0x12000, scoped, tag = 'internal scratch']
  %s0 = inlined_call_operand.vmem [shape: f32[24,8], index: 0, kind: input, shape index: {}]
  %s1 = inlined_call_operand.vmem [shape: f32[24,24], index: 1, kind: input, shape index: {}]
  %s2 = inlined_call_operand.vmem [shape: f32[24,24], index: 2, kind: input, shape index: {}]
  %s3 = inlined_call_operand.vmem [shape: f32[3,3], index: 3, kind: input, shape index: {}]
  %s4 = inlined_call_operand.vmem [shape: f32[8,8], index: 4, kind: input, shape index: {}]
  %s5 = inlined_call_operand.vmem [shape: f32[24,3], index: 5, kind: input, shape index: {}]
  %s6 = inlined_call_operand.vmem [shape: f32[3,24], index: 6, kind: input, shape index: {}]
  %s7 = inlined_call_operand.vmem [shape: f32[24,24], index: 7, kind: input, shape index: {}]
  %s8 = inlined_call_operand.vmem [shape: f32[3,16,24], index: 8, kind: input, shape index: {}]
  %s9 = inlined_call_operand.vmem [shape: f32[3,16,24], index: 9, kind: input, shape index: {}]
  %s10 = inlined_call_operand.vmem [shape: f32[24,4], index: 10, kind: input, shape index: {}]
  %s11 = inlined_call_operand.vmem [shape: f32[24,4], index: 11, kind: input, shape index: {}]
  %s12 = inlined_call_operand.vmem [shape: f32[24,8], index: 12, kind: output, shape index: {0}]
  %s13 = inlined_call_operand.vmem [shape: f32[1,4], index: 13, kind: output, shape index: {1}]
  %s14 = inlined_call_operand.vmem [shape: f32[16,4], index: 14, kind: output, shape index: {2}]
  %15 = xla_tuple %s12, %s13, %s14
  %s16 = sld [smem:[#allocation0]]
  $region74: #{forward.4} parent=0
    _
  %s18 = ssub.s32 1, %s16
  %s19 = scalar_select 0, %s18, %s16
  // Predicated region
  $region2: #{forward.4} parent=0 // pred_check
    _
  $region3: #{forward.4} parent=0 // pred_check_branch
    %21 = sbr.rel (0) target = $region5
  $region4: #{forward.4} parent=0 // pred_region
    _
  $region5: #{forward.4} parent=0 // pred_fallthru
    _
  // Predicated region
  $region6: #{forward.4} parent=0 // pred_check
    _
  $region7: #{forward.4} parent=0 // pred_check_branch
    %23 = sbr.rel (0) target = $region9
  $region8: #{forward.4} parent=0 // pred_region
    _
  $region9: #{forward.4} parent=0 // pred_fallthru
    _
  // Predicated region
  $region10: #{forward.4} parent=0 // pred_check
    _
  $region11: #{forward.4} parent=0 // pred_check_branch
    %25 = sbr.rel (0) target = $region13
  $region12: #{forward.4} parent=0 // pred_region
    _
  $region13: #{forward.4} parent=0 // pred_fallthru
    _
  // Predicated region
  $region14: #{forward.4} parent=0 // pred_check
    _
  $region15: #{forward.4} parent=0 // pred_check_branch
    %27 = sbr.rel (0) target = $region17
  $region16: #{forward.4} parent=0 // pred_region
    _
  $region17: #{forward.4} parent=0 // pred_fallthru
    _
  // Predicated region
  $region18: #{forward.4} parent=0 // pred_check
    _
  $region19: #{forward.4} parent=0 // pred_check_branch
    %29 = sbr.rel (0) target = $region21
  $region20: #{forward.4} parent=0 // pred_region
    _
  $region21: #{forward.4} parent=0 // pred_fallthru
    _
  // Predicated region
  $region22: #{forward.4} parent=0 // pred_check
    _
  $region23: #{forward.4} parent=0 // pred_check_branch
    %31 = sbr.rel (0) target = $region25
  $region24: #{forward.4} parent=0 // pred_region
    _
  $region25: #{forward.4} parent=0 // pred_fallthru
    _
  // Predicated region
  $region26: #{forward.4} parent=0 // pred_check
    _
  $region27: #{forward.4} parent=0 // pred_check_branch
    %33 = sbr.rel (0) target = $region29
  $region28: #{forward.4} parent=0 // pred_region
    _
  $region29: #{forward.4} parent=0 // pred_fallthru
    _
  // Predicated region
  $region30: #{forward.4} parent=0 // pred_check
    _
  $region31: #{forward.4} parent=0 // pred_check_branch
    %35 = sbr.rel (0) target = $region33
  $region32: #{forward.4} parent=0 // pred_region
    _
  $region33: #{forward.4} parent=0 // pred_fallthru
    _
  // Predicated region
  $region34: #{forward.4} parent=0 // pred_check
    _
  $region35: #{forward.4} parent=0 // pred_check_branch
    %37 = sbr.rel (0) target = $region37
  $region36: #{forward.4} parent=0 // pred_region
    _
  $region37: #{forward.4} parent=0 // pred_fallthru
    _
  // Predicated region
  $region38: #{forward.4} parent=0 // pred_check
    _
  $region39: #{forward.4} parent=0 // pred_check_branch
    %39 = sbr.rel (0) target = $region41
  $region40: #{forward.4} parent=0 // pred_region
    _
  $region41: #{forward.4} parent=0 // pred_fallthru
    _
  // Predicated region
  $region42: #{forward.4} parent=0 // pred_check
    _
  $region43: #{forward.4} parent=0 // pred_check_branch
    %41 = sbr.rel (0) target = $region45
  $region44: #{forward.4} parent=0 // pred_region
    _
  $region45: #{forward.4} parent=0 // pred_fallthru
    _
  // Predicated region
  $region46: #{forward.4} parent=0 // pred_check
    _
  $region47: #{forward.4} parent=0 // pred_check_branch
    %43 = sbr.rel (0) target = $region49
  $region48: #{forward.4} parent=0 // pred_region
    _
  $region49: #{forward.4} parent=0 // pred_fallthru
    _
  %v44 = vld [vmem:[%s0] sm:$0xff]
  %v45 = vld [vmem:[%s0 + $0x8] sm:$0xff]
  %v46 = vld [vmem:[%s0 + $0x10] sm:$0xff]
  %v47 = vld [vmem:[%s1] sm:$0xff]
  %v48 = vld [vmem:[%s1 + $0x8] sm:$0xff]
  %v49 = vld [vmem:[%s1 + $0x10] sm:$0xff]
  %v50 = vld [vmem:[%s2] sm:$0xff]
  %v51 = vld [vmem:[%s2 + $0x8] sm:$0xff]
  %v52 = vld [vmem:[%s2 + $0x10] sm:$0xff]
  %vm53 = vcmask 195584
  %v55 = vsel %vm53, %v47, 0
  %v58 = vsel %vm53, %v48, 0
  %v61 = vsel %vm53, %v49, 0
  %63 = vmatprep.subr.mxu0 0.0
  %64 = vmatpush1.msra.mxu0 %v44
  %65 = vmatprep.subr.mxu0 0.0
  %66 = vmatpush1.msra.mxu0 %v45
  %67 = vmatprep.subr.mxu0 0.0
  %68 = vmatpush1.msra.mxu0 %v46
  %69 = vmatprep.subr.mxu0 0.0
  %70 = vmatpush1.msra.mxu0 0.0
  %71 = vmatprep.subr.mxu0 0.0
  %72 = vmatpush1.msra.mxu0 0.0
  %73 = vmatprep.subr.mxu0 0.0
  %74 = vmatpush1.msra.mxu0 0.0
  %75 = vmatprep.subr.mxu0 0.0
  %76 = vmatpush1.msra.mxu0 0.0
  %77 = vmatprep.subr.mxu0 0.0
  %78 = vmatpush1.msra.mxu0 0.0
  %79 = vmatprep.subr.mxu0 0.0
  %80 = vmatpush1.msra.mxu0 0.0
  %81 = vmatprep.subr.mxu0 0.0
  %82 = vmatpush1.msra.mxu0 0.0
  %83 = vmatprep.subr.mxu0 0.0
  %84 = vmatpush1.msra.mxu0 0.0
  %85 = vmatprep.subr.mxu0 0.0
  %86 = vmatpush1.msra.mxu0 0.0
  %87 = vmatprep.subr.mxu0 0.0
  %88 = vmatpush1.msra.mxu0 0.0
  %89 = vmatprep.subr.mxu0 0.0
  %90 = vmatpush1.msra.mxu0 0.0
  %91 = vmatprep.subr.mxu0 0.0
  %92 = vmatpush1.msra.mxu0 0.0
  %93 = vmatprep.subr.mxu0 0.0
  %94 = vmatpush1.msra.mxu0 0.0
  %95 = vmatprep.subr.mxu0 0.0
  %96 = vmatpush1.msra.mxu0 0.0
  %97 = vmatprep.subr.mxu0 0.0
  %98 = vmatpush1.msra.mxu0 0.0
  %99 = vmatprep.subr.mxu0 0.0
  %100 = vmatpush1.msra.mxu0 0.0
  %101 = vmatprep.subr.mxu0 0.0
  %102 = vmatpush1.msra.mxu0 0.0
  %103 = vmatprep.subr.mxu0 0.0
  %104 = vmatpush1.msra.mxu0 0.0
  %105 = vmatprep.subr.mxu0 0.0
  %106 = vmatpush1.msra.mxu0 0.0
  %107 = vmatprep.subr.mxu0 0.0
  %108 = vmatpush1.msra.mxu0 0.0
  %109 = vmatprep.subr.mxu0 0.0
  %110 = vmatpush1.msra.mxu0 0.0
  %111 = vmatprep.subr.mxu0 0.0
  %112 = vmatpush1.msra.mxu0 0.0
  %113 = vmatprep.subr.mxu0 0.0
  %114 = vmatpush1.msra.mxu0 0.0
  %115 = vmatprep.subr.mxu0 0.0
  %116 = vmatpush1.msra.mxu0 0.0
  %117 = vmatprep.subr.mxu0 0.0
  %118 = vmatpush1.msra.mxu0 0.0
  %119 = vmatprep.subr.mxu0 0.0
  %120 = vmatpush1.msra.mxu0 0.0
  %121 = vmatprep.subr.mxu0 0.0
  %122 = vmatpush1.msra.mxu0 0.0
  %123 = vmatprep.subr.mxu0 0.0
  %124 = vmatpush1.msra.mxu0 0.0
  %125 = vmatprep.subr.mxu0 0.0
  %126 = vmatpush1.msra.mxu0 0.0
  %127 = vmatprep.mubr.f32.mxu0 0.0
  %128 = vmatmul.mubr.f32.gmra.mrb[0].mxu0 %v55
  %v129 = vpop.f32.mrb[0].mxu0
  %v130 = vadd.f32 0.0, %v129
  %v131 = vpop.f32.mrb[0].mxu0
  %132 = vmatprep.mubr.f32.mxu0 0.0
  %133 = vmatmul.mubr.f32.gmra.mrb[0].mxu0 %v58
  %v134 = vpop.f32.mrb[0].mxu0
  %v135 = vadd.f32 0.0, %v134
  %v136 = vpop.f32.mrb[0].mxu0
  %137 = vmatprep.mubr.f32.mxu0 0.0
  %138 = vmatmul.mubr.f32.gmra.mrb[0].mxu0 %v61
  %v139 = vpop.f32.mrb[0].mxu0
  %v140 = vadd.f32 0.0, %v139
  %v141 = vpop.f32.mrb[0].mxu0
  %142 = vdwg.mxu0
  %v143 = vmul.f32 %v44, %v130
  %v144 = vmul.f32 %v45, %v135
  %v145 = vmul.f32 %v46, %v140
  %vm146 = vcmask 64512
  %v147 = vsel %vm146, %v143, 0.0
  %v148 = vsel %vm146, %v144, 0.0
  %v149 = vadd.f32 %v147, %v148
  %v150 = vsel %vm146, %v145, 0.0
  %v151 = vadd.f32 %v149, %v150
  %152 = vadd.xlane.f32.xlu0 %v151
  %v153 = vpop.xlane.xlu0 %152
  %v154 = vrot.slane %v153, 4
  %v155 = vadd.f32 %v153, %v154
  %v156 = vrot.slane %v155, 2
  %v157 = vadd.f32 %v155, %v156
  %v158 = vrot.slane %v157, 1
  %v159 = vadd.f32 %v157, %v158
  %s160 = vtos %v159
  %v162 = vsel %vm53, %v50, 0
  %v165 = vsel %vm53, %v51, 0
  %v168 = vsel %vm53, %v52, 0
  %170 = vmatprep.subr.mxu0 0.0
  %171 = vmatpush1.msra.mxu0 %v44
  %172 = vmatprep.subr.mxu0 0.0
  %173 = vmatpush1.msra.mxu0 %v45
  %174 = vmatprep.subr.mxu0 0.0
  %175 = vmatpush1.msra.mxu0 %v46
  %176 = vmatprep.subr.mxu0 0.0
  %177 = vmatpush1.msra.mxu0 0.0
  %178 = vmatprep.subr.mxu0 0.0
  %179 = vmatpush1.msra.mxu0 0.0
  %180 = vmatprep.subr.mxu0 0.0
  %181 = vmatpush1.msra.mxu0 0.0
  %182 = vmatprep.subr.mxu0 0.0
  %183 = vmatpush1.msra.mxu0 0.0
  %184 = vmatprep.subr.mxu0 0.0
  %185 = vmatpush1.msra.mxu0 0.0
  %186 = vmatprep.subr.mxu0 0.0
  %187 = vmatpush1.msra.mxu0 0.0
  %188 = vmatprep.subr.mxu0 0.0
  %189 = vmatpush1.msra.mxu0 0.0
  %190 = vmatprep.subr.mxu0 0.0
  %191 = vmatpush1.msra.mxu0 0.0
  %192 = vmatprep.subr.mxu0 0.0
  %193 = vmatpush1.msra.mxu0 0.0
  %194 = vmatprep.subr.mxu0 0.0
  %195 = vmatpush1.msra.mxu0 0.0
  %196 = vmatprep.subr.mxu0 0.0
  %197 = vmatpush1.msra.mxu0 0.0
  %198 = vmatprep.subr.mxu0 0.0
  %199 = vmatpush1.msra.mxu0 0.0
  %200 = vmatprep.subr.mxu0 0.0
  %201 = vmatpush1.msra.mxu0 0.0
  %202 = vmatprep.subr.mxu0 0.0
  %203 = vmatpush1.msra.mxu0 0.0
  %204 = vmatprep.subr.mxu0 0.0
  %205 = vmatpush1.msra.mxu0 0.0
  %206 = vmatprep.subr.mxu0 0.0
  %207 = vmatpush1.msra.mxu0 0.0
  %208 = vmatprep.subr.mxu0 0.0
  %209 = vmatpush1.msra.mxu0 0.0
  %210 = vmatprep.subr.mxu0 0.0
  %211 = vmatpush1.msra.mxu0 0.0
  %212 = vmatprep.subr.mxu0 0.0
  %213 = vmatpush1.msra.mxu0 0.0
  %214 = vmatprep.subr.mxu0 0.0
  %215 = vmatpush1.msra.mxu0 0.0
  %216 = vmatprep.subr.mxu0 0.0
  %217 = vmatpush1.msra.mxu0 0.0
  %218 = vmatprep.subr.mxu0 0.0
  %219 = vmatpush1.msra.mxu0 0.0
  %220 = vmatprep.subr.mxu0 0.0
  %221 = vmatpush1.msra.mxu0 0.0
  %222 = vmatprep.subr.mxu0 0.0
  %223 = vmatpush1.msra.mxu0 0.0
  %224 = vmatprep.subr.mxu0 0.0
  %225 = vmatpush1.msra.mxu0 0.0
  %226 = vmatprep.subr.mxu0 0.0
  %227 = vmatpush1.msra.mxu0 0.0
  %228 = vmatprep.subr.mxu0 0.0
  %229 = vmatpush1.msra.mxu0 0.0
  %230 = vmatprep.subr.mxu0 0.0
  %231 = vmatpush1.msra.mxu0 0.0
  %232 = vmatprep.subr.mxu0 0.0
  %233 = vmatpush1.msra.mxu0 0.0
  %234 = vmatprep.mubr.f32.mxu0 0.0
  %235 = vmatmul.mubr.f32.gmra.mrb[0].mxu0 %v162
  %v236 = vpop.f32.mrb[0].mxu0
  %v237 = vadd.f32 0.0, %v236
  %v238 = vpop.f32.mrb[0].mxu0
  %239 = vmatprep.mubr.f32.mxu0 0.0
  %240 = vmatmul.mubr.f32.gmra.mrb[0].mxu0 %v165
  %v241 = vpop.f32.mrb[0].mxu0
  %v242 = vadd.f32 0.0, %v241
  %v243 = vpop.f32.mrb[0].mxu0
  %244 = vmatprep.mubr.f32.mxu0 0.0
  %245 = vmatmul.mubr.f32.gmra.mrb[0].mxu0 %v168
  %v246 = vpop.f32.mrb[0].mxu0
  %v247 = vadd.f32 0.0, %v246
  %v248 = vpop.f32.mrb[0].mxu0
  %249 = vdwg.mxu0
  %v250 = vmul.f32 %v44, %v237
  %v251 = vmul.f32 %v45, %v242
  %v252 = vmul.f32 %v46, %v247
  %v253 = vsel %vm146, %v250, 0.0
  %v254 = vsel %vm146, %v251, 0.0
  %v255 = vadd.f32 %v253, %v254
  %v256 = vsel %vm146, %v252, 0.0
  %v257 = vadd.f32 %v255, %v256
  %258 = vadd.xlane.f32.xlu0 %v257
  %v259 = vpop.xlane.xlu0 %258
  %v260 = vrot.slane %v259, 4
  %v261 = vadd.f32 %v259, %v260
  %v262 = vrot.slane %v261, 2
  %v263 = vadd.f32 %v261, %v262
  %v264 = vrot.slane %v263, 1
  %v265 = vadd.f32 %v263, %v264
  %s266 = vtos %v265
  %v267 = vld [vmem:[%s5] sm:$0xff]
  %v268 = vld [vmem:[%s5 + $0x8] sm:$0xff]
  %v269 = vld [vmem:[%s5 + $0x10] sm:$0xff]
  %v270 = vld [vmem:[%s3] sm:$0x7]
  %vm271 = vcmask 23552
  %v273 = vsel %vm271, %v267, 0
  %v276 = vsel %vm271, %v268, 0
  %v279 = vsel %vm271, %v269, 0
  %vm281 = vcmask 1042432
  %v283 = vsel %vm281, %v270, 0
  %285 = vmatprep.subr.mxu0 0.0
  %286 = vmatpush1.msra.mxu0 %v283
  %287 = vmatprep.subr.mxu0 0.0
  %288 = vmatpush1.msra.mxu0 0.0
  %289 = vmatprep.subr.mxu0 0.0
  %290 = vmatpush1.msra.mxu0 0.0
  %291 = vmatprep.subr.mxu0 0.0
  %292 = vmatpush1.msra.mxu0 0.0
  %293 = vmatprep.subr.mxu0 0.0
  %294 = vmatpush1.msra.mxu0 0.0
  %295 = vmatprep.subr.mxu0 0.0
  %296 = vmatpush1.msra.mxu0 0.0
  %297 = vmatprep.subr.mxu0 0.0
  %298 = vmatpush1.msra.mxu0 0.0
  %299 = vmatprep.subr.mxu0 0.0
  %300 = vmatpush1.msra.mxu0 0.0
  %301 = vmatprep.subr.mxu0 0.0
  %302 = vmatpush1.msra.mxu0 0.0
  %303 = vmatprep.subr.mxu0 0.0
  %304 = vmatpush1.msra.mxu0 0.0
  %305 = vmatprep.subr.mxu0 0.0
  %306 = vmatpush1.msra.mxu0 0.0
  %307 = vmatprep.subr.mxu0 0.0
  %308 = vmatpush1.msra.mxu0 0.0
  %309 = vmatprep.subr.mxu0 0.0
  %310 = vmatpush1.msra.mxu0 0.0
  %311 = vmatprep.subr.mxu0 0.0
  %312 = vmatpush1.msra.mxu0 0.0
  %313 = vmatprep.subr.mxu0 0.0
  %314 = vmatpush1.msra.mxu0 0.0
  %315 = vmatprep.subr.mxu0 0.0
  %316 = vmatpush1.msra.mxu0 0.0
  %317 = vmatprep.subr.mxu0 0.0
  %318 = vmatpush1.msra.mxu0 0.0
  %319 = vmatprep.subr.mxu0 0.0
  %320 = vmatpush1.msra.mxu0 0.0
  %321 = vmatprep.subr.mxu0 0.0
  %322 = vmatpush1.msra.mxu0 0.0
  %323 = vmatprep.subr.mxu0 0.0
  %324 = vmatpush1.msra.mxu0 0.0
  %325 = vmatprep.subr.mxu0 0.0
  %326 = vmatpush1.msra.mxu0 0.0
  %327 = vmatprep.subr.mxu0 0.0
  %328 = vmatpush1.msra.mxu0 0.0
  %329 = vmatprep.subr.mxu0 0.0
  %330 = vmatpush1.msra.mxu0 0.0
  %331 = vmatprep.subr.mxu0 0.0
  %332 = vmatpush1.msra.mxu0 0.0
  %333 = vmatprep.subr.mxu0 0.0
  %334 = vmatpush1.msra.mxu0 0.0
  %335 = vmatprep.subr.mxu0 0.0
  %336 = vmatpush1.msra.mxu0 0.0
  %337 = vmatprep.subr.mxu0 0.0
  %338 = vmatpush1.msra.mxu0 0.0
  %339 = vmatprep.subr.mxu0 0.0
  %340 = vmatpush1.msra.mxu0 0.0
  %341 = vmatprep.subr.mxu0 0.0
  %342 = vmatpush1.msra.mxu0 0.0
  %343 = vmatprep.subr.mxu0 0.0
  %344 = vmatpush1.msra.mxu0 0.0
  %345 = vmatprep.subr.mxu0 0.0
  %346 = vmatpush1.msra.mxu0 0.0
  %347 = vmatprep.subr.mxu0 0.0
  %348 = vmatpush1.msra.mxu0 0.0
  %349 = vmatprep.mubr.f32.mxu0 0.0
  %350 = vmatmul.mubr.f32.gmra.mrb[0].mxu0 %v273
  %v351 = vpop.f32.mrb[0].mxu0
  %v352 = vadd.f32 0.0, %v351
  %v353 = vpop.f32.mrb[0].mxu0
  %354 = vmatprep.mubr.f32.mxu0 0.0
  %355 = vmatmul.mubr.f32.gmra.mrb[0].mxu0 %v276
  %v356 = vpop.f32.mrb[0].mxu0
  %v357 = vadd.f32 0.0, %v356
  %v358 = vpop.f32.mrb[0].mxu0
  %359 = vmatprep.mubr.f32.mxu0 0.0
  %360 = vmatmul.mubr.f32.gmra.mrb[0].mxu0 %v279
  %v361 = vpop.f32.mrb[0].mxu0
  %v362 = vadd.f32 0.0, %v361
  %v363 = vpop.f32.mrb[0].mxu0
  %364 = vdwg.mxu0
  %v365 = vld [vmem:[%s6] sm:$0x7]
  %v367 = vsel %vm271, %v352, 0
  %v370 = vsel %vm271, %v357, 0
  %v373 = vsel %vm271, %v362, 0
  %v376 = vsel %vm281, %v365, 0
  %378 = vmatprep.subr.mxu0 0.0
  %379 = vmatpush1.msra.mxu0 %v376
  %380 = vmatprep.subr.mxu0 0.0
  %381 = vmatpush1.msra.mxu0 0.0
  %382 = vmatprep.subr.mxu0 0.0
  %383 = vmatpush1.msra.mxu0 0.0
  %384 = vmatprep.subr.mxu0 0.0
  %385 = vmatpush1.msra.mxu0 0.0
  %386 = vmatprep.subr.mxu0 0.0
  %387 = vmatpush1.msra.mxu0 0.0
  %388 = vmatprep.subr.mxu0 0.0
  %389 = vmatpush1.msra.mxu0 0.0
  %390 = vmatprep.subr.mxu0 0.0
  %391 = vmatpush1.msra.mxu0 0.0
  %392 = vmatprep.subr.mxu0 0.0
  %393 = vmatpush1.msra.mxu0 0.0
  %394 = vmatprep.subr.mxu0 0.0
  %395 = vmatpush1.msra.mxu0 0.0
  %396 = vmatprep.subr.mxu0 0.0
  %397 = vmatpush1.msra.mxu0 0.0
  %398 = vmatprep.subr.mxu0 0.0
  %399 = vmatpush1.msra.mxu0 0.0
  %400 = vmatprep.subr.mxu0 0.0
  %401 = vmatpush1.msra.mxu0 0.0
  %402 = vmatprep.subr.mxu0 0.0
  %403 = vmatpush1.msra.mxu0 0.0
  %404 = vmatprep.subr.mxu0 0.0
  %405 = vmatpush1.msra.mxu0 0.0
  %406 = vmatprep.subr.mxu0 0.0
  %407 = vmatpush1.msra.mxu0 0.0
  %408 = vmatprep.subr.mxu0 0.0
  %409 = vmatpush1.msra.mxu0 0.0
  %410 = vmatprep.subr.mxu0 0.0
  %411 = vmatpush1.msra.mxu0 0.0
  %412 = vmatprep.subr.mxu0 0.0
  %413 = vmatpush1.msra.mxu0 0.0
  %414 = vmatprep.subr.mxu0 0.0
  %415 = vmatpush1.msra.mxu0 0.0
  %416 = vmatprep.subr.mxu0 0.0
  %417 = vmatpush1.msra.mxu0 0.0
  %418 = vmatprep.subr.mxu0 0.0
  %419 = vmatpush1.msra.mxu0 0.0
  %420 = vmatprep.subr.mxu0 0.0
  %421 = vmatpush1.msra.mxu0 0.0
  %422 = vmatprep.subr.mxu0 0.0
  %423 = vmatpush1.msra.mxu0 0.0
  %424 = vmatprep.subr.mxu0 0.0
  %425 = vmatpush1.msra.mxu0 0.0
  %426 = vmatprep.subr.mxu0 0.0
  %427 = vmatpush1.msra.mxu0 0.0
  %428 = vmatprep.subr.mxu0 0.0
  %429 = vmatpush1.msra.mxu0 0.0
  %430 = vmatprep.subr.mxu0 0.0
  %431 = vmatpush1.msra.mxu0 0.0
  %432 = vmatprep.subr.mxu0 0.0
  %433 = vmatpush1.msra.mxu0 0.0
  %434 = vmatprep.subr.mxu0 0.0
  %435 = vmatpush1.msra.mxu0 0.0
  %436 = vmatprep.subr.mxu0 0.0
  %437 = vmatpush1.msra.mxu0 0.0
  %438 = vmatprep.subr.mxu0 0.0
  %439 = vmatpush1.msra.mxu0 0.0
  %440 = vmatprep.subr.mxu0 0.0
  %441 = vmatpush1.msra.mxu0 0.0
  %442 = vmatprep.mubr.f32.mxu0 0.0
  %443 = vmatmul.mubr.f32.gmra.mrb[0].mxu0 %v367
  %v444 = vpop.f32.mrb[0].mxu0
  %v445 = vadd.f32 0.0, %v444
  %v446 = vpop.f32.mrb[0].mxu0
  %447 = vmatprep.mubr.f32.mxu0 0.0
  %448 = vmatmul.mubr.f32.gmra.mrb[0].mxu0 %v370
  %v449 = vpop.f32.mrb[0].mxu0
  %v450 = vadd.f32 0.0, %v449
  %v451 = vpop.f32.mrb[0].mxu0
  %452 = vmatprep.mubr.f32.mxu0 0.0
  %453 = vmatmul.mubr.f32.gmra.mrb[0].mxu0 %v373
  %v454 = vpop.f32.mrb[0].mxu0
  %v455 = vadd.f32 0.0, %v454
  %v456 = vpop.f32.mrb[0].mxu0
  %457 = vdwg.mxu0
  %v458 = vld [vmem:[%s7] sm:$0xff]
  %v459 = vld [vmem:[%s7 + $0x8] sm:$0xff]
  %v460 = vld [vmem:[%s7 + $0x10] sm:$0xff]
  %v461 = vmul.f32 %v445, %v458
  %v462 = vmul.f32 %v450, %v459
  %v463 = vmul.f32 %v455, %v460
  %v465 = vsel %vm53, %v461, 0
  %v468 = vsel %vm53, %v462, 0
  %v471 = vsel %vm53, %v463, 0
  %473 = vmatprep.subr.mxu0 0.0
  %474 = vmatpush1.msra.mxu0 %v44
  %475 = vmatprep.subr.mxu0 0.0
  %476 = vmatpush1.msra.mxu0 %v45
  %477 = vmatprep.subr.mxu0 0.0
  %478 = vmatpush1.msra.mxu0 %v46
  %479 = vmatprep.subr.mxu0 0.0
  %480 = vmatpush1.msra.mxu0 0.0
  %481 = vmatprep.subr.mxu0 0.0
  %482 = vmatpush1.msra.mxu0 0.0
  %483 = vmatprep.subr.mxu0 0.0
  %484 = vmatpush1.msra.mxu0 0.0
  %485 = vmatprep.subr.mxu0 0.0
  %486 = vmatpush1.msra.mxu0 0.0
  %487 = vmatprep.subr.mxu0 0.0
  %488 = vmatpush1.msra.mxu0 0.0
  %489 = vmatprep.subr.mxu0 0.0
  %490 = vmatpush1.msra.mxu0 0.0
  %491 = vmatprep.subr.mxu0 0.0
  %492 = vmatpush1.msra.mxu0 0.0
  %493 = vmatprep.subr.mxu0 0.0
  %494 = vmatpush1.msra.mxu0 0.0
  %495 = vmatprep.subr.mxu0 0.0
  %496 = vmatpush1.msra.mxu0 0.0
  %497 = vmatprep.subr.mxu0 0.0
  %498 = vmatpush1.msra.mxu0 0.0
  %499 = vmatprep.subr.mxu0 0.0
  %500 = vmatpush1.msra.mxu0 0.0
  %501 = vmatprep.subr.mxu0 0.0
  %502 = vmatpush1.msra.mxu0 0.0
  %503 = vmatprep.subr.mxu0 0.0
  %504 = vmatpush1.msra.mxu0 0.0
  %505 = vmatprep.subr.mxu0 0.0
  %506 = vmatpush1.msra.mxu0 0.0
  %507 = vmatprep.subr.mxu0 0.0
  %508 = vmatpush1.msra.mxu0 0.0
  %509 = vmatprep.subr.mxu0 0.0
  %510 = vmatpush1.msra.mxu0 0.0
  %511 = vmatprep.subr.mxu0 0.0
  %512 = vmatpush1.msra.mxu0 0.0
  %513 = vmatprep.subr.mxu0 0.0
  %514 = vmatpush1.msra.mxu0 0.0
  %515 = vmatprep.subr.mxu0 0.0
  %516 = vmatpush1.msra.mxu0 0.0
  %517 = vmatprep.subr.mxu0 0.0
  %518 = vmatpush1.msra.mxu0 0.0
  %519 = vmatprep.subr.mxu0 0.0
  %520 = vmatpush1.msra.mxu0 0.0
  %521 = vmatprep.subr.mxu0 0.0
  %522 = vmatpush1.msra.mxu0 0.0
  %523 = vmatprep.subr.mxu0 0.0
  %524 = vmatpush1.msra.mxu0 0.0
  %525 = vmatprep.subr.mxu0 0.0
  %526 = vmatpush1.msra.mxu0 0.0
  %527 = vmatprep.subr.mxu0 0.0
  %528 = vmatpush1.msra.mxu0 0.0
  %529 = vmatprep.subr.mxu0 0.0
  %530 = vmatpush1.msra.mxu0 0.0
  %531 = vmatprep.subr.mxu0 0.0
  %532 = vmatpush1.msra.mxu0 0.0
  %533 = vmatprep.subr.mxu0 0.0
  %534 = vmatpush1.msra.mxu0 0.0
  %535 = vmatprep.subr.mxu0 0.0
  %536 = vmatpush1.msra.mxu0 0.0
  %537 = vmatprep.mubr.f32.mxu0 0.0
  %538 = vmatmul.mubr.f32.gmra.mrb[0].mxu0 %v465
  %v539 = vpop.f32.mrb[0].mxu0
  %v540 = vadd.f32 0.0, %v539
  %v541 = vpop.f32.mrb[0].mxu0
  %542 = vmatprep.mubr.f32.mxu0 0.0
  %543 = vmatmul.mubr.f32.gmra.mrb[0].mxu0 %v468
  %v544 = vpop.f32.mrb[0].mxu0
  %v545 = vadd.f32 0.0, %v544
  %v546 = vpop.f32.mrb[0].mxu0
  %547 = vmatprep.mubr.f32.mxu0 0.0
  %548 = vmatmul.mubr.f32.gmra.mrb[0].mxu0 %v471
  %v549 = vpop.f32.mrb[0].mxu0
  %v550 = vadd.f32 0.0, %v549
  %v551 = vpop.f32.mrb[0].mxu0
  %552 = vdwg.mxu0
  %v553 = vld [vmem:[%s4] sm:$0xff]
  %v555 = vsel %vm146, %v540, 0
  %v558 = vsel %vm146, %v545, 0
  %v561 = vsel %vm146, %v550, 0
  %563 = vmatprep.subr.mxu0 0.0
  %564 = vmatpush1.msra.mxu0 %v553
  %565 = vmatprep.subr.mxu0 0.0
  %566 = vmatpush1.msra.mxu0 0.0
  %567 = vmatprep.subr.mxu0 0.0
  %568 = vmatpush1.msra.mxu0 0.0
  %569 = vmatprep.subr.mxu0 0.0
  %570 = vmatpush1.msra.mxu0 0.0
  %571 = vmatprep.subr.mxu0 0.0
  %572 = vmatpush1.msra.mxu0 0.0
  %573 = vmatprep.subr.mxu0 0.0
  %574 = vmatpush1.msra.mxu0 0.0
  %575 = vmatprep.subr.mxu0 0.0
  %576 = vmatpush1.msra.mxu0 0.0
  %577 = vmatprep.subr.mxu0 0.0
  %578 = vmatpush1.msra.mxu0 0.0
  %579 = vmatprep.subr.mxu0 0.0
  %580 = vmatpush1.msra.mxu0 0.0
  %581 = vmatprep.subr.mxu0 0.0
  %582 = vmatpush1.msra.mxu0 0.0
  %583 = vmatprep.subr.mxu0 0.0
  %584 = vmatpush1.msra.mxu0 0.0
  %585 = vmatprep.subr.mxu0 0.0
  %586 = vmatpush1.msra.mxu0 0.0
  %587 = vmatprep.subr.mxu0 0.0
  %588 = vmatpush1.msra.mxu0 0.0
  %589 = vmatprep.subr.mxu0 0.0
  %590 = vmatpush1.msra.mxu0 0.0
  %591 = vmatprep.subr.mxu0 0.0
  %592 = vmatpush1.msra.mxu0 0.0
  %593 = vmatprep.subr.mxu0 0.0
  %594 = vmatpush1.msra.mxu0 0.0
  %595 = vmatprep.subr.mxu0 0.0
  %596 = vmatpush1.msra.mxu0 0.0
  %597 = vmatprep.subr.mxu0 0.0
  %598 = vmatpush1.msra.mxu0 0.0
  %599 = vmatprep.subr.mxu0 0.0
  %600 = vmatpush1.msra.mxu0 0.0
  %601 = vmatprep.subr.mxu0 0.0
  %602 = vmatpush1.msra.mxu0 0.0
  %603 = vmatprep.subr.mxu0 0.0
  %604 = vmatpush1.msra.mxu0 0.0
  %605 = vmatprep.subr.mxu0 0.0
  %606 = vmatpush1.msra.mxu0 0.0
  %607 = vmatprep.subr.mxu0 0.0
  %608 = vmatpush1.msra.mxu0 0.0
  %609 = vmatprep.subr.mxu0 0.0
  %610 = vmatpush1.msra.mxu0 0.0
  %611 = vmatprep.subr.mxu0 0.0
  %612 = vmatpush1.msra.mxu0 0.0
  %613 = vmatprep.subr.mxu0 0.0
  %614 = vmatpush1.msra.mxu0 0.0
  %615 = vmatprep.subr.mxu0 0.0
  %616 = vmatpush1.msra.mxu0 0.0
  %617 = vmatprep.subr.mxu0 0.0
  %618 = vmatpush1.msra.mxu0 0.0
  %619 = vmatprep.subr.mxu0 0.0
  %620 = vmatpush1.msra.mxu0 0.0
  %621 = vmatprep.subr.mxu0 0.0
  %622 = vmatpush1.msra.mxu0 0.0
  %623 = vmatprep.subr.mxu0 0.0
  %624 = vmatpush1.msra.mxu0 0.0
  %625 = vmatprep.subr.mxu0 0.0
  %626 = vmatpush1.msra.mxu0 0.0
  %627 = vmatprep.mubr.f32.mxu0 0.0
  %628 = vmatmul.mubr.f32.gmra.mrb[0].mxu0 %v555
  %v629 = vpop.f32.mrb[0].mxu0
  %v630 = vadd.f32 0.0, %v629
  %v631 = vpop.f32.mrb[0].mxu0
  %632 = vmatprep.mubr.f32.mxu0 0.0
  %633 = vmatmul.mubr.f32.gmra.mrb[0].mxu0 %v558
  %v634 = vpop.f32.mrb[0].mxu0
  %v635 = vadd.f32 0.0, %v634
  %v636 = vpop.f32.mrb[0].mxu0
  %637 = vmatprep.mubr.f32.mxu0 0.0
  %638 = vmatmul.mubr.f32.gmra.mrb[0].mxu0 %v561
  %v639 = vpop.f32.mrb[0].mxu0
  %v640 = vadd.f32 0.0, %v639
  %v641 = vpop.f32.mrb[0].mxu0
  %642 = vdwg.mxu0
  %643 = vmatprep.subr.mxu0 0.0
  %644 = vmatpush1.msra.mxu0 %v630
  %645 = vmatprep.subr.mxu0 0.0
  %646 = vmatpush1.msra.mxu0 %v635
  %647 = vmatprep.subr.mxu0 0.0
  %648 = vmatpush1.msra.mxu0 %v640
  %649 = vmatprep.subr.mxu0 0.0
  %650 = vmatpush1.msra.mxu0 0.0
  %651 = vmatprep.subr.mxu0 0.0
  %652 = vmatpush1.msra.mxu0 0.0
  %653 = vmatprep.subr.mxu0 0.0
  %654 = vmatpush1.msra.mxu0 0.0
  %655 = vmatprep.subr.mxu0 0.0
  %656 = vmatpush1.msra.mxu0 0.0
  %657 = vmatprep.subr.mxu0 0.0
  %658 = vmatpush1.msra.mxu0 0.0
  %659 = vmatprep.subr.mxu0 0.0
  %660 = vmatpush1.msra.mxu0 0.0
  %661 = vmatprep.subr.mxu0 0.0
  %662 = vmatpush1.msra.mxu0 0.0
  %663 = vmatprep.subr.mxu0 0.0
  %664 = vmatpush1.msra.mxu0 0.0
  %665 = vmatprep.subr.mxu0 0.0
  %666 = vmatpush1.msra.mxu0 0.0
  %667 = vmatprep.subr.mxu0 0.0
  %668 = vmatpush1.msra.mxu0 0.0
  %669 = vmatprep.subr.mxu0 0.0
  %670 = vmatpush1.msra.mxu0 0.0
  %671 = vmatprep.subr.mxu0 0.0
  %672 = vmatpush1.msra.mxu0 0.0
  %673 = vmatprep.subr.mxu0 0.0
  %674 = vmatpush1.msra.mxu0 0.0
  %675 = vmatprep.subr.mxu0 0.0
  %676 = vmatpush1.msra.mxu0 0.0
  %677 = vmatprep.subr.mxu0 0.0
  %678 = vmatpush1.msra.mxu0 0.0
  %679 = vmatprep.subr.mxu0 0.0
  %680 = vmatpush1.msra.mxu0 0.0
  %681 = vmatprep.subr.mxu0 0.0
  %682 = vmatpush1.msra.mxu0 0.0
  %683 = vmatprep.subr.mxu0 0.0
  %684 = vmatpush1.msra.mxu0 0.0
  %685 = vmatprep.subr.mxu0 0.0
  %686 = vmatpush1.msra.mxu0 0.0
  %687 = vmatprep.subr.mxu0 0.0
  %688 = vmatpush1.msra.mxu0 0.0
  %689 = vmatprep.subr.mxu0 0.0
  %690 = vmatpush1.msra.mxu0 0.0
  %691 = vmatprep.subr.mxu0 0.0
  %692 = vmatpush1.msra.mxu0 0.0
  %693 = vmatprep.subr.mxu0 0.0
  %694 = vmatpush1.msra.mxu0 0.0
  %695 = vmatprep.subr.mxu0 0.0
  %696 = vmatpush1.msra.mxu0 0.0
  %697 = vmatprep.subr.mxu0 0.0
  %698 = vmatpush1.msra.mxu0 0.0
  %699 = vmatprep.subr.mxu0 0.0
  %700 = vmatpush1.msra.mxu0 0.0
  %701 = vmatprep.subr.mxu0 0.0
  %702 = vmatpush1.msra.mxu0 0.0
  %703 = vmatprep.subr.mxu0 0.0
  %704 = vmatpush1.msra.mxu0 0.0
  %705 = vmatprep.subr.mxu0 0.0
  %706 = vmatpush1.msra.mxu0 0.0
  %707 = vmatprep.mubr.f32.mxu0 0.0
  %708 = vmatmul.mubr.f32.gmra.mrb[0].mxu0 %v55
  %v709 = vpop.f32.mrb[0].mxu0
  %v710 = vadd.f32 0.0, %v709
  %v711 = vpop.f32.mrb[0].mxu0
  %712 = vmatprep.mubr.f32.mxu0 0.0
  %713 = vmatmul.mubr.f32.gmra.mrb[0].mxu0 %v58
  %v714 = vpop.f32.mrb[0].mxu0
  %v715 = vadd.f32 0.0, %v714
  %v716 = vpop.f32.mrb[0].mxu0
  %717 = vmatprep.mubr.f32.mxu0 0.0
  %718 = vmatmul.mubr.f32.gmra.mrb[0].mxu0 %v61
  %v719 = vpop.f32.mrb[0].mxu0
  %v720 = vadd.f32 0.0, %v719
  %v721 = vpop.f32.mrb[0].mxu0
  %722 = vdwg.mxu0
  %vm723 = vcmp.gt.f32.partialorder %v710, 0.0
  %vm724 = vcmp.gt.f32.partialorder %v715, 0.0
  %vm725 = vcmp.gt.f32.partialorder %v720, 0.0
  %v726 = vmul.f32 %v710, 1.442695
  %v727 = vpow.pop %v726
  %v728 = vmul.f32 %v715, 1.442695
  %v729 = vpow.pop %v728
  %v730 = vmul.f32 %v720, 1.442695
  %v731 = vpow.pop %v730
  %v732 = vsub.f32 %v727, 1.0
  %v733 = vsub.f32 %v729, 1.0
  %v734 = vsub.f32 %v731, 1.0
  %v735 = vsel %vm723, %v710, %v732
  %v736 = vsel %vm724, %v715, %v733
  %v737 = vsel %vm725, %v720, %v734
  %738 = vmatprep.subr.mxu0 0.0
  %739 = vmatpush1.msra.mxu0 %v735
  %740 = vmatprep.subr.mxu0 0.0
  %741 = vmatpush1.msra.mxu0 %v736
  %742 = vmatprep.subr.mxu0 0.0
  %743 = vmatpush1.msra.mxu0 %v737
  %744 = vmatprep.subr.mxu0 0.0
  %745 = vmatpush1.msra.mxu0 0.0
  %746 = vmatprep.subr.mxu0 0.0
  %747 = vmatpush1.msra.mxu0 0.0
  %748 = vmatprep.subr.mxu0 0.0
  %749 = vmatpush1.msra.mxu0 0.0
  %750 = vmatprep.subr.mxu0 0.0
  %751 = vmatpush1.msra.mxu0 0.0
  %752 = vmatprep.subr.mxu0 0.0
  %753 = vmatpush1.msra.mxu0 0.0
  %754 = vmatprep.subr.mxu0 0.0
  %755 = vmatpush1.msra.mxu0 0.0
  %756 = vmatprep.subr.mxu0 0.0
  %757 = vmatpush1.msra.mxu0 0.0
  %758 = vmatprep.subr.mxu0 0.0
  %759 = vmatpush1.msra.mxu0 0.0
  %760 = vmatprep.subr.mxu0 0.0
  %761 = vmatpush1.msra.mxu0 0.0
  %762 = vmatprep.subr.mxu0 0.0
  %763 = vmatpush1.msra.mxu0 0.0
  %764 = vmatprep.subr.mxu0 0.0
  %765 = vmatpush1.msra.mxu0 0.0
  %766 = vmatprep.subr.mxu0 0.0
  %767 = vmatpush1.msra.mxu0 0.0
  %768 = vmatprep.subr.mxu0 0.0
  %769 = vmatpush1.msra.mxu0 0.0
  %770 = vmatprep.subr.mxu0 0.0
  %771 = vmatpush1.msra.mxu0 0.0
  %772 = vmatprep.subr.mxu0 0.0
  %773 = vmatpush1.msra.mxu0 0.0
  %774 = vmatprep.subr.mxu0 0.0
  %775 = vmatpush1.msra.mxu0 0.0
  %776 = vmatprep.subr.mxu0 0.0
  %777 = vmatpush1.msra.mxu0 0.0
  %778 = vmatprep.subr.mxu0 0.0
  %779 = vmatpush1.msra.mxu0 0.0
  %780 = vmatprep.subr.mxu0 0.0
  %781 = vmatpush1.msra.mxu0 0.0
  %782 = vmatprep.subr.mxu0 0.0
  %783 = vmatpush1.msra.mxu0 0.0
  %784 = vmatprep.subr.mxu0 0.0
  %785 = vmatpush1.msra.mxu0 0.0
  %786 = vmatprep.subr.mxu0 0.0
  %787 = vmatpush1.msra.mxu0 0.0
  %788 = vmatprep.subr.mxu0 0.0
  %789 = vmatpush1.msra.mxu0 0.0
  %790 = vmatprep.subr.mxu0 0.0
  %791 = vmatpush1.msra.mxu0 0.0
  %792 = vmatprep.subr.mxu0 0.0
  %793 = vmatpush1.msra.mxu0 0.0
  %794 = vmatprep.subr.mxu0 0.0
  %795 = vmatpush1.msra.mxu0 0.0
  %796 = vmatprep.subr.mxu0 0.0
  %797 = vmatpush1.msra.mxu0 0.0
  %798 = vmatprep.subr.mxu0 0.0
  %799 = vmatpush1.msra.mxu0 0.0
  %800 = vmatprep.subr.mxu0 0.0
  %801 = vmatpush1.msra.mxu0 0.0
  %802 = vmatprep.mubr.f32.mxu0 0.0
  %803 = vmatmul.mubr.f32.gmra.mrb[0].mxu0 %v55
  %v804 = vpop.f32.mrb[0].mxu0
  %v805 = vadd.f32 0.0, %v804
  %v806 = vpop.f32.mrb[0].mxu0
  %807 = vmatprep.mubr.f32.mxu0 0.0
  %808 = vmatmul.mubr.f32.gmra.mrb[0].mxu0 %v58
  %v809 = vpop.f32.mrb[0].mxu0
  %v810 = vadd.f32 0.0, %v809
  %v811 = vpop.f32.mrb[0].mxu0
  %812 = vmatprep.mubr.f32.mxu0 0.0
  %813 = vmatmul.mubr.f32.gmra.mrb[0].mxu0 %v61
  %v814 = vpop.f32.mrb[0].mxu0
  %v815 = vadd.f32 0.0, %v814
  %v816 = vpop.f32.mrb[0].mxu0
  %817 = vdwg.mxu0
  %v818 = vmul.f32 %v735, %v805
  %v819 = vmul.f32 %v736, %v810
  %v820 = vmul.f32 %v737, %v815
  %v821 = vsel %vm146, %v818, 0.0
  %v822 = vsel %vm146, %v819, 0.0
  %v823 = vadd.f32 %v821, %v822
  %v824 = vsel %vm146, %v820, 0.0
  %v825 = vadd.f32 %v823, %v824
  %826 = vadd.xlane.f32.xlu0 %v825
  %v827 = vpop.xlane.xlu0 %826
  %v828 = vrot.slane %v827, 4
  %v829 = vadd.f32 %v827, %v828
  %v830 = vrot.slane %v829, 2
  %v831 = vadd.f32 %v829, %v830
  %v832 = vrot.slane %v831, 1
  %v833 = vadd.f32 %v831, %v832
  %s834 = vtos %v833
  %835 = vmatprep.subr.mxu0 0.0
  %836 = vmatpush1.msra.mxu0 %v735
  %837 = vmatprep.subr.mxu0 0.0
  %838 = vmatpush1.msra.mxu0 %v736
  %839 = vmatprep.subr.mxu0 0.0
  %840 = vmatpush1.msra.mxu0 %v737
  %841 = vmatprep.subr.mxu0 0.0
  %842 = vmatpush1.msra.mxu0 0.0
  %843 = vmatprep.subr.mxu0 0.0
  %844 = vmatpush1.msra.mxu0 0.0
  %845 = vmatprep.subr.mxu0 0.0
  %846 = vmatpush1.msra.mxu0 0.0
  %847 = vmatprep.subr.mxu0 0.0
  %848 = vmatpush1.msra.mxu0 0.0
  %849 = vmatprep.subr.mxu0 0.0
  %850 = vmatpush1.msra.mxu0 0.0
  %851 = vmatprep.subr.mxu0 0.0
  %852 = vmatpush1.msra.mxu0 0.0
  %853 = vmatprep.subr.mxu0 0.0
  %854 = vmatpush1.msra.mxu0 0.0
  %855 = vmatprep.subr.mxu0 0.0
  %856 = vmatpush1.msra.mxu0 0.0
  %857 = vmatprep.subr.mxu0 0.0
  %858 = vmatpush1.msra.mxu0 0.0
  %859 = vmatprep.subr.mxu0 0.0
  %860 = vmatpush1.msra.mxu0 0.0
  %861 = vmatprep.subr.mxu0 0.0
  %862 = vmatpush1.msra.mxu0 0.0
  %863 = vmatprep.subr.mxu0 0.0
  %864 = vmatpush1.msra.mxu0 0.0
  %865 = vmatprep.subr.mxu0 0.0
  %866 = vmatpush1.msra.mxu0 0.0
  %867 = vmatprep.subr.mxu0 0.0
  %868 = vmatpush1.msra.mxu0 0.0
  %869 = vmatprep.subr.mxu0 0.0
  %870 = vmatpush1.msra.mxu0 0.0
  %871 = vmatprep.subr.mxu0 0.0
  %872 = vmatpush1.msra.mxu0 0.0
  %873 = vmatprep.subr.mxu0 0.0
  %874 = vmatpush1.msra.mxu0 0.0
  %875 = vmatprep.subr.mxu0 0.0
  %876 = vmatpush1.msra.mxu0 0.0
  %877 = vmatprep.subr.mxu0 0.0
  %878 = vmatpush1.msra.mxu0 0.0
  %879 = vmatprep.subr.mxu0 0.0
  %880 = vmatpush1.msra.mxu0 0.0
  %881 = vmatprep.subr.mxu0 0.0
  %882 = vmatpush1.msra.mxu0 0.0
  %883 = vmatprep.subr.mxu0 0.0
  %884 = vmatpush1.msra.mxu0 0.0
  %885 = vmatprep.subr.mxu0 0.0
  %886 = vmatpush1.msra.mxu0 0.0
  %887 = vmatprep.subr.mxu0 0.0
  %888 = vmatpush1.msra.mxu0 0.0
  %889 = vmatprep.subr.mxu0 0.0
  %890 = vmatpush1.msra.mxu0 0.0
  %891 = vmatprep.subr.mxu0 0.0
  %892 = vmatpush1.msra.mxu0 0.0
  %893 = vmatprep.subr.mxu0 0.0
  %894 = vmatpush1.msra.mxu0 0.0
  %895 = vmatprep.subr.mxu0 0.0
  %896 = vmatpush1.msra.mxu0 0.0
  %897 = vmatprep.subr.mxu0 0.0
  %898 = vmatpush1.msra.mxu0 0.0
  %899 = vmatprep.mubr.f32.mxu0 0.0
  %900 = vmatmul.mubr.f32.gmra.mrb[0].mxu0 %v162
  %v901 = vpop.f32.mrb[0].mxu0
  %v902 = vadd.f32 0.0, %v901
  %v903 = vpop.f32.mrb[0].mxu0
  %904 = vmatprep.mubr.f32.mxu0 0.0
  %905 = vmatmul.mubr.f32.gmra.mrb[0].mxu0 %v165
  %v906 = vpop.f32.mrb[0].mxu0
  %v907 = vadd.f32 0.0, %v906
  %v908 = vpop.f32.mrb[0].mxu0
  %909 = vmatprep.mubr.f32.mxu0 0.0
  %910 = vmatmul.mubr.f32.gmra.mrb[0].mxu0 %v168
  %v911 = vpop.f32.mrb[0].mxu0
  %v912 = vadd.f32 0.0, %v911
  %v913 = vpop.f32.mrb[0].mxu0
  %914 = vdwg.mxu0
  %v915 = vmul.f32 %v735, %v902
  %v916 = vmul.f32 %v736, %v907
  %v917 = vmul.f32 %v737, %v912
  %v918 = vsel %vm146, %v915, 0.0
  %v919 = vsel %vm146, %v916, 0.0
  %v920 = vadd.f32 %v918, %v919
  %v921 = vsel %vm146, %v917, 0.0
  %v922 = vadd.f32 %v920, %v921
  %923 = vadd.xlane.f32.xlu0 %v922
  %v924 = vpop.xlane.xlu0 %923
  %v925 = vrot.slane %v924, 4
  %v926 = vadd.f32 %v924, %v925
  %v927 = vrot.slane %v926, 2
  %v928 = vadd.f32 %v926, %v927
  %v929 = vrot.slane %v928, 1
  %v930 = vadd.f32 %v928, %v929
  %s931 = vtos %v930
  %932 = vst.msk [vmem:[%s12] sm:$0xff] %vm146, %v735
  %933 = vst.msk [vmem:[%s12 + $0x8] sm:$0xff] %vm146, %v736
  %934 = vst.msk [vmem:[%s12 + $0x10] sm:$0xff] %vm146, %v737
  %v935 = vlaneseq
  %v936 = vand.u32 %v935, 127
  %vm937 = vcmp.eq.s32.totalorder %v936, 0
  %v938 = vstv %s160
  %v939 = vsel %vm937, %v938, 0.0
  %vm940 = vcmp.eq.s32.totalorder %v936, 1
  %v941 = vstv %s834
  %v942 = vsel %vm940, %v941, 0.0
  %v943 = vadd.f32 %v939, %v942
  %vm944 = vcmp.eq.s32.totalorder %v936, 2
  %v945 = vstv %s266
  %v946 = vsel %vm944, %v945, 0.0
  %v947 = vadd.f32 %v943, %v946
  %vm948 = vcmp.eq.s32.totalorder %v936, 3
  %v949 = vstv %s931
  %v950 = vsel %vm948, %v949, 0.0
  %v951 = vadd.f32 %v947, %v950
  %vm952 = vcmask 24576
  %953 = vst.msk [vmem:[%s13] sm:$0x1] %vm952, %v951
  %v954 = vld [vmem:[%s10] sm:$0xff]
  %v955 = vld [vmem:[%s10 + $0x8] sm:$0xff]
  %v956 = vld [vmem:[%s10 + $0x10] sm:$0xff]
  %v957 = vld [vmem:[%s11] sm:$0xff]
  %v958 = vld [vmem:[%s11 + $0x8] sm:$0xff]
  %v959 = vld [vmem:[%s11 + $0x10] sm:$0xff]
  %v960 = vld [vmem:[%s8] sm:$0xff]
  %v961 = vld [vmem:[%s8 + $0x8] sm:$0xff]
  %v963 = vsel %vm53, %v960, 0
  %v966 = vsel %vm53, %v961, 0
  %968 = vmatprep.subr.mxu0 0.0
  %969 = vmatpush1.msra.mxu0 %v735
  %970 = vmatprep.subr.mxu0 0.0
  %971 = vmatpush1.msra.mxu0 %v736
  %972 = vmatprep.subr.mxu0 0.0
  %973 = vmatpush1.msra.mxu0 %v737
  %974 = vmatprep.subr.mxu0 0.0
  %975 = vmatpush1.msra.mxu0 0.0
  %976 = vmatprep.subr.mxu0 0.0
  %977 = vmatpush1.msra.mxu0 0.0
  %978 = vmatprep.subr.mxu0 0.0
  %979 = vmatpush1.msra.mxu0 0.0
  %980 = vmatprep.subr.mxu0 0.0
  %981 = vmatpush1.msra.mxu0 0.0
  %982 = vmatprep.subr.mxu0 0.0
  %983 = vmatpush1.msra.mxu0 0.0
  %984 = vmatprep.subr.mxu0 0.0
  %985 = vmatpush1.msra.mxu0 0.0
  %986 = vmatprep.subr.mxu0 0.0
  %987 = vmatpush1.msra.mxu0 0.0
  %988 = vmatprep.subr.mxu0 0.0
  %989 = vmatpush1.msra.mxu0 0.0
  %990 = vmatprep.subr.mxu0 0.0
  %991 = vmatpush1.msra.mxu0 0.0
  %992 = vmatprep.subr.mxu0 0.0
  %993 = vmatpush1.msra.mxu0 0.0
  %994 = vmatprep.subr.mxu0 0.0
  %995 = vmatpush1.msra.mxu0 0.0
  %996 = vmatprep.subr.mxu0 0.0
  %997 = vmatpush1.msra.mxu0 0.0
  %998 = vmatprep.subr.mxu0 0.0
  %999 = vmatpush1.msra.mxu0 0.0
  %1000 = vmatprep.subr.mxu0 0.0
  %1001 = vmatpush1.msra.mxu0 0.0
  %1002 = vmatprep.subr.mxu0 0.0
  %1003 = vmatpush1.msra.mxu0 0.0
  %1004 = vmatprep.subr.mxu0 0.0
  %1005 = vmatpush1.msra.mxu0 0.0
  %1006 = vmatprep.subr.mxu0 0.0
  %1007 = vmatpush1.msra.mxu0 0.0
  %1008 = vmatprep.subr.mxu0 0.0
  %1009 = vmatpush1.msra.mxu0 0.0
  %1010 = vmatprep.subr.mxu0 0.0
  %1011 = vmatpush1.msra.mxu0 0.0
  %1012 = vmatprep.subr.mxu0 0.0
  %1013 = vmatpush1.msra.mxu0 0.0
  %1014 = vmatprep.subr.mxu0 0.0
  %1015 = vmatpush1.msra.mxu0 0.0
  %1016 = vmatprep.subr.mxu0 0.0
  %1017 = vmatpush1.msra.mxu0 0.0
  %1018 = vmatprep.subr.mxu0 0.0
  %1019 = vmatpush1.msra.mxu0 0.0
  %1020 = vmatprep.subr.mxu0 0.0
  %1021 = vmatpush1.msra.mxu0 0.0
  %1022 = vmatprep.subr.mxu0 0.0
  %1023 = vmatpush1.msra.mxu0 0.0
  %1024 = vmatprep.subr.mxu0 0.0
  %1025 = vmatpush1.msra.mxu0 0.0
  %1026 = vmatprep.subr.mxu0 0.0
  %1027 = vmatpush1.msra.mxu0 0.0
  %1028 = vmatprep.subr.mxu0 0.0
  %1029 = vmatpush1.msra.mxu0 0.0
  %1030 = vmatprep.subr.mxu0 0.0
  %1031 = vmatpush1.msra.mxu0 0.0
  %1032 = vmatprep.mubr.f32.mxu0 0.0
  %1033 = vmatmul.mubr.f32.gmra.mrb[0].mxu0 %v963
  %v1034 = vpop.f32.mrb[0].mxu0
  %v1035 = vadd.f32 0.0, %v1034
  %v1036 = vpop.f32.mrb[0].mxu0
  %1037 = vmatprep.mubr.f32.mxu0 0.0
  %1038 = vmatmul.mubr.f32.gmra.mrb[0].mxu0 %v966
  %v1039 = vpop.f32.mrb[0].mxu0
  %v1040 = vadd.f32 0.0, %v1039
  %v1041 = vpop.f32.mrb[0].mxu0
  %1042 = vdwg.mxu0
  %v1043 = vld [vmem:[%s9] sm:$0xff]
  %v1044 = vld [vmem:[%s9 + $0x8] sm:$0xff]
  %v1046 = vsel %vm53, %v1043, 0
  %v1049 = vsel %vm53, %v1044, 0
  %1051 = vmatprep.subr.mxu0 0.0
  %1052 = vmatpush1.msra.mxu0 %v735
  %1053 = vmatprep.subr.mxu0 0.0
  %1054 = vmatpush1.msra.mxu0 %v736
  %1055 = vmatprep.subr.mxu0 0.0
  %1056 = vmatpush1.msra.mxu0 %v737
  %1057 = vmatprep.subr.mxu0 0.0
  %1058 = vmatpush1.msra.mxu0 0.0
  %1059 = vmatprep.subr.mxu0 0.0
  %1060 = vmatpush1.msra.mxu0 0.0
  %1061 = vmatprep.subr.mxu0 0.0
  %1062 = vmatpush1.msra.mxu0 0.0
  %1063 = vmatprep.subr.mxu0 0.0
  %1064 = vmatpush1.msra.mxu0 0.0
  %1065 = vmatprep.subr.mxu0 0.0
  %1066 = vmatpush1.msra.mxu0 0.0
  %1067 = vmatprep.subr.mxu0 0.0
  %1068 = vmatpush1.msra.mxu0 0.0
  %1069 = vmatprep.subr.mxu0 0.0
  %1070 = vmatpush1.msra.mxu0 0.0
  %1071 = vmatprep.subr.mxu0 0.0
  %1072 = vmatpush1.msra.mxu0 0.0
  %1073 = vmatprep.subr.mxu0 0.0
  %1074 = vmatpush1.msra.mxu0 0.0
  %1075 = vmatprep.subr.mxu0 0.0
  %1076 = vmatpush1.msra.mxu0 0.0
  %1077 = vmatprep.subr.mxu0 0.0
  %1078 = vmatpush1.msra.mxu0 0.0
  %1079 = vmatprep.subr.mxu0 0.0
  %1080 = vmatpush1.msra.mxu0 0.0
  %1081 = vmatprep.subr.mxu0 0.0
  %1082 = vmatpush1.msra.mxu0 0.0
  %1083 = vmatprep.subr.mxu0 0.0
  %1084 = vmatpush1.msra.mxu0 0.0
  %1085 = vmatprep.subr.mxu0 0.0
  %1086 = vmatpush1.msra.mxu0 0.0
  %1087 = vmatprep.subr.mxu0 0.0
  %1088 = vmatpush1.msra.mxu0 0.0
  %1089 = vmatprep.subr.mxu0 0.0
  %1090 = vmatpush1.msra.mxu0 0.0
  %1091 = vmatprep.subr.mxu0 0.0
  %1092 = vmatpush1.msra.mxu0 0.0
  %1093 = vmatprep.subr.mxu0 0.0
  %1094 = vmatpush1.msra.mxu0 0.0
  %1095 = vmatprep.subr.mxu0 0.0
  %1096 = vmatpush1.msra.mxu0 0.0
  %1097 = vmatprep.subr.mxu0 0.0
  %1098 = vmatpush1.msra.mxu0 0.0
  %1099 = vmatprep.subr.mxu0 0.0
  %1100 = vmatpush1.msra.mxu0 0.0
  %1101 = vmatprep.subr.mxu0 0.0
  %1102 = vmatpush1.msra.mxu0 0.0
  %1103 = vmatprep.subr.mxu0 0.0
  %1104 = vmatpush1.msra.mxu0 0.0
  %1105 = vmatprep.subr.mxu0 0.0
  %1106 = vmatpush1.msra.mxu0 0.0
  %1107 = vmatprep.subr.mxu0 0.0
  %1108 = vmatpush1.msra.mxu0 0.0
  %1109 = vmatprep.subr.mxu0 0.0
  %1110 = vmatpush1.msra.mxu0 0.0
  %1111 = vmatprep.subr.mxu0 0.0
  %1112 = vmatpush1.msra.mxu0 0.0
  %1113 = vmatprep.subr.mxu0 0.0
  %1114 = vmatpush1.msra.mxu0 0.0
  %1115 = vmatprep.mubr.f32.mxu0 0.0
  %1116 = vmatmul.mubr.f32.gmra.mrb[0].mxu0 %v1046
  %v1117 = vpop.f32.mrb[0].mxu0
  %v1118 = vadd.f32 0.0, %v1117
  %v1119 = vpop.f32.mrb[0].mxu0
  %1120 = vmatprep.mubr.f32.mxu0 0.0
  %1121 = vmatmul.mubr.f32.gmra.mrb[0].mxu0 %v1049
  %v1122 = vpop.f32.mrb[0].mxu0
  %v1123 = vadd.f32 0.0, %v1122
  %v1124 = vpop.f32.mrb[0].mxu0
  %1125 = vdwg.mxu0
  %v1127 = vsel %vm146, %v1118, 0
  %v1130 = vsel %vm146, %v1123, 0
  %1132 = vmatprep.subr.mxu0 0.0
  %1133 = vmatpush1.msra.mxu0 %v957
  %1134 = vmatprep.subr.mxu0 0.0
  %1135 = vmatpush1.msra.mxu0 0.0
  %1136 = vmatprep.subr.mxu0 0.0
  %1137 = vmatpush1.msra.mxu0 0.0
  %1138 = vmatprep.subr.mxu0 0.0
  %1139 = vmatpush1.msra.mxu0 0.0
  %1140 = vmatprep.subr.mxu0 0.0
  %1141 = vmatpush1.msra.mxu0 0.0
  %1142 = vmatprep.subr.mxu0 0.0
  %1143 = vmatpush1.msra.mxu0 0.0
  %1144 = vmatprep.subr.mxu0 0.0
  %1145 = vmatpush1.msra.mxu0 0.0
  %1146 = vmatprep.subr.mxu0 0.0
  %1147 = vmatpush1.msra.mxu0 0.0
  %1148 = vmatprep.subr.mxu0 0.0
  %1149 = vmatpush1.msra.mxu0 0.0
  %1150 = vmatprep.subr.mxu0 0.0
  %1151 = vmatpush1.msra.mxu0 0.0
  %1152 = vmatprep.subr.mxu0 0.0
  %1153 = vmatpush1.msra.mxu0 0.0
  %1154 = vmatprep.subr.mxu0 0.0
  %1155 = vmatpush1.msra.mxu0 0.0
  %1156 = vmatprep.subr.mxu0 0.0
  %1157 = vmatpush1.msra.mxu0 0.0
  %1158 = vmatprep.subr.mxu0 0.0
  %1159 = vmatpush1.msra.mxu0 0.0
  %1160 = vmatprep.subr.mxu0 0.0
  %1161 = vmatpush1.msra.mxu0 0.0
  %1162 = vmatprep.subr.mxu0 0.0
  %1163 = vmatpush1.msra.mxu0 0.0
  %1164 = vmatprep.subr.mxu0 0.0
  %1165 = vmatpush1.msra.mxu0 0.0
  %1166 = vmatprep.subr.mxu0 0.0
  %1167 = vmatpush1.msra.mxu0 0.0
  %1168 = vmatprep.subr.mxu0 0.0
  %1169 = vmatpush1.msra.mxu0 0.0
  %1170 = vmatprep.subr.mxu0 0.0
  %1171 = vmatpush1.msra.mxu0 0.0
  %1172 = vmatprep.subr.mxu0 0.0
  %1173 = vmatpush1.msra.mxu0 0.0
  %1174 = vmatprep.subr.mxu0 0.0
  %1175 = vmatpush1.msra.mxu0 0.0
  %1176 = vmatprep.subr.mxu0 0.0
  %1177 = vmatpush1.msra.mxu0 0.0
  %1178 = vmatprep.subr.mxu0 0.0
  %1179 = vmatpush1.msra.mxu0 0.0
  %1180 = vmatprep.subr.mxu0 0.0
  %1181 = vmatpush1.msra.mxu0 0.0
  %1182 = vmatprep.subr.mxu0 0.0
  %1183 = vmatpush1.msra.mxu0 0.0
  %1184 = vmatprep.subr.mxu0 0.0
  %1185 = vmatpush1.msra.mxu0 0.0
  %1186 = vmatprep.subr.mxu0 0.0
  %1187 = vmatpush1.msra.mxu0 0.0
  %1188 = vmatprep.subr.mxu0 0.0
  %1189 = vmatpush1.msra.mxu0 0.0
  %1190 = vmatprep.subr.mxu0 0.0
  %1191 = vmatpush1.msra.mxu0 0.0
  %1192 = vmatprep.subr.mxu0 0.0
  %1193 = vmatpush1.msra.mxu0 0.0
  %1194 = vmatprep.subr.mxu0 0.0
  %1195 = vmatpush1.msra.mxu0 0.0
  %1196 = vmatprep.mubr.f32.mxu0 0.0
  %1197 = vmatmul.mubr.f32.gmra.mrb[0].mxu0 %v1127
  %v1198 = vpop.f32.mrb[0].mxu0
  %v1199 = vadd.f32 0.0, %v1198
  %v1200 = vpop.f32.mrb[0].mxu0
  %1201 = vmatprep.mubr.f32.mxu0 0.0
  %1202 = vmatmul.mubr.f32.gmra.mrb[0].mxu0 %v1130
  %v1203 = vpop.f32.mrb[0].mxu0
  %v1204 = vadd.f32 0.0, %v1203
  %v1205 = vpop.f32.mrb[0].mxu0
  %1206 = vdwg.mxu0
  %v1208 = vsel %vm146, %v1035, 0
  %v1211 = vsel %vm146, %v1040, 0
  %1213 = vmatprep.subr.mxu0 0.0
  %1214 = vmatpush1.msra.mxu0 %v954
  %1215 = vmatprep.subr.mxu0 0.0
  %1216 = vmatpush1.msra.mxu0 0.0
  %1217 = vmatprep.subr.mxu0 0.0
  %1218 = vmatpush1.msra.mxu0 0.0
  %1219 = vmatprep.subr.mxu0 0.0
  %1220 = vmatpush1.msra.mxu0 0.0
  %1221 = vmatprep.subr.mxu0 0.0
  %1222 = vmatpush1.msra.mxu0 0.0
  %1223 = vmatprep.subr.mxu0 0.0
  %1224 = vmatpush1.msra.mxu0 0.0
  %1225 = vmatprep.subr.mxu0 0.0
  %1226 = vmatpush1.msra.mxu0 0.0
  %1227 = vmatprep.subr.mxu0 0.0
  %1228 = vmatpush1.msra.mxu0 0.0
  %1229 = vmatprep.subr.mxu0 0.0
  %1230 = vmatpush1.msra.mxu0 0.0
  %1231 = vmatprep.subr.mxu0 0.0
  %1232 = vmatpush1.msra.mxu0 0.0
  %1233 = vmatprep.subr.mxu0 0.0
  %1234 = vmatpush1.msra.mxu0 0.0
  %1235 = vmatprep.subr.mxu0 0.0
  %1236 = vmatpush1.msra.mxu0 0.0
  %1237 = vmatprep.subr.mxu0 0.0
  %1238 = vmatpush1.msra.mxu0 0.0
  %1239 = vmatprep.subr.mxu0 0.0
  %1240 = vmatpush1.msra.mxu0 0.0
  %1241 = vmatprep.subr.mxu0 0.0
  %1242 = vmatpush1.msra.mxu0 0.0
  %1243 = vmatprep.subr.mxu0 0.0
  %1244 = vmatpush1.msra.mxu0 0.0
  %1245 = vmatprep.subr.mxu0 0.0
  %1246 = vmatpush1.msra.mxu0 0.0
  %1247 = vmatprep.subr.mxu0 0.0
  %1248 = vmatpush1.msra.mxu0 0.0
  %1249 = vmatprep.subr.mxu0 0.0
  %1250 = vmatpush1.msra.mxu0 0.0
  %1251 = vmatprep.subr.mxu0 0.0
  %1252 = vmatpush1.msra.mxu0 0.0
  %1253 = vmatprep.subr.mxu0 0.0
  %1254 = vmatpush1.msra.mxu0 0.0
  %1255 = vmatprep.subr.mxu0 0.0
  %1256 = vmatpush1.msra.mxu0 0.0
  %1257 = vmatprep.subr.mxu0 0.0
  %1258 = vmatpush1.msra.mxu0 0.0
  %1259 = vmatprep.subr.mxu0 0.0
  %1260 = vmatpush1.msra.mxu0 0.0
  %1261 = vmatprep.subr.mxu0 0.0
  %1262 = vmatpush1.msra.mxu0 0.0
  %1263 = vmatprep.subr.mxu0 0.0
  %1264 = vmatpush1.msra.mxu0 0.0
  %1265 = vmatprep.subr.mxu0 0.0
  %1266 = vmatpush1.msra.mxu0 0.0
  %1267 = vmatprep.subr.mxu0 0.0
  %1268 = vmatpush1.msra.mxu0 0.0
  %1269 = vmatprep.subr.mxu0 0.0
  %1270 = vmatpush1.msra.mxu0 0.0
  %1271 = vmatprep.subr.mxu0 0.0
  %1272 = vmatpush1.msra.mxu0 0.0
  %1273 = vmatprep.subr.mxu0 0.0
  %1274 = vmatpush1.msra.mxu0 0.0
  %1275 = vmatprep.subr.mxu0 0.0
  %1276 = vmatpush1.msra.mxu0 0.0
  %1277 = vmatprep.mubr.f32.mxu0 0.0
  %1278 = vmatmul.mubr.f32.gmra.mrb[0].mxu0 %v1208
  %v1279 = vpop.f32.mrb[0].mxu0
  %v1280 = vadd.f32 %v1199, %v1279
  %v1281 = vpop.f32.mrb[0].mxu0
  %1282 = vmatprep.mubr.f32.mxu0 0.0
  %1283 = vmatmul.mubr.f32.gmra.mrb[0].mxu0 %v1211
  %v1284 = vpop.f32.mrb[0].mxu0
  %v1285 = vadd.f32 %v1204, %v1284
  %v1286 = vpop.f32.mrb[0].mxu0
  %1287 = vdwg.mxu0
  %s1288 = scalar_lea.vmem %s8, 16
  %v1289 = vld [vmem:[%s1288] sm:$0xff]
  %v1290 = vld [vmem:[%s1288 + $0x8] sm:$0xff]
  %v1292 = vsel %vm53, %v1289, 0
  %v1295 = vsel %vm53, %v1290, 0
  %1297 = vmatprep.subr.mxu0 0.0
  %1298 = vmatpush1.msra.mxu0 %v735
  %1299 = vmatprep.subr.mxu0 0.0
  %1300 = vmatpush1.msra.mxu0 %v736
  %1301 = vmatprep.subr.mxu0 0.0
  %1302 = vmatpush1.msra.mxu0 %v737
  %1303 = vmatprep.subr.mxu0 0.0
  %1304 = vmatpush1.msra.mxu0 0.0
  %1305 = vmatprep.subr.mxu0 0.0
  %1306 = vmatpush1.msra.mxu0 0.0
  %1307 = vmatprep.subr.mxu0 0.0
  %1308 = vmatpush1.msra.mxu0 0.0
  %1309 = vmatprep.subr.mxu0 0.0
  %1310 = vmatpush1.msra.mxu0 0.0
  %1311 = vmatprep.subr.mxu0 0.0
  %1312 = vmatpush1.msra.mxu0 0.0
  %1313 = vmatprep.subr.mxu0 0.0
  %1314 = vmatpush1.msra.mxu0 0.0
  %1315 = vmatprep.subr.mxu0 0.0
  %1316 = vmatpush1.msra.mxu0 0.0
  %1317 = vmatprep.subr.mxu0 0.0
  %1318 = vmatpush1.msra.mxu0 0.0
  %1319 = vmatprep.subr.mxu0 0.0
  %1320 = vmatpush1.msra.mxu0 0.0
  %1321 = vmatprep.subr.mxu0 0.0
  %1322 = vmatpush1.msra.mxu0 0.0
  %1323 = vmatprep.subr.mxu0 0.0
  %1324 = vmatpush1.msra.mxu0 0.0
  %1325 = vmatprep.subr.mxu0 0.0
  %1326 = vmatpush1.msra.mxu0 0.0
  %1327 = vmatprep.subr.mxu0 0.0
  %1328 = vmatpush1.msra.mxu0 0.0
  %1329 = vmatprep.subr.mxu0 0.0
  %1330 = vmatpush1.msra.mxu0 0.0
  %1331 = vmatprep.subr.mxu0 0.0
  %1332 = vmatpush1.msra.mxu0 0.0
  %1333 = vmatprep.subr.mxu0 0.0
  %1334 = vmatpush1.msra.mxu0 0.0
  %1335 = vmatprep.subr.mxu0 0.0
  %1336 = vmatpush1.msra.mxu0 0.0
  %1337 = vmatprep.subr.mxu0 0.0
  %1338 = vmatpush1.msra.mxu0 0.0
  %1339 = vmatprep.subr.mxu0 0.0
  %1340 = vmatpush1.msra.mxu0 0.0
  %1341 = vmatprep.subr.mxu0 0.0
  %1342 = vmatpush1.msra.mxu0 0.0
  %1343 = vmatprep.subr.mxu0 0.0
  %1344 = vmatpush1.msra.mxu0 0.0
  %1345 = vmatprep.subr.mxu0 0.0
  %1346 = vmatpush1.msra.mxu0 0.0
  %1347 = vmatprep.subr.mxu0 0.0
  %1348 = vmatpush1.msra.mxu0 0.0
  %1349 = vmatprep.subr.mxu0 0.0
  %1350 = vmatpush1.msra.mxu0 0.0
  %1351 = vmatprep.subr.mxu0 0.0
  %1352 = vmatpush1.msra.mxu0 0.0
  %1353 = vmatprep.subr.mxu0 0.0
  %1354 = vmatpush1.msra.mxu0 0.0
  %1355 = vmatprep.subr.mxu0 0.0
  %1356 = vmatpush1.msra.mxu0 0.0
  %1357 = vmatprep.subr.mxu0 0.0
  %1358 = vmatpush1.msra.mxu0 0.0
  %1359 = vmatprep.subr.mxu0 0.0
  %1360 = vmatpush1.msra.mxu0 0.0
  %1361 = vmatprep.mubr.f32.mxu0 0.0
  %1362 = vmatmul.mubr.f32.gmra.mrb[0].mxu0 %v1292
  %v1363 = vpop.f32.mrb[0].mxu0
  %v1364 = vadd.f32 0.0, %v1363
  %v1365 = vpop.f32.mrb[0].mxu0
  %1366 = vmatprep.mubr.f32.mxu0 0.0
  %1367 = vmatmul.mubr.f32.gmra.mrb[0].mxu0 %v1295
  %v1368 = vpop.f32.mrb[0].mxu0
  %v1369 = vadd.f32 0.0, %v1368
  %v1370 = vpop.f32.mrb[0].mxu0
  %1371 = vdwg.mxu0
  %s1372 = scalar_lea.vmem %s9, 16
  %v1373 = vld [vmem:[%s1372] sm:$0xff]
  %v1374 = vld [vmem:[%s1372 + $0x8] sm:$0xff]
  %v1376 = vsel %vm53, %v1373, 0
  %v1379 = vsel %vm53, %v1374, 0
  %1381 = vmatprep.subr.mxu0 0.0
  %1382 = vmatpush1.msra.mxu0 %v735
  %1383 = vmatprep.subr.mxu0 0.0
  %1384 = vmatpush1.msra.mxu0 %v736
  %1385 = vmatprep.subr.mxu0 0.0
  %1386 = vmatpush1.msra.mxu0 %v737
  %1387 = vmatprep.subr.mxu0 0.0
  %1388 = vmatpush1.msra.mxu0 0.0
  %1389 = vmatprep.subr.mxu0 0.0
  %1390 = vmatpush1.msra.mxu0 0.0
  %1391 = vmatprep.subr.mxu0 0.0
  %1392 = vmatpush1.msra.mxu0 0.0
  %1393 = vmatprep.subr.mxu0 0.0
  %1394 = vmatpush1.msra.mxu0 0.0
  %1395 = vmatprep.subr.mxu0 0.0
  %1396 = vmatpush1.msra.mxu0 0.0
  %1397 = vmatprep.subr.mxu0 0.0
  %1398 = vmatpush1.msra.mxu0 0.0
  %1399 = vmatprep.subr.mxu0 0.0
  %1400 = vmatpush1.msra.mxu0 0.0
  %1401 = vmatprep.subr.mxu0 0.0
  %1402 = vmatpush1.msra.mxu0 0.0
  %1403 = vmatprep.subr.mxu0 0.0
  %1404 = vmatpush1.msra.mxu0 0.0
  %1405 = vmatprep.subr.mxu0 0.0
  %1406 = vmatpush1.msra.mxu0 0.0
  %1407 = vmatprep.subr.mxu0 0.0
  %1408 = vmatpush1.msra.mxu0 0.0
  %1409 = vmatprep.subr.mxu0 0.0
  %1410 = vmatpush1.msra.mxu0 0.0
  %1411 = vmatprep.subr.mxu0 0.0
  %1412 = vmatpush1.msra.mxu0 0.0
  %1413 = vmatprep.subr.mxu0 0.0
  %1414 = vmatpush1.msra.mxu0 0.0
  %1415 = vmatprep.subr.mxu0 0.0
  %1416 = vmatpush1.msra.mxu0 0.0
  %1417 = vmatprep.subr.mxu0 0.0
  %1418 = vmatpush1.msra.mxu0 0.0
  %1419 = vmatprep.subr.mxu0 0.0
  %1420 = vmatpush1.msra.mxu0 0.0
  %1421 = vmatprep.subr.mxu0 0.0
  %1422 = vmatpush1.msra.mxu0 0.0
  %1423 = vmatprep.subr.mxu0 0.0
  %1424 = vmatpush1.msra.mxu0 0.0
  %1425 = vmatprep.subr.mxu0 0.0
  %1426 = vmatpush1.msra.mxu0 0.0
  %1427 = vmatprep.subr.mxu0 0.0
  %1428 = vmatpush1.msra.mxu0 0.0
  %1429 = vmatprep.subr.mxu0 0.0
  %1430 = vmatpush1.msra.mxu0 0.0
  %1431 = vmatprep.subr.mxu0 0.0
  %1432 = vmatpush1.msra.mxu0 0.0
  %1433 = vmatprep.subr.mxu0 0.0
  %1434 = vmatpush1.msra.mxu0 0.0
  %1435 = vmatprep.subr.mxu0 0.0
  %1436 = vmatpush1.msra.mxu0 0.0
  %1437 = vmatprep.subr.mxu0 0.0
  %1438 = vmatpush1.msra.mxu0 0.0
  %1439 = vmatprep.subr.mxu0 0.0
  %1440 = vmatpush1.msra.mxu0 0.0
  %1441 = vmatprep.subr.mxu0 0.0
  %1442 = vmatpush1.msra.mxu0 0.0
  %1443 = vmatprep.subr.mxu0 0.0
  %1444 = vmatpush1.msra.mxu0 0.0
  %1445 = vmatprep.mubr.f32.mxu0 0.0
  %1446 = vmatmul.mubr.f32.gmra.mrb[0].mxu0 %v1376
  %v1447 = vpop.f32.mrb[0].mxu0
  %v1448 = vadd.f32 0.0, %v1447
  %v1449 = vpop.f32.mrb[0].mxu0
  %1450 = vmatprep.mubr.f32.mxu0 0.0
  %1451 = vmatmul.mubr.f32.gmra.mrb[0].mxu0 %v1379
  %v1452 = vpop.f32.mrb[0].mxu0
  %v1453 = vadd.f32 0.0, %v1452
  %v1454 = vpop.f32.mrb[0].mxu0
  %1455 = vdwg.mxu0
  %v1457 = vsel %vm146, %v1448, 0
  %v1460 = vsel %vm146, %v1453, 0
  %1462 = vmatprep.subr.mxu0 0.0
  %1463 = vmatpush1.msra.mxu0 %v958
  %1464 = vmatprep.subr.mxu0 0.0
  %1465 = vmatpush1.msra.mxu0 0.0
  %1466 = vmatprep.subr.mxu0 0.0
  %1467 = vmatpush1.msra.mxu0 0.0
  %1468 = vmatprep.subr.mxu0 0.0
  %1469 = vmatpush1.msra.mxu0 0.0
  %1470 = vmatprep.subr.mxu0 0.0
  %1471 = vmatpush1.msra.mxu0 0.0
  %1472 = vmatprep.subr.mxu0 0.0
  %1473 = vmatpush1.msra.mxu0 0.0
  %1474 = vmatprep.subr.mxu0 0.0
  %1475 = vmatpush1.msra.mxu0 0.0
  %1476 = vmatprep.subr.mxu0 0.0
  %1477 = vmatpush1.msra.mxu0 0.0
  %1478 = vmatprep.subr.mxu0 0.0
  %1479 = vmatpush1.msra.mxu0 0.0
  %1480 = vmatprep.subr.mxu0 0.0
  %1481 = vmatpush1.msra.mxu0 0.0
  %1482 = vmatprep.subr.mxu0 0.0
  %1483 = vmatpush1.msra.mxu0 0.0
  %1484 = vmatprep.subr.mxu0 0.0
  %1485 = vmatpush1.msra.mxu0 0.0
  %1486 = vmatprep.subr.mxu0 0.0
  %1487 = vmatpush1.msra.mxu0 0.0
  %1488 = vmatprep.subr.mxu0 0.0
  %1489 = vmatpush1.msra.mxu0 0.0
  %1490 = vmatprep.subr.mxu0 0.0
  %1491 = vmatpush1.msra.mxu0 0.0
  %1492 = vmatprep.subr.mxu0 0.0
  %1493 = vmatpush1.msra.mxu0 0.0
  %1494 = vmatprep.subr.mxu0 0.0
  %1495 = vmatpush1.msra.mxu0 0.0
  %1496 = vmatprep.subr.mxu0 0.0
  %1497 = vmatpush1.msra.mxu0 0.0
  %1498 = vmatprep.subr.mxu0 0.0
  %1499 = vmatpush1.msra.mxu0 0.0
  %1500 = vmatprep.subr.mxu0 0.0
  %1501 = vmatpush1.msra.mxu0 0.0
  %1502 = vmatprep.subr.mxu0 0.0
  %1503 = vmatpush1.msra.mxu0 0.0
  %1504 = vmatprep.subr.mxu0 0.0
  %1505 = vmatpush1.msra.mxu0 0.0
  %1506 = vmatprep.subr.mxu0 0.0
  %1507 = vmatpush1.msra.mxu0 0.0
  %1508 = vmatprep.subr.mxu0 0.0
  %1509 = vmatpush1.msra.mxu0 0.0
  %1510 = vmatprep.subr.mxu0 0.0
  %1511 = vmatpush1.msra.mxu0 0.0
  %1512 = vmatprep.subr.mxu0 0.0
  %1513 = vmatpush1.msra.mxu0 0.0
  %1514 = vmatprep.subr.mxu0 0.0
  %1515 = vmatpush1.msra.mxu0 0.0
  %1516 = vmatprep.subr.mxu0 0.0
  %1517 = vmatpush1.msra.mxu0 0.0
  %1518 = vmatprep.subr.mxu0 0.0
  %1519 = vmatpush1.msra.mxu0 0.0
  %1520 = vmatprep.subr.mxu0 0.0
  %1521 = vmatpush1.msra.mxu0 0.0
  %1522 = vmatprep.subr.mxu0 0.0
  %1523 = vmatpush1.msra.mxu0 0.0
  %1524 = vmatprep.subr.mxu0 0.0
  %1525 = vmatpush1.msra.mxu0 0.0
  %1526 = vmatprep.mubr.f32.mxu0 0.0
  %1527 = vmatmul.mubr.f32.gmra.mrb[0].mxu0 %v1457
  %v1528 = vpop.f32.mrb[0].mxu0
  %v1529 = vadd.f32 0.0, %v1528
  %v1530 = vpop.f32.mrb[0].mxu0
  %1531 = vmatprep.mubr.f32.mxu0 0.0
  %1532 = vmatmul.mubr.f32.gmra.mrb[0].mxu0 %v1460
  %v1533 = vpop.f32.mrb[0].mxu0
  %v1534 = vadd.f32 0.0, %v1533
  %v1535 = vpop.f32.mrb[0].mxu0
  %1536 = vdwg.mxu0
  %v1538 = vsel %vm146, %v1364, 0
  %v1541 = vsel %vm146, %v1369, 0
  %1543 = vmatprep.subr.mxu0 0.0
  %1544 = vmatpush1.msra.mxu0 %v955
  %1545 = vmatprep.subr.mxu0 0.0
  %1546 = vmatpush1.msra.mxu0 0.0
  %1547 = vmatprep.subr.mxu0 0.0
  %1548 = vmatpush1.msra.mxu0 0.0
  %1549 = vmatprep.subr.mxu0 0.0
  %1550 = vmatpush1.msra.mxu0 0.0
  %1551 = vmatprep.subr.mxu0 0.0
  %1552 = vmatpush1.msra.mxu0 0.0
  %1553 = vmatprep.subr.mxu0 0.0
  %1554 = vmatpush1.msra.mxu0 0.0
  %1555 = vmatprep.subr.mxu0 0.0
  %1556 = vmatpush1.msra.mxu0 0.0
  %1557 = vmatprep.subr.mxu0 0.0
  %1558 = vmatpush1.msra.mxu0 0.0
  %1559 = vmatprep.subr.mxu0 0.0
  %1560 = vmatpush1.msra.mxu0 0.0
  %1561 = vmatprep.subr.mxu0 0.0
  %1562 = vmatpush1.msra.mxu0 0.0
  %1563 = vmatprep.subr.mxu0 0.0
  %1564 = vmatpush1.msra.mxu0 0.0
  %1565 = vmatprep.subr.mxu0 0.0
  %1566 = vmatpush1.msra.mxu0 0.0
  %1567 = vmatprep.subr.mxu0 0.0
  %1568 = vmatpush1.msra.mxu0 0.0
  %1569 = vmatprep.subr.mxu0 0.0
  %1570 = vmatpush1.msra.mxu0 0.0
  %1571 = vmatprep.subr.mxu0 0.0
  %1572 = vmatpush1.msra.mxu0 0.0
  %1573 = vmatprep.subr.mxu0 0.0
  %1574 = vmatpush1.msra.mxu0 0.0
  %1575 = vmatprep.subr.mxu0 0.0
  %1576 = vmatpush1.msra.mxu0 0.0
  %1577 = vmatprep.subr.mxu0 0.0
  %1578 = vmatpush1.msra.mxu0 0.0
  %1579 = vmatprep.subr.mxu0 0.0
  %1580 = vmatpush1.msra.mxu0 0.0
  %1581 = vmatprep.subr.mxu0 0.0
  %1582 = vmatpush1.msra.mxu0 0.0
  %1583 = vmatprep.subr.mxu0 0.0
  %1584 = vmatpush1.msra.mxu0 0.0
  %1585 = vmatprep.subr.mxu0 0.0
  %1586 = vmatpush1.msra.mxu0 0.0
  %1587 = vmatprep.subr.mxu0 0.0
  %1588 = vmatpush1.msra.mxu0 0.0
  %1589 = vmatprep.subr.mxu0 0.0
  %1590 = vmatpush1.msra.mxu0 0.0
  %1591 = vmatprep.subr.mxu0 0.0
  %1592 = vmatpush1.msra.mxu0 0.0
  %1593 = vmatprep.subr.mxu0 0.0
  %1594 = vmatpush1.msra.mxu0 0.0
  %1595 = vmatprep.subr.mxu0 0.0
  %1596 = vmatpush1.msra.mxu0 0.0
  %1597 = vmatprep.subr.mxu0 0.0
  %1598 = vmatpush1.msra.mxu0 0.0
  %1599 = vmatprep.subr.mxu0 0.0
  %1600 = vmatpush1.msra.mxu0 0.0
  %1601 = vmatprep.subr.mxu0 0.0
  %1602 = vmatpush1.msra.mxu0 0.0
  %1603 = vmatprep.subr.mxu0 0.0
  %1604 = vmatpush1.msra.mxu0 0.0
  %1605 = vmatprep.subr.mxu0 0.0
  %1606 = vmatpush1.msra.mxu0 0.0
  %1607 = vmatprep.mubr.f32.mxu0 0.0
  %1608 = vmatmul.mubr.f32.gmra.mrb[0].mxu0 %v1538
  %v1609 = vpop.f32.mrb[0].mxu0
  %v1610 = vadd.f32 %v1529, %v1609
  %v1611 = vpop.f32.mrb[0].mxu0
  %1612 = vmatprep.mubr.f32.mxu0 0.0
  %1613 = vmatmul.mubr.f32.gmra.mrb[0].mxu0 %v1541
  %v1614 = vpop.f32.mrb[0].mxu0
  %v1615 = vadd.f32 %v1534, %v1614
  %v1616 = vpop.f32.mrb[0].mxu0
  %1617 = vdwg.mxu0
  %v1618 = vadd.f32 %v1280, %v1610
  %v1619 = vadd.f32 %v1285, %v1615
  %s1620 = scalar_lea.vmem %s8, 32
  %v1621 = vld [vmem:[%s1620] sm:$0xff]
  %v1622 = vld [vmem:[%s1620 + $0x8] sm:$0xff]
  %v1624 = vsel %vm53, %v1621, 0
  %v1627 = vsel %vm53, %v1622, 0
  %1629 = vmatprep.subr.mxu0 0.0
  %1630 = vmatpush1.msra.mxu0 %v735
  %1631 = vmatprep.subr.mxu0 0.0
  %1632 = vmatpush1.msra.mxu0 %v736
  %1633 = vmatprep.subr.mxu0 0.0
  %1634 = vmatpush1.msra.mxu0 %v737
  %1635 = vmatprep.subr.mxu0 0.0
  %1636 = vmatpush1.msra.mxu0 0.0
  %1637 = vmatprep.subr.mxu0 0.0
  %1638 = vmatpush1.msra.mxu0 0.0
  %1639 = vmatprep.subr.mxu0 0.0
  %1640 = vmatpush1.msra.mxu0 0.0
  %1641 = vmatprep.subr.mxu0 0.0
  %1642 = vmatpush1.msra.mxu0 0.0
  %1643 = vmatprep.subr.mxu0 0.0
  %1644 = vmatpush1.msra.mxu0 0.0
  %1645 = vmatprep.subr.mxu0 0.0
  %1646 = vmatpush1.msra.mxu0 0.0
  %1647 = vmatprep.subr.mxu0 0.0
  %1648 = vmatpush1.msra.mxu0 0.0
  %1649 = vmatprep.subr.mxu0 0.0
  %1650 = vmatpush1.msra.mxu0 0.0
  %1651 = vmatprep.subr.mxu0 0.0
  %1652 = vmatpush1.msra.mxu0 0.0
  %1653 = vmatprep.subr.mxu0 0.0
  %1654 = vmatpush1.msra.mxu0 0.0
  %1655 = vmatprep.subr.mxu0 0.0
  %1656 = vmatpush1.msra.mxu0 0.0
  %1657 = vmatprep.subr.mxu0 0.0
  %1658 = vmatpush1.msra.mxu0 0.0
  %1659 = vmatprep.subr.mxu0 0.0
  %1660 = vmatpush1.msra.mxu0 0.0
  %1661 = vmatprep.subr.mxu0 0.0
  %1662 = vmatpush1.msra.mxu0 0.0
  %1663 = vmatprep.subr.mxu0 0.0
  %1664 = vmatpush1.msra.mxu0 0.0
  %1665 = vmatprep.subr.mxu0 0.0
  %1666 = vmatpush1.msra.mxu0 0.0
  %1667 = vmatprep.subr.mxu0 0.0
  %1668 = vmatpush1.msra.mxu0 0.0
  %1669 = vmatprep.subr.mxu0 0.0
  %1670 = vmatpush1.msra.mxu0 0.0
  %1671 = vmatprep.subr.mxu0 0.0
  %1672 = vmatpush1.msra.mxu0 0.0
  %1673 = vmatprep.subr.mxu0 0.0
  %1674 = vmatpush1.msra.mxu0 0.0
  %1675 = vmatprep.subr.mxu0 0.0
  %1676 = vmatpush1.msra.mxu0 0.0
  %1677 = vmatprep.subr.mxu0 0.0
  %1678 = vmatpush1.msra.mxu0 0.0
  %1679 = vmatprep.subr.mxu0 0.0
  %1680 = vmatpush1.msra.mxu0 0.0
  %1681 = vmatprep.subr.mxu0 0.0
  %1682 = vmatpush1.msra.mxu0 0.0
  %1683 = vmatprep.subr.mxu0 0.0
  %1684 = vmatpush1.msra.mxu0 0.0
  %1685 = vmatprep.subr.mxu0 0.0
  %1686 = vmatpush1.msra.mxu0 0.0
  %1687 = vmatprep.subr.mxu0 0.0
  %1688 = vmatpush1.msra.mxu0 0.0
  %1689 = vmatprep.subr.mxu0 0.0
  %1690 = vmatpush1.msra.mxu0 0.0
  %1691 = vmatprep.subr.mxu0 0.0
  %1692 = vmatpush1.msra.mxu0 0.0
  %1693 = vmatprep.mubr.f32.mxu0 0.0
  %1694 = vmatmul.mubr.f32.gmra.mrb[0].mxu0 %v1624
  %v1695 = vpop.f32.mrb[0].mxu0
  %v1696 = vadd.f32 0.0, %v1695
  %v1697 = vpop.f32.mrb[0].mxu0
  %1698 = vmatprep.mubr.f32.mxu0 0.0
  %1699 = vmatmul.mubr.f32.gmra.mrb[0].mxu0 %v1627
  %v1700 = vpop.f32.mrb[0].mxu0
  %v1701 = vadd.f32 0.0, %v1700
  %v1702 = vpop.f32.mrb[0].mxu0
  %1703 = vdwg.mxu0
  %s1704 = scalar_lea.vmem %s9, 32
  %v1705 = vld [vmem:[%s1704] sm:$0xff]
  %v1706 = vld [vmem:[%s1704 + $0x8] sm:$0xff]
  %v1708 = vsel %vm53, %v1705, 0
  %v1711 = vsel %vm53, %v1706, 0
  %1713 = vmatprep.subr.mxu0 0.0
  %1714 = vmatpush1.msra.mxu0 %v735
  %1715 = vmatprep.subr.mxu0 0.0
  %1716 = vmatpush1.msra.mxu0 %v736
  %1717 = vmatprep.subr.mxu0 0.0
  %1718 = vmatpush1.msra.mxu0 %v737
  %1719 = vmatprep.subr.mxu0 0.0
  %1720 = vmatpush1.msra.mxu0 0.0
  %1721 = vmatprep.subr.mxu0 0.0
  %1722 = vmatpush1.msra.mxu0 0.0
  %1723 = vmatprep.subr.mxu0 0.0
  %1724 = vmatpush1.msra.mxu0 0.0
  %1725 = vmatprep.subr.mxu0 0.0
  %1726 = vmatpush1.msra.mxu0 0.0
  %1727 = vmatprep.subr.mxu0 0.0
  %1728 = vmatpush1.msra.mxu0 0.0
  %1729 = vmatprep.subr.mxu0 0.0
  %1730 = vmatpush1.msra.mxu0 0.0
  %1731 = vmatprep.subr.mxu0 0.0
  %1732 = vmatpush1.msra.mxu0 0.0
  %1733 = vmatprep.subr.mxu0 0.0
  %1734 = vmatpush1.msra.mxu0 0.0
  %1735 = vmatprep.subr.mxu0 0.0
  %1736 = vmatpush1.msra.mxu0 0.0
  %1737 = vmatprep.subr.mxu0 0.0
  %1738 = vmatpush1.msra.mxu0 0.0
  %1739 = vmatprep.subr.mxu0 0.0
  %1740 = vmatpush1.msra.mxu0 0.0
  %1741 = vmatprep.subr.mxu0 0.0
  %1742 = vmatpush1.msra.mxu0 0.0
  %1743 = vmatprep.subr.mxu0 0.0
  %1744 = vmatpush1.msra.mxu0 0.0
  %1745 = vmatprep.subr.mxu0 0.0
  %1746 = vmatpush1.msra.mxu0 0.0
  %1747 = vmatprep.subr.mxu0 0.0
  %1748 = vmatpush1.msra.mxu0 0.0
  %1749 = vmatprep.subr.mxu0 0.0
  %1750 = vmatpush1.msra.mxu0 0.0
  %1751 = vmatprep.subr.mxu0 0.0
  %1752 = vmatpush1.msra.mxu0 0.0
  %1753 = vmatprep.subr.mxu0 0.0
  %1754 = vmatpush1.msra.mxu0 0.0
  %1755 = vmatprep.subr.mxu0 0.0
  %1756 = vmatpush1.msra.mxu0 0.0
  %1757 = vmatprep.subr.mxu0 0.0
  %1758 = vmatpush1.msra.mxu0 0.0
  %1759 = vmatprep.subr.mxu0 0.0
  %1760 = vmatpush1.msra.mxu0 0.0
  %1761 = vmatprep.subr.mxu0 0.0
  %1762 = vmatpush1.msra.mxu0 0.0
  %1763 = vmatprep.subr.mxu0 0.0
  %1764 = vmatpush1.msra.mxu0 0.0
  %1765 = vmatprep.subr.mxu0 0.0
  %1766 = vmatpush1.msra.mxu0 0.0
  %1767 = vmatprep.subr.mxu0 0.0
  %1768 = vmatpush1.msra.mxu0 0.0
  %1769 = vmatprep.subr.mxu0 0.0
  %1770 = vmatpush1.msra.mxu0 0.0
  %1771 = vmatprep.subr.mxu0 0.0
  %1772 = vmatpush1.msra.mxu0 0.0
  %1773 = vmatprep.subr.mxu0 0.0
  %1774 = vmatpush1.msra.mxu0 0.0
  %1775 = vmatprep.subr.mxu0 0.0
  %1776 = vmatpush1.msra.mxu0 0.0
  %1777 = vmatprep.mubr.f32.mxu0 0.0
  %1778 = vmatmul.mubr.f32.gmra.mrb[0].mxu0 %v1708
  %v1779 = vpop.f32.mrb[0].mxu0
  %v1780 = vadd.f32 0.0, %v1779
  %v1781 = vpop.f32.mrb[0].mxu0
  %1782 = vmatprep.mubr.f32.mxu0 0.0
  %1783 = vmatmul.mubr.f32.gmra.mrb[0].mxu0 %v1711
  %v1784 = vpop.f32.mrb[0].mxu0
  %v1785 = vadd.f32 0.0, %v1784
  %v1786 = vpop.f32.mrb[0].mxu0
  %1787 = vdwg.mxu0
  %v1789 = vsel %vm146, %v1780, 0
  %v1792 = vsel %vm146, %v1785, 0
  %1794 = vmatprep.subr.mxu0 0.0
  %1795 = vmatpush1.msra.mxu0 %v959
  %1796 = vmatprep.subr.mxu0 0.0
  %1797 = vmatpush1.msra.mxu0 0.0
  %1798 = vmatprep.subr.mxu0 0.0
  %1799 = vmatpush1.msra.mxu0 0.0
  %1800 = vmatprep.subr.mxu0 0.0
  %1801 = vmatpush1.msra.mxu0 0.0
  %1802 = vmatprep.subr.mxu0 0.0
  %1803 = vmatpush1.msra.mxu0 0.0
  %1804 = vmatprep.subr.mxu0 0.0
  %1805 = vmatpush1.msra.mxu0 0.0
  %1806 = vmatprep.subr.mxu0 0.0
  %1807 = vmatpush1.msra.mxu0 0.0
  %1808 = vmatprep.subr.mxu0 0.0
  %1809 = vmatpush1.msra.mxu0 0.0
  %1810 = vmatprep.subr.mxu0 0.0
  %1811 = vmatpush1.msra.mxu0 0.0
  %1812 = vmatprep.subr.mxu0 0.0
  %1813 = vmatpush1.msra.mxu0 0.0
  %1814 = vmatprep.subr.mxu0 0.0
  %1815 = vmatpush1.msra.mxu0 0.0
  %1816 = vmatprep.subr.mxu0 0.0
  %1817 = vmatpush1.msra.mxu0 0.0
  %1818 = vmatprep.subr.mxu0 0.0
  %1819 = vmatpush1.msra.mxu0 0.0
  %1820 = vmatprep.subr.mxu0 0.0
  %1821 = vmatpush1.msra.mxu0 0.0
  %1822 = vmatprep.subr.mxu0 0.0
  %1823 = vmatpush1.msra.mxu0 0.0
  %1824 = vmatprep.subr.mxu0 0.0
  %1825 = vmatpush1.msra.mxu0 0.0
  %1826 = vmatprep.subr.mxu0 0.0
  %1827 = vmatpush1.msra.mxu0 0.0
  %1828 = vmatprep.subr.mxu0 0.0
  %1829 = vmatpush1.msra.mxu0 0.0
  %1830 = vmatprep.subr.mxu0 0.0
  %1831 = vmatpush1.msra.mxu0 0.0
  %1832 = vmatprep.subr.mxu0 0.0
  %1833 = vmatpush1.msra.mxu0 0.0
  %1834 = vmatprep.subr.mxu0 0.0
  %1835 = vmatpush1.msra.mxu0 0.0
  %1836 = vmatprep.subr.mxu0 0.0
  %1837 = vmatpush1.msra.mxu0 0.0
  %1838 = vmatprep.subr.mxu0 0.0
  %1839 = vmatpush1.msra.mxu0 0.0
  %1840 = vmatprep.subr.mxu0 0.0
  %1841 = vmatpush1.msra.mxu0 0.0
  %1842 = vmatprep.subr.mxu0 0.0
  %1843 = vmatpush1.msra.mxu0 0.0
  %1844 = vmatprep.subr.mxu0 0.0
  %1845 = vmatpush1.msra.mxu0 0.0
  %1846 = vmatprep.subr.mxu0 0.0
  %1847 = vmatpush1.msra.mxu0 0.0
  %1848 = vmatprep.subr.mxu0 0.0
  %1849 = vmatpush1.msra.mxu0 0.0
  %1850 = vmatprep.subr.mxu0 0.0
  %1851 = vmatpush1.msra.mxu0 0.0
  %1852 = vmatprep.subr.mxu0 0.0
  %1853 = vmatpush1.msra.mxu0 0.0
  %1854 = vmatprep.subr.mxu0 0.0
  %1855 = vmatpush1.msra.mxu0 0.0
  %1856 = vmatprep.subr.mxu0 0.0
  %1857 = vmatpush1.msra.mxu0 0.0
  %1858 = vmatprep.mubr.f32.mxu0 0.0
  %1859 = vmatmul.mubr.f32.gmra.mrb[0].mxu0 %v1789
  %v1860 = vpop.f32.mrb[0].mxu0
  %v1861 = vadd.f32 0.0, %v1860
  %v1862 = vpop.f32.mrb[0].mxu0
  %1863 = vmatprep.mubr.f32.mxu0 0.0
  %1864 = vmatmul.mubr.f32.gmra.mrb[0].mxu0 %v1792
  %v1865 = vpop.f32.mrb[0].mxu0
  %v1866 = vadd.f32 0.0, %v1865
  %v1867 = vpop.f32.mrb[0].mxu0
  %1868 = vdwg.mxu0
  %v1870 = vsel %vm146, %v1696, 0
  %v1873 = vsel %vm146, %v1701, 0
  %1875 = vmatprep.subr.mxu0 0.0
  %1876 = vmatpush1.msra.mxu0 %v956
  %1877 = vmatprep.subr.mxu0 0.0
  %1878 = vmatpush1.msra.mxu0 0.0
  %1879 = vmatprep.subr.mxu0 0.0
  %1880 = vmatpush1.msra.mxu0 0.0
  %1881 = vmatprep.subr.mxu0 0.0
  %1882 = vmatpush1.msra.mxu0 0.0
  %1883 = vmatprep.subr.mxu0 0.0
  %1884 = vmatpush1.msra.mxu0 0.0
  %1885 = vmatprep.subr.mxu0 0.0
  %1886 = vmatpush1.msra.mxu0 0.0
  %1887 = vmatprep.subr.mxu0 0.0
  %1888 = vmatpush1.msra.mxu0 0.0
  %1889 = vmatprep.subr.mxu0 0.0
  %1890 = vmatpush1.msra.mxu0 0.0
  %1891 = vmatprep.subr.mxu0 0.0
  %1892 = vmatpush1.msra.mxu0 0.0
  %1893 = vmatprep.subr.mxu0 0.0
  %1894 = vmatpush1.msra.mxu0 0.0
  %1895 = vmatprep.subr.mxu0 0.0
  %1896 = vmatpush1.msra.mxu0 0.0
  %1897 = vmatprep.subr.mxu0 0.0
  %1898 = vmatpush1.msra.mxu0 0.0
  %1899 = vmatprep.subr.mxu0 0.0
  %1900 = vmatpush1.msra.mxu0 0.0
  %1901 = vmatprep.subr.mxu0 0.0
  %1902 = vmatpush1.msra.mxu0 0.0
  %1903 = vmatprep.subr.mxu0 0.0
  %1904 = vmatpush1.msra.mxu0 0.0
  %1905 = vmatprep.subr.mxu0 0.0
  %1906 = vmatpush1.msra.mxu0 0.0
  %1907 = vmatprep.subr.mxu0 0.0
  %1908 = vmatpush1.msra.mxu0 0.0
  %1909 = vmatprep.subr.mxu0 0.0
  %1910 = vmatpush1.msra.mxu0 0.0
  %1911 = vmatprep.subr.mxu0 0.0
  %1912 = vmatpush1.msra.mxu0 0.0
  %1913 = vmatprep.subr.mxu0 0.0
  %1914 = vmatpush1.msra.mxu0 0.0
  %1915 = vmatprep.subr.mxu0 0.0
  %1916 = vmatpush1.msra.mxu0 0.0
  %1917 = vmatprep.subr.mxu0 0.0
  %1918 = vmatpush1.msra.mxu0 0.0
  %1919 = vmatprep.subr.mxu0 0.0
  %1920 = vmatpush1.msra.mxu0 0.0
  %1921 = vmatprep.subr.mxu0 0.0
  %1922 = vmatpush1.msra.mxu0 0.0
  %1923 = vmatprep.subr.mxu0 0.0
  %1924 = vmatpush1.msra.mxu0 0.0
  %1925 = vmatprep.subr.mxu0 0.0
  %1926 = vmatpush1.msra.mxu0 0.0
  %1927 = vmatprep.subr.mxu0 0.0
  %1928 = vmatpush1.msra.mxu0 0.0
  %1929 = vmatprep.subr.mxu0 0.0
  %1930 = vmatpush1.msra.mxu0 0.0
  %1931 = vmatprep.subr.mxu0 0.0
  %1932 = vmatpush1.msra.mxu0 0.0
  %1933 = vmatprep.subr.mxu0 0.0
  %1934 = vmatpush1.msra.mxu0 0.0
  %1935 = vmatprep.subr.mxu0 0.0
  %1936 = vmatpush1.msra.mxu0 0.0
  %1937 = vmatprep.subr.mxu0 0.0
  %1938 = vmatpush1.msra.mxu0 0.0
  %1939 = vmatprep.mubr.f32.mxu0 0.0
  %1940 = vmatmul.mubr.f32.gmra.mrb[0].mxu0 %v1870
  %v1941 = vpop.f32.mrb[0].mxu0
  %v1942 = vadd.f32 %v1861, %v1941
  %v1943 = vpop.f32.mrb[0].mxu0
  %1944 = vmatprep.mubr.f32.mxu0 0.0
  %1945 = vmatmul.mubr.f32.gmra.mrb[0].mxu0 %v1873
  %v1946 = vpop.f32.mrb[0].mxu0
  %v1947 = vadd.f32 %v1866, %v1946
  %v1948 = vpop.f32.mrb[0].mxu0
  %1949 = vdwg.mxu0
  %v1950 = vadd.f32 %v1618, %v1942
  %v1951 = vadd.f32 %v1619, %v1947
  %v1952 = vtanh.pop %v1950
  %v1953 = vtanh.pop %v1951
  %vm1954 = vcmask 31744
  %1955 = vst.msk [vmem:[%s14] sm:$0xff] %vm1954, %v1952
  %1956 = vst.msk [vmem:[%s14 + $0x8] sm:$0xff] %vm1954, %v1953
  // Predicated region
  $region50: #{forward.4} parent=0 // pred_check
    _
  $region51: #{forward.4} parent=0 // pred_check_branch
    %1958 = sbr.rel (0) target = $region53
  $region52: #{forward.4} parent=0 // pred_region
    _
  $region53: #{forward.4} parent=0 // pred_fallthru
    _
  // Predicated region
  $region54: #{forward.4} parent=0 // pred_check
    _
  $region55: #{forward.4} parent=0 // pred_check_branch
    %1960 = sbr.rel (0) target = $region57
  $region56: #{forward.4} parent=0 // pred_region
    _
  $region57: #{forward.4} parent=0 // pred_fallthru
    _
  // Predicated region
  $region58: #{forward.4} parent=0 // pred_check
    _
  $region59: #{forward.4} parent=0 // pred_check_branch
    %1962 = sbr.rel (0) target = $region61
  $region60: #{forward.4} parent=0 // pred_region
    _
  $region61: #{forward.4} parent=0 // pred_fallthru
    _
  // Predicated region
  $region62: #{forward.4} parent=0 // pred_check
    _
  $region63: #{forward.4} parent=0 // pred_check_branch
    %1964 = sbr.rel (0) target = $region65
  $region64: #{forward.4} parent=0 // pred_region
    _
  $region65: #{forward.4} parent=0 // pred_fallthru
    _
  // Predicated region
  $region66: #{forward.4} parent=0 // pred_check
    _
  $region67: #{forward.4} parent=0 // pred_check_branch
    %1966 = sbr.rel (0) target = $region69
  $region68: #{forward.4} parent=0 // pred_region
    _
  $region69: #{forward.4} parent=0 // pred_fallthru
    _
  // Predicated region
  $region70: #{forward.4} parent=0 // pred_check
    _
  $region71: #{forward.4} parent=0 // pred_check_branch
    %1968 = sbr.rel (0) target = $region73
  $region72: #{forward.4} parent=0 // pred_region
    _
  $region73: #{forward.4} parent=0 // pred_fallthru
    _

</llo_original>
